<compile_context>
chip_gen: v7x
topology: tpu7x:2x2x1
jax: 0.10.0
libtpu: 0.0.40
codegen_flags: <defaults>
</compile_context>

<pallas_src>
import functools
import math

import jax
import jax.numpy as jnp
from jax import lax
from jax.experimental import pallas as pl
from jax.experimental.pallas import tpu as pltpu

_DILATIONS = (1, 2, 4, 8, 16)
_NUM_TAPS = 45            # 5 dilations x 9 taps
_LANE_BUDGET = 2048       # max lanes (B_tile * S_pad) processed per grid step


def _esp_kernel(shifts, g, R, pad_off,
                x_ref, w1_ref, wf_ref, gmask_ref, bn_ref, o_ref,
                pad_ref, z_ref):
    Wc = x_ref.shape[-1]
    num_groups = len(shifts) // g

    # c1: 1x1 channel reduce (bf16 MXU, f32 accumulation).  W1 rows were
    # replicated g times on the host, so the canvas holds g stacked copies of
    # out1 -- this is what lets every packed Z store below be a full aligned
    # 16-sublane bf16 block with no per-tap zero padding.
    out1 = jnp.dot(w1_ref[...], x_ref[...],
                   preferred_element_type=jnp.float32)            # (R, Wc) f32

    # Zero only the halo strips; the centre is fully overwritten every step.
    # Done per step (it is tiny) so the grid axis stays safely megacore-parallel.
    halo = jnp.zeros((R, pad_off), jnp.bfloat16)
    pad_ref[:, pl.ds(0, pad_off)] = halo
    pad_ref[:, pl.ds(pad_off + Wc, pad_off)] = halo
    pad_ref[:, pl.ds(pad_off, Wc)] = out1.astype(jnp.bfloat16)

    # Packed im2col: for each group of g taps, sum g shifted canvas slices,
    # each multiplied by a host-precomputed (R, Wc) grouped mask folding the
    # tap's spatial validity AND its sublane band.  Bands are disjoint, so the
    # adds are exact and every store is a full 16-row-aligned bf16 block.
    for gi in range(num_groups):
        acc = None
        for t in range(g):
            j = gi * g + t
            win = pad_ref[:, pl.ds(pad_off + shifts[j], Wc)]      # (R, Wc) bf16
            term = win * gmask_ref[pl.ds(j * R, R), :]
            acc = term if acc is None else acc + term
        z_ref[pl.ds(gi * R, R), :] = acc

    # One fused bf16 matmul = five dilated convs + hierarchical adds + concat.
    combine = jnp.dot(wf_ref[...], z_ref[...],
                      preferred_element_type=jnp.float32)          # (nOut, Wc) f32
    combine = combine + x_ref[...]                                 # residual (nIn == nOut)

    # BR: folded BatchNorm (inference, eps=1e-3 as in the module) + PReLU.
    bn = bn_ref[...]                                               # (nOut, 3) f32
    y = combine * bn[:, 0:1] + bn[:, 1:2]
    o_ref[...] = jnp.where(y >= 0.0, y, bn[:, 2:3] * y).astype(o_ref.dtype)


def esp_block(x_nchw, params, eps=1e-3):
    """ESP block forward. x_nchw: (N, nIn, H, W); requires nIn == nOut (add=True)."""
    N, nIn, H, W = x_nchw.shape
    nOut = params["gamma"].shape[0]
    assert nIn == nOut, "residual add (add=True) requires nIn == nOut"
    n = params["w1"].shape[0]
    n1 = nOut - 4 * n
    S = H * W
    S_pad = ((S + 127) // 128) * 128          # lane-dense blocks / stores
    pad_off = 16 * W + 16                     # largest |flattened tap shift| (d=16)

    # Tap packing: g taps share one R-row (R = lcm(n, 16)) Z block.
    g = 16 // math.gcd(n, 16)
    R = g * n
    num_groups = -(-_NUM_TAPS // g)
    num_taps_padded = num_groups * g
    z_rows = num_groups * R

    # Batch folding onto the lane axis (longer MXU stream, fewer grid steps).
    B_tile = 1
    for cand in range(min(N, max(1, _LANE_BUDGET // S_pad)), 0, -1):
        if N % cand == 0:
            B_tile = cand
            break
    Wc = B_tile * S_pad
    NB = N // B_tile

    # ---- input: NCHW -> channel-major (nIn, N*S_pad), bf16 ----
    x_cs = jnp.transpose(x_nchw.reshape(N, nIn, S).astype(jnp.float32), (1, 0, 2))
    if S_pad != S:
        x_cs = jnp.pad(x_cs, ((0, 0), (0, 0), (0, S_pad - S)))
    x_cs = x_cs.reshape(nIn, N * S_pad).astype(jnp.bfloat16)

    # ---- 1x1 reduce weight replicated g times along its output rows ----
    w1_rep = jnp.tile(params["w1"], (g, 1)).astype(jnp.bfloat16)       # (R, nIn)

    # ---- fused (nOut, z_rows) weight: five dilated convs + hierarchical
    #      fusion + concat; tap j occupies columns [j*n, (j+1)*n) ----
    wds = [params["wd1"], params["wd2"], params["wd4"], params["wd8"], params["wd16"]]
    out_rows = [(0, n1)] + [(n1 + k * n, n1 + (k + 1) * n) for k in range(4)]
    contrib = [(0,), (1, 2, 3, 4), (2, 3, 4), (3, 4), (4,)]
    wf = jnp.zeros((nOut, z_rows), jnp.float32)
    for d_idx, wd in enumerate(wds):
        for kh in range(3):
            for kw in range(3):
                j = d_idx * 9 + kh * 3 + kw
                col = j * n
                tap_w = wd[:, :, kh, kw]                    # (out_c, n)
                for b in contrib[d_idx]:
                    r0, r1 = out_rows[b]
                    wf = wf.at[r0:r1, col:col + n].set(tap_w)
    wf = wf.astype(jnp.bfloat16)

    # ---- static flattened shifts + host-precomputed grouped masks ----
    pos = jnp.arange(S_pad)
    h_idx, w_idx = pos // W, pos % W
    shifts, spat = [], []
    for d in _DILATIONS:
        for kh in range(3):
            for kw in range(3):
                dh, dw = (kh - 1) * d, (kw - 1) * d
                shifts.append(dh * W + dw)
                spat.append((pos < S)
                            & (h_idx + dh >= 0) & (h_idx + dh < H)
                            & (w_idx + dw >= 0) & (w_idx + dw < W))
    for _ in range(num_taps_padded - _NUM_TAPS):     # pad taps: zero mask, zero shift
        shifts.append(0)
        spat.append(jnp.zeros((S_pad,), jnp.bool_))
    spat = jnp.stack(spat)                                       # (taps_padded, S_pad)
    band = jnp.zeros((num_taps_padded, R), jnp.bool_)
    for j in range(num_taps_padded):
        t = j % g
        band = band.at[j, t * n:(t + 1) * n].set(True)
    gmask = (band[:, :, None] & spat[:, None, :]).reshape(num_taps_padded * R, S_pad)
    gmask = jnp.tile(gmask.astype(jnp.bfloat16), (1, B_tile))    # (taps_padded*R, Wc)

    # ---- BatchNorm (inference) folded to scale/shift, packed with PReLU alpha ----
    scale = params["gamma"] * lax.rsqrt(params["var"] + eps)
    shift = params["beta"] - params["mean"] * scale
    bn = jnp.stack([scale, shift, params["alpha"]], axis=1).astype(jnp.float32)

    kernel = functools.partial(_esp_kernel, tuple(shifts), g, R, pad_off)
    out = pl.pallas_call(
        kernel,
        out_shape=jax.ShapeDtypeStruct((nOut, N * S_pad), jnp.float32),
        grid=(NB,),
        in_specs=[
            pl.BlockSpec((nIn, Wc), lambda b: (0, b)),
            pl.BlockSpec((R, nIn), lambda b: (0, 0)),
            pl.BlockSpec((nOut, z_rows), lambda b: (0, 0)),
            pl.BlockSpec((num_taps_padded * R, Wc), lambda b: (0, 0)),
            pl.BlockSpec((nOut, 3), lambda b: (0, 0)),
        ],
        out_specs=pl.BlockSpec((nOut, Wc), lambda b: (0, b)),
        scratch_shapes=[
            pltpu.VMEM((R, Wc + 2 * pad_off), jnp.bfloat16),    # padded out1 canvas
            pltpu.VMEM((z_rows, Wc), jnp.bfloat16),             # packed im2col Z
        ],
        compiler_params=pltpu.CompilerParams(
            dimension_semantics=("parallel",),
            vmem_limit_bytes=48 * 1024 * 1024),
    )(x_cs, w1_rep, wf, gmask, bn)

    out = out.reshape(nOut, N, S_pad)[:, :, :S]
    return jnp.transpose(out, (1, 0, 2)).reshape(N, nOut, H, W).astype(x_nchw.dtype)


def ref_forward(x, params, eps=1e-3):
    """Pure-JAX reference (mirrors the PyTorch forward in eval mode, f32)."""
    def conv(inp, w, d, pad):
        return lax.conv_general_dilated(
            inp, w, window_strides=(1, 1),
            padding=[(pad, pad), (pad, pad)],
            rhs_dilation=(d, d),
            dimension_numbers=("NCHW", "OIHW", "NCHW"),
            precision=lax.Precision.HIGHEST)

    w1 = params["w1"][:, :, None, None]
    out1 = conv(x, w1, 1, 0)
    d1 = conv(out1, params["wd1"], 1, 1)
    d2 = conv(out1, params["wd2"], 2, 2)
    d4 = conv(out1, params["wd4"], 4, 4)
    d8 = conv(out1, params["wd8"], 8, 8)
    d16 = conv(out1, params["wd16"], 16, 16)
    add1 = d2
    add2 = add1 + d4
    add3 = add2 + d8
    add4 = add3 + d16
    combine = jnp.concatenate([d1, add1, add2, add3, add4], axis=1)
    combine = combine + x
    g = params["gamma"][None, :, None, None]
    b = params["beta"][None, :, None, None]
    m = params["mean"][None, :, None, None]
    v = params["var"][None, :, None, None]
    y = (combine - m) / jnp.sqrt(v + eps) * g + b
    a = params["alpha"][None, :, None, None]
    return jnp.where(y >= 0, y, a * y)


if __name__ == "__main__":
    key = jax.random.PRNGKey(0)
    N, H, W = 2, 16, 16
    nIn = nOut = 20                 # residual add requires nIn == nOut
    n = nOut // 5                   # = 4
    n1 = nOut - 4 * n               # = 4

    ks = jax.random.split(key, 11)
    params = {
        "w1":   0.3 * jax.random.normal(ks[0], (n, nIn), jnp.float32),
        "wd1":  0.3 * jax.random.normal(ks[1], (n1, n, 3, 3), jnp.float32),
        "wd2":  0.3 * jax.random.normal(ks[2], (n, n, 3, 3), jnp.float32),
        "wd4":  0.3 * jax.random.normal(ks[3], (n, n, 3, 3), jnp.float32),
        "wd8":  0.3 * jax.random.normal(ks[4], (n, n, 3, 3), jnp.float32),
        "wd16": 0.3 * jax.random.normal(ks[5], (n, n, 3, 3), jnp.float32),
        "gamma": 1.0 + 0.1 * jax.random.normal(ks[6], (nOut,), jnp.float32),
        "beta":  0.1 * jax.random.normal(ks[7], (nOut,), jnp.float32),
        "mean":  0.1 * jax.random.normal(ks[8], (nOut,), jnp.float32),
        "var":   0.5 + jax.nn.sigmoid(jax.random.normal(ks[9], (nOut,), jnp.float32)),
        "alpha": jnp.full((nOut,), 0.25, jnp.float32),   # PReLU default init
    }
    x = jax.random.normal(ks[10], (N, nIn, H, W), jnp.float32)

    out = jax.block_until_ready(esp_block(x, params))
    ref = ref_forward(x, params)

    assert out.shape == (N, nOut, H, W)
    err = float(jnp.max(jnp.abs(out - ref)))
    ref_scale = float(jnp.max(jnp.abs(ref))) + 1e-6
    # bf16 MXU operands with f32 accumulation: tolerance relative to output scale.
    assert err <= 3e-2 * ref_scale + 3e-2, (
        f"max abs err {err} (ref scale {ref_scale})")
    print("KERNEL_OK")
</pallas_src>

<mosaic_0001>
module attributes {stable_mosaic.version = 11 : i64} {
  func.func @_esp_kernel(%arg0: i32, %arg1: memref<20x512xbf16, #tpu.memory_space<vmem>>, %arg2: memref<16x20xbf16, #tpu.memory_space<vmem>>, %arg3: memref<20x192xbf16, #tpu.memory_space<vmem>>, %arg4: memref<768x512xbf16, #tpu.memory_space<vmem>>, %arg5: memref<20x3xf32, #tpu.memory_space<vmem>>, %arg6: memref<20x512xf32, #tpu.memory_space<vmem>>, %arg7: memref<16x1056xbf16, #tpu.memory_space<vmem>>, %arg8: memref<192x512xbf16, #tpu.memory_space<vmem>>) attributes {dimension_semantics = [#tpu.dimension_semantics<parallel>], iteration_bounds = array<i64: 1>, scalar_prefetch = 0 : i64, scratch_operands = 2 : i64, tpu.core_type = #tpu.core_type<tc>, window_params = [{transform_indices = @transform_0, window_bounds = array<i64: 20, 512>}, {pipeline_mode = #tpu.pipeline_mode<synchronous>, transform_indices = @transform_1, window_bounds = array<i64: 16, 20>}, {pipeline_mode = #tpu.pipeline_mode<synchronous>, transform_indices = @transform_2, window_bounds = array<i64: 20, 192>}, {pipeline_mode = #tpu.pipeline_mode<synchronous>, transform_indices = @transform_3, window_bounds = array<i64: 768, 512>}, {pipeline_mode = #tpu.pipeline_mode<synchronous>, transform_indices = @transform_4, window_bounds = array<i64: 20, 3>}, {transform_indices = @transform_5, window_bounds = array<i64: 20, 512>}]} {
    %c0 = arith.constant 0 : index
    %c0_0 = arith.constant 0 : index
    %0 = vector.load %arg2[%c0, %c0_0] : memref<16x20xbf16, #tpu.memory_space<vmem>>, vector<16x20xbf16>
    %c0_1 = arith.constant 0 : index
    %c0_2 = arith.constant 0 : index
    %1 = vector.load %arg1[%c0_1, %c0_2] : memref<20x512xbf16, #tpu.memory_space<vmem>>, vector<20x512xbf16>
    %cst = arith.constant dense<0.000000e+00> : vector<16x512xf32>
    %2 = tpu.matmul %0, %1, %cst {dimension_numbers = #tpu.dot_dimension_numbers<[1], [0], [0], [1], [0, 0, 1, 1], [], []>} : vector<16x20xbf16>, vector<20x512xbf16>, vector<16x512xf32> -> vector<16x512xf32>
    %cst_3 = arith.constant 0.000000e+00 : bf16
    %3 = vector.broadcast %cst_3 : bf16 to vector<16x272xbf16>
    %c0_4 = arith.constant 0 : index
    %c0_5 = arith.constant 0 : index
    %4 = vector.load %arg7[%c0_4, %c0_5] : memref<16x1056xbf16, #tpu.memory_space<vmem>>, vector<16x272xbf16>
    tpu.vector_store %arg7[%c0_4, %c0_5], %3 {strides = array<i32>} : memref<16x1056xbf16, #tpu.memory_space<vmem>>, vector<16x272xbf16>,
    %c0_6 = arith.constant 0 : index
    %c784 = arith.constant 784 : index
    %5 = vector.load %arg7[%c0_6, %c784] : memref<16x1056xbf16, #tpu.memory_space<vmem>>, vector<16x272xbf16>
    tpu.vector_store %arg7[%c0_6, %c784], %3 {strides = array<i32>} : memref<16x1056xbf16, #tpu.memory_space<vmem>>, vector<16x272xbf16>,
    %6 = arith.truncf %2 : vector<16x512xf32> to vector<16x512xbf16>
    %c0_7 = arith.constant 0 : index
    %c272 = arith.constant 272 : index
    %7 = vector.load %arg7[%c0_7, %c272] : memref<16x1056xbf16, #tpu.memory_space<vmem>>, vector<16x512xbf16>
    tpu.vector_store %arg7[%c0_7, %c272], %6 {strides = array<i32>} : memref<16x1056xbf16, #tpu.memory_space<vmem>>, vector<16x512xbf16>,
    %c0_8 = arith.constant 0 : index
    %c255 = arith.constant 255 : index
    %8 = vector.load %arg7[%c0_8, %c255] : memref<16x1056xbf16, #tpu.memory_space<vmem>>, vector<16x512xbf16>
    %c0_9 = arith.constant 0 : index
    %c0_10 = arith.constant 0 : index
    %9 = vector.load %arg4[%c0_9, %c0_10] : memref<768x512xbf16, #tpu.memory_space<vmem>>, vector<16x512xbf16>
    %10 = arith.mulf %8, %9 : vector<16x512xbf16>
    %c0_11 = arith.constant 0 : index
    %c256 = arith.constant 256 : index
    %11 = vector.load %arg7[%c0_11, %c256] : memref<16x1056xbf16, #tpu.memory_space<vmem>>, vector<16x512xbf16>
    %c16 = arith.constant 16 : index
    %c0_12 = arith.constant 0 : index
    %12 = vector.load %arg4[%c16, %c0_12] : memref<768x512xbf16, #tpu.memory_space<vmem>>, vector<16x512xbf16>
    %13 = arith.mulf %11, %12 : vector<16x512xbf16>
    %14 = arith.addf %10, %13 : vector<16x512xbf16>
    %c0_13 = arith.constant 0 : index
    %c257 = arith.constant 257 : index
    %15 = vector.load %arg7[%c0_13, %c257] : memref<16x1056xbf16, #tpu.memory_space<vmem>>, vector<16x512xbf16>
    %c32 = arith.constant 32 : index
    %c0_14 = arith.constant 0 : index
    %16 = vector.load %arg4[%c32, %c0_14] : memref<768x512xbf16, #tpu.memory_space<vmem>>, vector<16x512xbf16>
    %17 = arith.mulf %15, %16 : vector<16x512xbf16>
    %18 = arith.addf %14, %17 : vector<16x512xbf16>
    %c0_15 = arith.constant 0 : index
    %c271 = arith.constant 271 : index
    %19 = vector.load %arg7[%c0_15, %c271] : memref<16x1056xbf16, #tpu.memory_space<vmem>>, vector<16x512xbf16>
    %c48 = arith.constant 48 : index
    %c0_16 = arith.constant 0 : index
    %20 = vector.load %arg4[%c48, %c0_16] : memref<768x512xbf16, #tpu.memory_space<vmem>>, vector<16x512xbf16>
    %21 = arith.mulf %19, %20 : vector<16x512xbf16>
    %22 = arith.addf %18, %21 : vector<16x512xbf16>
    %c0_17 = arith.constant 0 : index
    %c0_18 = arith.constant 0 : index
    %23 = vector.load %arg8[%c0_17, %c0_18] : memref<192x512xbf16, #tpu.memory_space<vmem>>, vector<16x512xbf16>
    tpu.vector_store %arg8[%c0_17, %c0_18], %22 {strides = array<i32>} : memref<192x512xbf16, #tpu.memory_space<vmem>>, vector<16x512xbf16>,
    %c0_19 = arith.constant 0 : index
    %c272_20 = arith.constant 272 : index
    %24 = vector.load %arg7[%c0_19, %c272_20] : memref<16x1056xbf16, #tpu.memory_space<vmem>>, vector<16x512xbf16>
    %c64 = arith.constant 64 : index
    %c0_21 = arith.constant 0 : index
    %25 = vector.load %arg4[%c64, %c0_21] : memref<768x512xbf16, #tpu.memory_space<vmem>>, vector<16x512xbf16>
    %26 = arith.mulf %24, %25 : vector<16x512xbf16>
    %c0_22 = arith.constant 0 : index
    %c273 = arith.constant 273 : index
    %27 = vector.load %arg7[%c0_22, %c273] : memref<16x1056xbf16, #tpu.memory_space<vmem>>, vector<16x512xbf16>
    %c80 = arith.constant 80 : index
    %c0_23 = arith.constant 0 : index
    %28 = vector.load %arg4[%c80, %c0_23] : memref<768x512xbf16, #tpu.memory_space<vmem>>, vector<16x512xbf16>
    %29 = arith.mulf %27, %28 : vector<16x512xbf16>
    %30 = arith.addf %26, %29 : vector<16x512xbf16>
    %c0_24 = arith.constant 0 : index
    %c287 = arith.constant 287 : index
    %31 = vector.load %arg7[%c0_24, %c287] : memref<16x1056xbf16, #tpu.memory_space<vmem>>, vector<16x512xbf16>
    %c96 = arith.constant 96 : index
    %c0_25 = arith.constant 0 : index
    %32 = vector.load %arg4[%c96, %c0_25] : memref<768x512xbf16, #tpu.memory_space<vmem>>, vector<16x512xbf16>
    %33 = arith.mulf %31, %32 : vector<16x512xbf16>
    %34 = arith.addf %30, %33 : vector<16x512xbf16>
    %c0_26 = arith.constant 0 : index
    %c288 = arith.constant 288 : index
    %35 = vector.load %arg7[%c0_26, %c288] : memref<16x1056xbf16, #tpu.memory_space<vmem>>, vector<16x512xbf16>
    %c112 = arith.constant 112 : index
    %c0_27 = arith.constant 0 : index
    %36 = vector.load %arg4[%c112, %c0_27] : memref<768x512xbf16, #tpu.memory_space<vmem>>, vector<16x512xbf16>
    %37 = arith.mulf %35, %36 : vector<16x512xbf16>
    %38 = arith.addf %34, %37 : vector<16x512xbf16>
    %c16_28 = arith.constant 16 : index
    %c0_29 = arith.constant 0 : index
    %39 = vector.load %arg8[%c16_28, %c0_29] : memref<192x512xbf16, #tpu.memory_space<vmem>>, vector<16x512xbf16>
    tpu.vector_store %arg8[%c16_28, %c0_29], %38 {strides = array<i32>} : memref<192x512xbf16, #tpu.memory_space<vmem>>, vector<16x512xbf16>,
    %c0_30 = arith.constant 0 : index
    %c289 = arith.constant 289 : index
    %40 = vector.load %arg7[%c0_30, %c289] : memref<16x1056xbf16, #tpu.memory_space<vmem>>, vector<16x512xbf16>
    %c128 = arith.constant 128 : index
    %c0_31 = arith.constant 0 : index
    %41 = vector.load %arg4[%c128, %c0_31] : memref<768x512xbf16, #tpu.memory_space<vmem>>, vector<16x512xbf16>
    %42 = arith.mulf %40, %41 : vector<16x512xbf16>
    %c0_32 = arith.constant 0 : index
    %c238 = arith.constant 238 : index
    %43 = vector.load %arg7[%c0_32, %c238] : memref<16x1056xbf16, #tpu.memory_space<vmem>>, vector<16x512xbf16>
    %c144 = arith.constant 144 : index
    %c0_33 = arith.constant 0 : index
    %44 = vector.load %arg4[%c144, %c0_33] : memref<768x512xbf16, #tpu.memory_space<vmem>>, vector<16x512xbf16>
    %45 = arith.mulf %43, %44 : vector<16x512xbf16>
    %46 = arith.addf %42, %45 : vector<16x512xbf16>
    %c0_34 = arith.constant 0 : index
    %c240 = arith.constant 240 : index
    %47 = vector.load %arg7[%c0_34, %c240] : memref<16x1056xbf16, #tpu.memory_space<vmem>>, vector<16x512xbf16>
    %c160 = arith.constant 160 : index
    %c0_35 = arith.constant 0 : index
    %48 = vector.load %arg4[%c160, %c0_35] : memref<768x512xbf16, #tpu.memory_space<vmem>>, vector<16x512xbf16>
    %49 = arith.mulf %47, %48 : vector<16x512xbf16>
    %50 = arith.addf %46, %49 : vector<16x512xbf16>
    %c0_36 = arith.constant 0 : index
    %c242 = arith.constant 242 : index
    %51 = vector.load %arg7[%c0_36, %c242] : memref<16x1056xbf16, #tpu.memory_space<vmem>>, vector<16x512xbf16>
    %c176 = arith.constant 176 : index
    %c0_37 = arith.constant 0 : index
    %52 = vector.load %arg4[%c176, %c0_37] : memref<768x512xbf16, #tpu.memory_space<vmem>>, vector<16x512xbf16>
    %53 = arith.mulf %51, %52 : vector<16x512xbf16>
    %54 = arith.addf %50, %53 : vector<16x512xbf16>
    %c32_38 = arith.constant 32 : index
    %c0_39 = arith.constant 0 : index
    %55 = vector.load %arg8[%c32_38, %c0_39] : memref<192x512xbf16, #tpu.memory_space<vmem>>, vector<16x512xbf16>
    tpu.vector_store %arg8[%c32_38, %c0_39], %54 {strides = array<i32>} : memref<192x512xbf16, #tpu.memory_space<vmem>>, vector<16x512xbf16>,
    %c0_40 = arith.constant 0 : index
    %c270 = arith.constant 270 : index
    %56 = vector.load %arg7[%c0_40, %c270] : memref<16x1056xbf16, #tpu.memory_space<vmem>>, vector<16x512xbf16>
    %c192 = arith.constant 192 : index
    %c0_41 = arith.constant 0 : index
    %57 = vector.load %arg4[%c192, %c0_41] : memref<768x512xbf16, #tpu.memory_space<vmem>>, vector<16x512xbf16>
    %58 = arith.mulf %56, %57 : vector<16x512xbf16>
    %c0_42 = arith.constant 0 : index
    %c272_43 = arith.constant 272 : index
    %59 = vector.load %arg7[%c0_42, %c272_43] : memref<16x1056xbf16, #tpu.memory_space<vmem>>, vector<16x512xbf16>
    %c208 = arith.constant 208 : index
    %c0_44 = arith.constant 0 : index
    %60 = vector.load %arg4[%c208, %c0_44] : memref<768x512xbf16, #tpu.memory_space<vmem>>, vector<16x512xbf16>
    %61 = arith.mulf %59, %60 : vector<16x512xbf16>
    %62 = arith.addf %58, %61 : vector<16x512xbf16>
    %c0_45 = arith.constant 0 : index
    %c274 = arith.constant 274 : index
    %63 = vector.load %arg7[%c0_45, %c274] : memref<16x1056xbf16, #tpu.memory_space<vmem>>, vector<16x512xbf16>
    %c224 = arith.constant 224 : index
    %c0_46 = arith.constant 0 : index
    %64 = vector.load %arg4[%c224, %c0_46] : memref<768x512xbf16, #tpu.memory_space<vmem>>, vector<16x512xbf16>
    %65 = arith.mulf %63, %64 : vector<16x512xbf16>
    %66 = arith.addf %62, %65 : vector<16x512xbf16>
    %c0_47 = arith.constant 0 : index
    %c302 = arith.constant 302 : index
    %67 = vector.load %arg7[%c0_47, %c302] : memref<16x1056xbf16, #tpu.memory_space<vmem>>, vector<16x512xbf16>
    %c240_48 = arith.constant 240 : index
    %c0_49 = arith.constant 0 : index
    %68 = vector.load %arg4[%c240_48, %c0_49] : memref<768x512xbf16, #tpu.memory_space<vmem>>, vector<16x512xbf16>
    %69 = arith.mulf %67, %68 : vector<16x512xbf16>
    %70 = arith.addf %66, %69 : vector<16x512xbf16>
    %c48_50 = arith.constant 48 : index
    %c0_51 = arith.constant 0 : index
    %71 = vector.load %arg8[%c48_50, %c0_51] : memref<192x512xbf16, #tpu.memory_space<vmem>>, vector<16x512xbf16>
    tpu.vector_store %arg8[%c48_50, %c0_51], %70 {strides = array<i32>} : memref<192x512xbf16, #tpu.memory_space<vmem>>, vector<16x512xbf16>,
    %c0_52 = arith.constant 0 : index
    %c304 = arith.constant 304 : index
    %72 = vector.load %arg7[%c0_52, %c304] : memref<16x1056xbf16, #tpu.memory_space<vmem>>, vector<16x512xbf16>
    %c256_53 = arith.constant 256 : index
    %c0_54 = arith.constant 0 : index
    %73 = vector.load %arg4[%c256_53, %c0_54] : memref<768x512xbf16, #tpu.memory_space<vmem>>, vector<16x512xbf16>
    %74 = arith.mulf %72, %73 : vector<16x512xbf16>
    %c0_55 = arith.constant 0 : index
    %c306 = arith.constant 306 : index
    %75 = vector.load %arg7[%c0_55, %c306] : memref<16x1056xbf16, #tpu.memory_space<vmem>>, vector<16x512xbf16>
    %c272_56 = arith.constant 272 : index
    %c0_57 = arith.constant 0 : index
    %76 = vector.load %arg4[%c272_56, %c0_57] : memref<768x512xbf16, #tpu.memory_space<vmem>>, vector<16x512xbf16>
    %77 = arith.mulf %75, %76 : vector<16x512xbf16>
    %78 = arith.addf %74, %77 : vector<16x512xbf16>
    %c0_58 = arith.constant 0 : index
    %c204 = arith.constant 204 : index
    %79 = vector.load %arg7[%c0_58, %c204] : memref<16x1056xbf16, #tpu.memory_space<vmem>>, vector<16x512xbf16>
    %c288_59 = arith.constant 288 : index
    %c0_60 = arith.constant 0 : index
    %80 = vector.load %arg4[%c288_59, %c0_60] : memref<768x512xbf16, #tpu.memory_space<vmem>>, vector<16x512xbf16>
    %81 = arith.mulf %79, %80 : vector<16x512xbf16>
    %82 = arith.addf %78, %81 : vector<16x512xbf16>
    %c0_61 = arith.constant 0 : index
    %c208_62 = arith.constant 208 : index
    %83 = vector.load %arg7[%c0_61, %c208_62] : memref<16x1056xbf16, #tpu.memory_space<vmem>>, vector<16x512xbf16>
    %c304_63 = arith.constant 304 : index
    %c0_64 = arith.constant 0 : index
    %84 = vector.load %arg4[%c304_63, %c0_64] : memref<768x512xbf16, #tpu.memory_space<vmem>>, vector<16x512xbf16>
    %85 = arith.mulf %83, %84 : vector<16x512xbf16>
    %86 = arith.addf %82, %85 : vector<16x512xbf16>
    %c64_65 = arith.constant 64 : index
    %c0_66 = arith.constant 0 : index
    %87 = vector.load %arg8[%c64_65, %c0_66] : memref<192x512xbf16, #tpu.memory_space<vmem>>, vector<16x512xbf16>
    tpu.vector_store %arg8[%c64_65, %c0_66], %86 {strides = array<i32>} : memref<192x512xbf16, #tpu.memory_space<vmem>>, vector<16x512xbf16>,
    %c0_67 = arith.constant 0 : index
    %c212 = arith.constant 212 : index
    %88 = vector.load %arg7[%c0_67, %c212] : memref<16x1056xbf16, #tpu.memory_space<vmem>>, vector<16x512xbf16>
    %c320 = arith.constant 320 : index
    %c0_68 = arith.constant 0 : index
    %89 = vector.load %arg4[%c320, %c0_68] : memref<768x512xbf16, #tpu.memory_space<vmem>>, vector<16x512xbf16>
    %90 = arith.mulf %88, %89 : vector<16x512xbf16>
    %c0_69 = arith.constant 0 : index
    %c268 = arith.constant 268 : index
    %91 = vector.load %arg7[%c0_69, %c268] : memref<16x1056xbf16, #tpu.memory_space<vmem>>, vector<16x512xbf16>
    %c336 = arith.constant 336 : index
    %c0_70 = arith.constant 0 : index
    %92 = vector.load %arg4[%c336, %c0_70] : memref<768x512xbf16, #tpu.memory_space<vmem>>, vector<16x512xbf16>
    %93 = arith.mulf %91, %92 : vector<16x512xbf16>
    %94 = arith.addf %90, %93 : vector<16x512xbf16>
    %c0_71 = arith.constant 0 : index
    %c272_72 = arith.constant 272 : index
    %95 = vector.load %arg7[%c0_71, %c272_72] : memref<16x1056xbf16, #tpu.memory_space<vmem>>, vector<16x512xbf16>
    %c352 = arith.constant 352 : index
    %c0_73 = arith.constant 0 : index
    %96 = vector.load %arg4[%c352, %c0_73] : memref<768x512xbf16, #tpu.memory_space<vmem>>, vector<16x512xbf16>
    %97 = arith.mulf %95, %96 : vector<16x512xbf16>
    %98 = arith.addf %94, %97 : vector<16x512xbf16>
    %c0_74 = arith.constant 0 : index
    %c276 = arith.constant 276 : index
    %99 = vector.load %arg7[%c0_74, %c276] : memref<16x1056xbf16, #tpu.memory_space<vmem>>, vector<16x512xbf16>
    %c368 = arith.constant 368 : index
    %c0_75 = arith.constant 0 : index
    %100 = vector.load %arg4[%c368, %c0_75] : memref<768x512xbf16, #tpu.memory_space<vmem>>, vector<16x512xbf16>
    %101 = arith.mulf %99, %100 : vector<16x512xbf16>
    %102 = arith.addf %98, %101 : vector<16x512xbf16>
    %c80_76 = arith.constant 80 : index
    %c0_77 = arith.constant 0 : index
    %103 = vector.load %arg8[%c80_76, %c0_77] : memref<192x512xbf16, #tpu.memory_space<vmem>>, vector<16x512xbf16>
    tpu.vector_store %arg8[%c80_76, %c0_77], %102 {strides = array<i32>} : memref<192x512xbf16, #tpu.memory_space<vmem>>, vector<16x512xbf16>,
    %c0_78 = arith.constant 0 : index
    %c332 = arith.constant 332 : index
    %104 = vector.load %arg7[%c0_78, %c332] : memref<16x1056xbf16, #tpu.memory_space<vmem>>, vector<16x512xbf16>
    %c384 = arith.constant 384 : index
    %c0_79 = arith.constant 0 : index
    %105 = vector.load %arg4[%c384, %c0_79] : memref<768x512xbf16, #tpu.memory_space<vmem>>, vector<16x512xbf16>
    %106 = arith.mulf %104, %105 : vector<16x512xbf16>
    %c0_80 = arith.constant 0 : index
    %c336_81 = arith.constant 336 : index
    %107 = vector.load %arg7[%c0_80, %c336_81] : memref<16x1056xbf16, #tpu.memory_space<vmem>>, vector<16x512xbf16>
    %c400 = arith.constant 400 : index
    %c0_82 = arith.constant 0 : index
    %108 = vector.load %arg4[%c400, %c0_82] : memref<768x512xbf16, #tpu.memory_space<vmem>>, vector<16x512xbf16>
    %109 = arith.mulf %107, %108 : vector<16x512xbf16>
    %110 = arith.addf %106, %109 : vector<16x512xbf16>
    %c0_83 = arith.constant 0 : index
    %c340 = arith.constant 340 : index
    %111 = vector.load %arg7[%c0_83, %c340] : memref<16x1056xbf16, #tpu.memory_space<vmem>>, vector<16x512xbf16>
    %c416 = arith.constant 416 : index
    %c0_84 = arith.constant 0 : index
    %112 = vector.load %arg4[%c416, %c0_84] : memref<768x512xbf16, #tpu.memory_space<vmem>>, vector<16x512xbf16>
    %113 = arith.mulf %111, %112 : vector<16x512xbf16>
    %114 = arith.addf %110, %113 : vector<16x512xbf16>
    %c0_85 = arith.constant 0 : index
    %c136 = arith.constant 136 : index
    %115 = vector.load %arg7[%c0_85, %c136] : memref<16x1056xbf16, #tpu.memory_space<vmem>>, vector<16x512xbf16>
    %c432 = arith.constant 432 : index
    %c0_86 = arith.constant 0 : index
    %116 = vector.load %arg4[%c432, %c0_86] : memref<768x512xbf16, #tpu.memory_space<vmem>>, vector<16x512xbf16>
    %117 = arith.mulf %115, %116 : vector<16x512xbf16>
    %118 = arith.addf %114, %117 : vector<16x512xbf16>
    %c96_87 = arith.constant 96 : index
    %c0_88 = arith.constant 0 : index
    %119 = vector.load %arg8[%c96_87, %c0_88] : memref<192x512xbf16, #tpu.memory_space<vmem>>, vector<16x512xbf16>
    tpu.vector_store %arg8[%c96_87, %c0_88], %118 {strides = array<i32>} : memref<192x512xbf16, #tpu.memory_space<vmem>>, vector<16x512xbf16>,
    %c0_89 = arith.constant 0 : index
    %c144_90 = arith.constant 144 : index
    %120 = vector.load %arg7[%c0_89, %c144_90] : memref<16x1056xbf16, #tpu.memory_space<vmem>>, vector<16x512xbf16>
    %c448 = arith.constant 448 : index
    %c0_91 = arith.constant 0 : index
    %121 = vector.load %arg4[%c448, %c0_91] : memref<768x512xbf16, #tpu.memory_space<vmem>>, vector<16x512xbf16>
    %122 = arith.mulf %120, %121 : vector<16x512xbf16>
    %c0_92 = arith.constant 0 : index
    %c152 = arith.constant 152 : index
    %123 = vector.load %arg7[%c0_92, %c152] : memref<16x1056xbf16, #tpu.memory_space<vmem>>, vector<16x512xbf16>
    %c464 = arith.constant 464 : index
    %c0_93 = arith.constant 0 : index
    %124 = vector.load %arg4[%c464, %c0_93] : memref<768x512xbf16, #tpu.memory_space<vmem>>, vector<16x512xbf16>
    %125 = arith.mulf %123, %124 : vector<16x512xbf16>
    %126 = arith.addf %122, %125 : vector<16x512xbf16>
    %c0_94 = arith.constant 0 : index
    %c264 = arith.constant 264 : index
    %127 = vector.load %arg7[%c0_94, %c264] : memref<16x1056xbf16, #tpu.memory_space<vmem>>, vector<16x512xbf16>
    %c480 = arith.constant 480 : index
    %c0_95 = arith.constant 0 : index
    %128 = vector.load %arg4[%c480, %c0_95] : memref<768x512xbf16, #tpu.memory_space<vmem>>, vector<16x512xbf16>
    %129 = arith.mulf %127, %128 : vector<16x512xbf16>
    %130 = arith.addf %126, %129 : vector<16x512xbf16>
    %c0_96 = arith.constant 0 : index
    %c272_97 = arith.constant 272 : index
    %131 = vector.load %arg7[%c0_96, %c272_97] : memref<16x1056xbf16, #tpu.memory_space<vmem>>, vector<16x512xbf16>
    %c496 = arith.constant 496 : index
    %c0_98 = arith.constant 0 : index
    %132 = vector.load %arg4[%c496, %c0_98] : memref<768x512xbf16, #tpu.memory_space<vmem>>, vector<16x512xbf16>
    %133 = arith.mulf %131, %132 : vector<16x512xbf16>
    %134 = arith.addf %130, %133 : vector<16x512xbf16>
    %c112_99 = arith.constant 112 : index
    %c0_100 = arith.constant 0 : index
    %135 = vector.load %arg8[%c112_99, %c0_100] : memref<192x512xbf16, #tpu.memory_space<vmem>>, vector<16x512xbf16>
    tpu.vector_store %arg8[%c112_99, %c0_100], %134 {strides = array<i32>} : memref<192x512xbf16, #tpu.memory_space<vmem>>, vector<16x512xbf16>,
    %c0_101 = arith.constant 0 : index
    %c280 = arith.constant 280 : index
    %136 = vector.load %arg7[%c0_101, %c280] : memref<16x1056xbf16, #tpu.memory_space<vmem>>, vector<16x512xbf16>
    %c512 = arith.constant 512 : index
    %c0_102 = arith.constant 0 : index
    %137 = vector.load %arg4[%c512, %c0_102] : memref<768x512xbf16, #tpu.memory_space<vmem>>, vector<16x512xbf16>
    %138 = arith.mulf %136, %137 : vector<16x512xbf16>
    %c0_103 = arith.constant 0 : index
    %c392 = arith.constant 392 : index
    %139 = vector.load %arg7[%c0_103, %c392] : memref<16x1056xbf16, #tpu.memory_space<vmem>>, vector<16x512xbf16>
    %c528 = arith.constant 528 : index
    %c0_104 = arith.constant 0 : index
    %140 = vector.load %arg4[%c528, %c0_104] : memref<768x512xbf16, #tpu.memory_space<vmem>>, vector<16x512xbf16>
    %141 = arith.mulf %139, %140 : vector<16x512xbf16>
    %142 = arith.addf %138, %141 : vector<16x512xbf16>
    %c0_105 = arith.constant 0 : index
    %c400_106 = arith.constant 400 : index
    %143 = vector.load %arg7[%c0_105, %c400_106] : memref<16x1056xbf16, #tpu.memory_space<vmem>>, vector<16x512xbf16>
    %c544 = arith.constant 544 : index
    %c0_107 = arith.constant 0 : index
    %144 = vector.load %arg4[%c544, %c0_107] : memref<768x512xbf16, #tpu.memory_space<vmem>>, vector<16x512xbf16>
    %145 = arith.mulf %143, %144 : vector<16x512xbf16>
    %146 = arith.addf %142, %145 : vector<16x512xbf16>
    %c0_108 = arith.constant 0 : index
    %c408 = arith.constant 408 : index
    %147 = vector.load %arg7[%c0_108, %c408] : memref<16x1056xbf16, #tpu.memory_space<vmem>>, vector<16x512xbf16>
    %c560 = arith.constant 560 : index
    %c0_109 = arith.constant 0 : index
    %148 = vector.load %arg4[%c560, %c0_109] : memref<768x512xbf16, #tpu.memory_space<vmem>>, vector<16x512xbf16>
    %149 = arith.mulf %147, %148 : vector<16x512xbf16>
    %150 = arith.addf %146, %149 : vector<16x512xbf16>
    %c128_110 = arith.constant 128 : index
    %c0_111 = arith.constant 0 : index
    %151 = vector.load %arg8[%c128_110, %c0_111] : memref<192x512xbf16, #tpu.memory_space<vmem>>, vector<16x512xbf16>
    tpu.vector_store %arg8[%c128_110, %c0_111], %150 {strides = array<i32>} : memref<192x512xbf16, #tpu.memory_space<vmem>>, vector<16x512xbf16>,
    %c0_112 = arith.constant 0 : index
    %c0_113 = arith.constant 0 : index
    %152 = vector.load %arg7[%c0_112, %c0_113] : memref<16x1056xbf16, #tpu.memory_space<vmem>>, vector<16x512xbf16>
    %c576 = arith.constant 576 : index
    %c0_114 = arith.constant 0 : index
    %153 = vector.load %arg4[%c576, %c0_114] : memref<768x512xbf16, #tpu.memory_space<vmem>>, vector<16x512xbf16>
    %154 = arith.mulf %152, %153 : vector<16x512xbf16>
    %c0_115 = arith.constant 0 : index
    %c16_116 = arith.constant 16 : index
    %155 = vector.load %arg7[%c0_115, %c16_116] : memref<16x1056xbf16, #tpu.memory_space<vmem>>, vector<16x512xbf16>
    %c592 = arith.constant 592 : index
    %c0_117 = arith.constant 0 : index
    %156 = vector.load %arg4[%c592, %c0_117] : memref<768x512xbf16, #tpu.memory_space<vmem>>, vector<16x512xbf16>
    %157 = arith.mulf %155, %156 : vector<16x512xbf16>
    %158 = arith.addf %154, %157 : vector<16x512xbf16>
    %c0_118 = arith.constant 0 : index
    %c32_119 = arith.constant 32 : index
    %159 = vector.load %arg7[%c0_118, %c32_119] : memref<16x1056xbf16, #tpu.memory_space<vmem>>, vector<16x512xbf16>
    %c608 = arith.constant 608 : index
    %c0_120 = arith.constant 0 : index
    %160 = vector.load %arg4[%c608, %c0_120] : memref<768x512xbf16, #tpu.memory_space<vmem>>, vector<16x512xbf16>
    %161 = arith.mulf %159, %160 : vector<16x512xbf16>
    %162 = arith.addf %158, %161 : vector<16x512xbf16>
    %c0_121 = arith.constant 0 : index
    %c256_122 = arith.constant 256 : index
    %163 = vector.load %arg7[%c0_121, %c256_122] : memref<16x1056xbf16, #tpu.memory_space<vmem>>, vector<16x512xbf16>
    %c624 = arith.constant 624 : index
    %c0_123 = arith.constant 0 : index
    %164 = vector.load %arg4[%c624, %c0_123] : memref<768x512xbf16, #tpu.memory_space<vmem>>, vector<16x512xbf16>
    %165 = arith.mulf %163, %164 : vector<16x512xbf16>
    %166 = arith.addf %162, %165 : vector<16x512xbf16>
    %c144_124 = arith.constant 144 : index
    %c0_125 = arith.constant 0 : index
    %167 = vector.load %arg8[%c144_124, %c0_125] : memref<192x512xbf16, #tpu.memory_space<vmem>>, vector<16x512xbf16>
    tpu.vector_store %arg8[%c144_124, %c0_125], %166 {strides = array<i32>} : memref<192x512xbf16, #tpu.memory_space<vmem>>, vector<16x512xbf16>,
    %c0_126 = arith.constant 0 : index
    %c272_127 = arith.constant 272 : index
    %168 = vector.load %arg7[%c0_126, %c272_127] : memref<16x1056xbf16, #tpu.memory_space<vmem>>, vector<16x512xbf16>
    %c640 = arith.constant 640 : index
    %c0_128 = arith.constant 0 : index
    %169 = vector.load %arg4[%c640, %c0_128] : memref<768x512xbf16, #tpu.memory_space<vmem>>, vector<16x512xbf16>
    %170 = arith.mulf %168, %169 : vector<16x512xbf16>
    %c0_129 = arith.constant 0 : index
    %c288_130 = arith.constant 288 : index
    %171 = vector.load %arg7[%c0_129, %c288_130] : memref<16x1056xbf16, #tpu.memory_space<vmem>>, vector<16x512xbf16>
    %c656 = arith.constant 656 : index
    %c0_131 = arith.constant 0 : index
    %172 = vector.load %arg4[%c656, %c0_131] : memref<768x512xbf16, #tpu.memory_space<vmem>>, vector<16x512xbf16>
    %173 = arith.mulf %171, %172 : vector<16x512xbf16>
    %174 = arith.addf %170, %173 : vector<16x512xbf16>
    %c0_132 = arith.constant 0 : index
    %c512_133 = arith.constant 512 : index
    %175 = vector.load %arg7[%c0_132, %c512_133] : memref<16x1056xbf16, #tpu.memory_space<vmem>>, vector<16x512xbf16>
    %c672 = arith.constant 672 : index
    %c0_134 = arith.constant 0 : index
    %176 = vector.load %arg4[%c672, %c0_134] : memref<768x512xbf16, #tpu.memory_space<vmem>>, vector<16x512xbf16>
    %177 = arith.mulf %175, %176 : vector<16x512xbf16>
    %178 = arith.addf %174, %177 : vector<16x512xbf16>
    %c0_135 = arith.constant 0 : index
    %c528_136 = arith.constant 528 : index
    %179 = vector.load %arg7[%c0_135, %c528_136] : memref<16x1056xbf16, #tpu.memory_space<vmem>>, vector<16x512xbf16>
    %c688 = arith.constant 688 : index
    %c0_137 = arith.constant 0 : index
    %180 = vector.load %arg4[%c688, %c0_137] : memref<768x512xbf16, #tpu.memory_space<vmem>>, vector<16x512xbf16>
    %181 = arith.mulf %179, %180 : vector<16x512xbf16>
    %182 = arith.addf %178, %181 : vector<16x512xbf16>
    %c160_138 = arith.constant 160 : index
    %c0_139 = arith.constant 0 : index
    %183 = vector.load %arg8[%c160_138, %c0_139] : memref<192x512xbf16, #tpu.memory_space<vmem>>, vector<16x512xbf16>
    tpu.vector_store %arg8[%c160_138, %c0_139], %182 {strides = array<i32>} : memref<192x512xbf16, #tpu.memory_space<vmem>>, vector<16x512xbf16>,
    %c0_140 = arith.constant 0 : index
    %c544_141 = arith.constant 544 : index
    %184 = vector.load %arg7[%c0_140, %c544_141] : memref<16x1056xbf16, #tpu.memory_space<vmem>>, vector<16x512xbf16>
    %c704 = arith.constant 704 : index
    %c0_142 = arith.constant 0 : index
    %185 = vector.load %arg4[%c704, %c0_142] : memref<768x512xbf16, #tpu.memory_space<vmem>>, vector<16x512xbf16>
    %186 = arith.mulf %184, %185 : vector<16x512xbf16>
    %c0_143 = arith.constant 0 : index
    %c272_144 = arith.constant 272 : index
    %187 = vector.load %arg7[%c0_143, %c272_144] : memref<16x1056xbf16, #tpu.memory_space<vmem>>, vector<16x512xbf16>
    %c720 = arith.constant 720 : index
    %c0_145 = arith.constant 0 : index
    %188 = vector.load %arg4[%c720, %c0_145] : memref<768x512xbf16, #tpu.memory_space<vmem>>, vector<16x512xbf16>
    %189 = arith.mulf %187, %188 : vector<16x512xbf16>
    %190 = arith.addf %186, %189 : vector<16x512xbf16>
    %c0_146 = arith.constant 0 : index
    %c272_147 = arith.constant 272 : index
    %191 = vector.load %arg7[%c0_146, %c272_147] : memref<16x1056xbf16, #tpu.memory_space<vmem>>, vector<16x512xbf16>
    %c736 = arith.constant 736 : index
    %c0_148 = arith.constant 0 : index
    %192 = vector.load %arg4[%c736, %c0_148] : memref<768x512xbf16, #tpu.memory_space<vmem>>, vector<16x512xbf16>
    %193 = arith.mulf %191, %192 : vector<16x512xbf16>
    %194 = arith.addf %190, %193 : vector<16x512xbf16>
    %c0_149 = arith.constant 0 : index
    %c272_150 = arith.constant 272 : index
    %195 = vector.load %arg7[%c0_149, %c272_150] : memref<16x1056xbf16, #tpu.memory_space<vmem>>, vector<16x512xbf16>
    %c752 = arith.constant 752 : index
    %c0_151 = arith.constant 0 : index
    %196 = vector.load %arg4[%c752, %c0_151] : memref<768x512xbf16, #tpu.memory_space<vmem>>, vector<16x512xbf16>
    %197 = arith.mulf %195, %196 : vector<16x512xbf16>
    %198 = arith.addf %194, %197 : vector<16x512xbf16>
    %c176_152 = arith.constant 176 : index
    %c0_153 = arith.constant 0 : index
    %199 = vector.load %arg8[%c176_152, %c0_153] : memref<192x512xbf16, #tpu.memory_space<vmem>>, vector<16x512xbf16>
    tpu.vector_store %arg8[%c176_152, %c0_153], %198 {strides = array<i32>} : memref<192x512xbf16, #tpu.memory_space<vmem>>, vector<16x512xbf16>,
    %c0_154 = arith.constant 0 : index
    %c0_155 = arith.constant 0 : index
    %200 = vector.load %arg3[%c0_154, %c0_155] : memref<20x192xbf16, #tpu.memory_space<vmem>>, vector<20x192xbf16>
    %c0_156 = arith.constant 0 : index
    %c0_157 = arith.constant 0 : index
    %201 = vector.load %arg8[%c0_156, %c0_157] : memref<192x512xbf16, #tpu.memory_space<vmem>>, vector<192x512xbf16>
    %cst_158 = arith.constant dense<0.000000e+00> : vector<20x512xf32>
    %202 = tpu.matmul %200, %201, %cst_158 {dimension_numbers = #tpu.dot_dimension_numbers<[1], [0], [0], [1], [0, 0, 1, 1], [], []>} : vector<20x192xbf16>, vector<192x512xbf16>, vector<20x512xf32> -> vector<20x512xf32>
    %c0_159 = arith.constant 0 : index
    %c0_160 = arith.constant 0 : index
    %203 = vector.load %arg1[%c0_159, %c0_160] : memref<20x512xbf16, #tpu.memory_space<vmem>>, vector<20x512xbf16>
    %204 = arith.extf %203 : vector<20x512xbf16> to vector<20x512xf32>
    %205 = arith.addf %202, %204 : vector<20x512xf32>
    %c0_161 = arith.constant 0 : index
    %c0_162 = arith.constant 0 : index
    %206 = vector.load %arg5[%c0_161, %c0_162] : memref<20x3xf32, #tpu.memory_space<vmem>>, vector<20x3xf32>
    %207 = vector.extract_strided_slice %206 {offsets = [0, 0], sizes = [20, 1], strides = [1, 1]} : vector<20x3xf32> to vector<20x1xf32>
    %208 = vector.broadcast %207 : vector<20x1xf32> to vector<20x512xf32>
    %209 = arith.mulf %205, %208 : vector<20x512xf32>
    %210 = vector.extract_strided_slice %206 {offsets = [0, 1], sizes = [20, 1], strides = [1, 1]} : vector<20x3xf32> to vector<20x1xf32>
    %211 = vector.broadcast %210 : vector<20x1xf32> to vector<20x512xf32>
    %212 = arith.addf %209, %211 : vector<20x512xf32>
    %cst_163 = arith.constant 0.000000e+00 : f32
    %213 = vector.broadcast %cst_163 : f32 to vector<20x512xf32>
    %214 = arith.cmpf oge, %212, %213 : vector<20x512xf32>
    %215 = vector.extract_strided_slice %206 {offsets = [0, 2], sizes = [20, 1], strides = [1, 1]} : vector<20x3xf32> to vector<20x1xf32>
    %216 = vector.broadcast %215 : vector<20x1xf32> to vector<20x512xf32>
    %217 = arith.mulf %216, %212 : vector<20x512xf32>
    %218 = arith.select %214, %212, %217 : vector<20x512xi1>, vector<20x512xf32>
    %c0_164 = arith.constant 0 : index
    %c0_165 = arith.constant 0 : index
    %219 = vector.load %arg6[%c0_164, %c0_165] : memref<20x512xf32, #tpu.memory_space<vmem>>, vector<20x512xf32>
    tpu.vector_store %arg6[%c0_164, %c0_165], %218 {strides = array<i32>} : memref<20x512xf32, #tpu.memory_space<vmem>>, vector<20x512xf32>,
    return
  }
  func.func @transform_0(%arg0: i32) -> (i32, i32) {
    %c0_i32 = arith.constant 0 : i32
    %c0_i32_0 = arith.constant 0 : i32
    return %c0_i32, %arg0 : i32, i32
  }
  func.func @transform_1(%arg0: i32) -> (i32, i32) {
    %c0_i32 = arith.constant 0 : i32
    %c0_i32_0 = arith.constant 0 : i32
    %c0_i32_1 = arith.constant 0 : i32
    return %c0_i32, %c0_i32_0 : i32, i32
  }
  func.func @transform_2(%arg0: i32) -> (i32, i32) {
    %c0_i32 = arith.constant 0 : i32
    %c0_i32_0 = arith.constant 0 : i32
    %c0_i32_1 = arith.constant 0 : i32
    return %c0_i32, %c0_i32_0 : i32, i32
  }
  func.func @transform_3(%arg0: i32) -> (i32, i32) {
    %c0_i32 = arith.constant 0 : i32
    %c0_i32_0 = arith.constant 0 : i32
    %c0_i32_1 = arith.constant 0 : i32
    return %c0_i32, %c0_i32_0 : i32, i32
  }
  func.func @transform_4(%arg0: i32) -> (i32, i32) {
    %c0_i32 = arith.constant 0 : i32
    %c0_i32_0 = arith.constant 0 : i32
    %c0_i32_1 = arith.constant 0 : i32
    return %c0_i32, %c0_i32_0 : i32, i32
  }
  func.func @transform_5(%arg0: i32) -> (i32, i32) {
    %c0_i32 = arith.constant 0 : i32
    %c0_i32_0 = arith.constant 0 : i32
    return %c0_i32, %arg0 : i32, i32
  }
}

</mosaic_0001>

<llo_original>
// kernel: tpu_custom_call.1
$region0: #{tpu_custom_call.1}
  #allocation0 [shape = 'u32[]', space=smem, size = 0x4, offset = 0x4, fixed_abs, tag = 'smem constant byte address 0x4 - core index']
  #allocation1 [shape = 'u32[144,128]{1,0:T(1,128)}', space=vmem, size = 0x12000, scoped, tag = 'internal scratch']
  #allocation2 [shape = 'bf16[16,1056]{1,0:T(16,128)(2,1)}', space=vmem, size = 0x9000, scoped, tag = 'scratch operand']
  #allocation3 [shape = 'bf16[192,512]{1,0:T(16,128)(2,1)}', space=vmem, size = 0x30000, scoped, tag = 'scratch operand']
  %s0 = inlined_call_operand.hbm [shape: bf16[20,512], index: 0, kind: input, shape index: {}]
  %s1 = inlined_call_operand.vmem [shape: bf16[16,20], index: 1, kind: input, shape index: {}]
  %s2 = inlined_call_operand.vmem [shape: bf16[20,192], index: 2, kind: input, shape index: {}]
  %s3 = inlined_call_operand.hbm [shape: bf16[768,512], index: 3, kind: input, shape index: {}]
  %s4 = inlined_call_operand.vmem [shape: f32[20,3], index: 4, kind: input, shape index: {}]
  %s5 = inlined_call_operand.hbm [shape: f32[20,512], index: 5, kind: output, shape index: {}]
  %s6 = sld [smem:[#allocation0]]
  $region38: #{tpu_custom_call.1} parent=0
    _
  %s8 = ssub.s32 1, %s6
  %s9 = scalar_select 0, %s8, %s6
  $region1: #{tpu_custom_call.1} parent=0
    #allocation4 [shape = 'u8[24576]{0}', space=vmem, size = 0x6000, scoped, tag = 'input window, operand 0, single buffered']
    #allocation5 [shape = 's32[1]{0}', space=sflag, size = 0x4, scoped, tag = 'scoped memory for tpu_custom_call.1']
    #allocation6 [shape = 's32[1]{0}', space=sflag, size = 0x4, scoped, tag = 'scoped memory for tpu_custom_call.1']
    #allocation7 [shape = 'u8[786432]{0}', space=vmem, size = 0xc0000, scoped, tag = 'input window, operand 3, single buffered']
    #allocation8 [shape = 's32[1]{0}', space=sflag, size = 0x4, scoped, tag = 'scoped memory for tpu_custom_call.1']
    #allocation9 [shape = 'u8[49152]{0}', space=vmem, size = 0xc000, scoped, tag = 'output window, operand 0, single buffered']
    %10 = vsyncpa [#allocation5], 0
    %11 = vsyncpa [#allocation8], 0
    %12 = vsyncpa [#allocation6], 0
    // Predicated region
    $region2: #{tpu_custom_call.1} parent=1 // pred_check
      _
    $region3: #{tpu_custom_call.1} parent=1 // pred_check_branch
      %14 = sbr.rel (0) target = $region5
    $region4: #{tpu_custom_call.1} parent=1 // pred_region
      %s16 = ssub.s32 768, 768
      %17 = vsyncadd [#allocation5], %s16
      %s18 = sshll.u32 [#allocation4], 4
      %s19 = int_to_ptr.vmem [resolvable:$true] %s18
      %24 = dma.hbm_to_vmem [thread:$0]  %s0, 768, %s19, [#allocation5], 256, 256, 16
    $region5: #{tpu_custom_call.1} parent=1 // pred_fallthru
      _
    // Predicated region
    $region6: #{tpu_custom_call.1} parent=1 // pred_check
      _
    $region7: #{tpu_custom_call.1} parent=1 // pred_check_branch
      %26 = sbr.rel (0) target = $region9
    $region8: #{tpu_custom_call.1} parent=1 // pred_region
      _
    $region9: #{tpu_custom_call.1} parent=1 // pred_fallthru
      _
    // Predicated region
    $region10: #{tpu_custom_call.1} parent=1 // pred_check
      _
    $region11: #{tpu_custom_call.1} parent=1 // pred_check_branch
      %28 = sbr.rel (0) target = $region13
    $region12: #{tpu_custom_call.1} parent=1 // pred_region
      _
    $region13: #{tpu_custom_call.1} parent=1 // pred_fallthru
      _
    // Predicated region
    $region14: #{tpu_custom_call.1} parent=1 // pred_check
      _
    $region15: #{tpu_custom_call.1} parent=1 // pred_check_branch
      %30 = sbr.rel (0) target = $region17
    $region16: #{tpu_custom_call.1} parent=1 // pred_region
      %s32 = ssub.s32 24576, 24576
      %33 = vsyncadd [#allocation8], %s32
      %s34 = sshll.u32 [#allocation7], 4
      %s35 = int_to_ptr.vmem [resolvable:$true] %s34
      %40 = dma.hbm_to_vmem [thread:$0]  %s3, 24576, %s35, [#allocation8], 256, 256, 16
    $region17: #{tpu_custom_call.1} parent=1 // pred_fallthru
      _
    // Predicated region
    $region18: #{tpu_custom_call.1} parent=1 // pred_check
      _
    $region19: #{tpu_custom_call.1} parent=1 // pred_check_branch
      %42 = sbr.rel (0) target = $region21
    $region20: #{tpu_custom_call.1} parent=1 // pred_region
      _
    $region21: #{tpu_custom_call.1} parent=1 // pred_fallthru
      _
    // Predicated region
    $region22: #{tpu_custom_call.1} parent=1 // pred_check
      _
    $region23: #{tpu_custom_call.1} parent=1 // pred_check_branch
      %44 = sbr.rel (0) target = $region25
    $region24: #{tpu_custom_call.1} parent=1 // pred_region
      %45 = dma.done [#allocation5], 768
    $region25: #{tpu_custom_call.1} parent=1 // pred_fallthru
      _
    // Predicated region
    $region26: #{tpu_custom_call.1} parent=1 // pred_check
      _
    $region27: #{tpu_custom_call.1} parent=1 // pred_check_branch
      %47 = sbr.rel (0) target = $region29
    $region28: #{tpu_custom_call.1} parent=1 // pred_region
      %48 = dma.done [#allocation8], 24576
    $region29: #{tpu_custom_call.1} parent=1 // pred_fallthru
      _
    %v50 = vld [vmem:[%s1] sm:$0xf]
    %v51 = vld [vmem:[%s1 + $0x4] sm:$0xf]
    %v52 = vld [vmem:[#allocation4] sm:$0xff]
    %v53 = vld [vmem:[#allocation4 + $0x8] sm:$0xff]
    %v54 = vld [vmem:[#allocation4 + $0x10] sm:$0xff]
    %v55 = vld [vmem:[#allocation4 + $0x18] sm:$0xff]
    %v56 = vld [vmem:[#allocation4 + $0x20] sm:$0x33]
    %v57 = vld [vmem:[#allocation4 + $0x28] sm:$0x33]
    %v60 = vunpack.c.l.b16 %v50
    %v61 = vunpack.c.l.b16 %v51
    %v62 = vpack.c.b16 %v61, %v60
    %v69 = vunpack.c.l.b16 %v52
    %v70 = vunpack.c.h.b16 %v52
    %v71 = vunpack.c.l.b16 %v53
    %v72 = vunpack.c.h.b16 %v53
    %v73 = vunpack.c.l.b16 %v54
    %v74 = vunpack.c.h.b16 %v54
    %v75 = vunpack.c.l.b16 %v55
    %v76 = vunpack.c.h.b16 %v55
    %v77 = vunpack.c.l.b16 %v56
    %v78 = vunpack.c.h.b16 %v56
    %v79 = vunpack.c.l.b16 %v57
    %v80 = vunpack.c.h.b16 %v57
    %v81 = vpack.c.b16 %v73, %v69
    %v82 = vpack.c.b16 %v74, %v70
    %v83 = vpack.c.b16 %v75, %v71
    %v84 = vpack.c.b16 %v76, %v72
    %v85 = vpack.c.b16 %v77, %v77
    %v86 = vpack.c.b16 %v78, %v78
    %v87 = vpack.c.b16 %v79, %v79
    %v88 = vpack.c.b16 %v80, %v80
    %vm93 = vcmask 162816
    %v95 = vsel %vm93, %v62, 0
    %vm97 = vcmask 1041408
    %v99 = vsel %vm97, %v85, 0
    %v102 = vsel %vm97, %v86, 0
    %v105 = vsel %vm97, %v87, 0
    %v108 = vsel %vm97, %v88, 0
    %110 = vmatprep.subr.bf16.mxu0 %v82
    %111 = vmatpush1.bf16.msra.mxu0 %v81
    %112 = vmatprep.subr.bf16.mxu0 %v102
    %113 = vmatpush1.bf16.msra.mxu0 %v99
    %114 = vmatprep.subr.bf16.mxu0 0
    %115 = vmatpush1.bf16.msra.mxu0 0
    %116 = vmatprep.subr.bf16.mxu0 0
    %117 = vmatpush1.bf16.msra.mxu0 0
    %118 = vmatprep.subr.bf16.mxu0 0
    %119 = vmatpush1.bf16.msra.mxu0 0
    %120 = vmatprep.subr.bf16.mxu0 0
    %121 = vmatpush1.bf16.msra.mxu0 0
    %122 = vmatprep.subr.bf16.mxu0 0
    %123 = vmatpush1.bf16.msra.mxu0 0
    %124 = vmatprep.subr.bf16.mxu0 0
    %125 = vmatpush1.bf16.msra.mxu0 0
    %126 = vmatprep.subr.bf16.mxu0 0
    %127 = vmatpush1.bf16.msra.mxu0 0
    %128 = vmatprep.subr.bf16.mxu0 0
    %129 = vmatpush1.bf16.msra.mxu0 0
    %130 = vmatprep.subr.bf16.mxu0 0
    %131 = vmatpush1.bf16.msra.mxu0 0
    %132 = vmatprep.subr.bf16.mxu0 0
    %133 = vmatpush1.bf16.msra.mxu0 0
    %134 = vmatprep.subr.bf16.mxu0 0
    %135 = vmatpush1.bf16.msra.mxu0 0
    %136 = vmatprep.subr.bf16.mxu0 0
    %137 = vmatpush1.bf16.msra.mxu0 0
    %138 = vmatprep.subr.bf16.mxu0 0
    %139 = vmatpush1.bf16.msra.mxu0 0
    %140 = vmatprep.subr.bf16.mxu0 0
    %141 = vmatpush1.bf16.msra.mxu0 0
    %142 = vmatprep.mubr.bf16.mxu0 0
    %143 = vmatmul.mubr.bf16.gmra.mrb[0].mxu0 %v95
    %v144 = vpop.f32.mrb[0].mxu0
    %v145 = vadd.f32 0.0, %v144
    %v146 = vpop.f32.mrb[0].mxu0
    %v147 = vadd.f32 0.0, %v146
    %v148 = vpop.f32.mrb[0].mxu0
    %v149 = vadd.f32 0.0, %v148
    %v150 = vpop.f32.mrb[0].mxu0
    %v151 = vadd.f32 0.0, %v150
    %152 = vdwg.mxu0
    %153 = vmatprep.subr.bf16.mxu0 %v84
    %154 = vmatpush1.bf16.msra.mxu0 %v83
    %155 = vmatprep.subr.bf16.mxu0 %v108
    %156 = vmatpush1.bf16.msra.mxu0 %v105
    %157 = vmatprep.subr.bf16.mxu0 0
    %158 = vmatpush1.bf16.msra.mxu0 0
    %159 = vmatprep.subr.bf16.mxu0 0
    %160 = vmatpush1.bf16.msra.mxu0 0
    %161 = vmatprep.subr.bf16.mxu0 0
    %162 = vmatpush1.bf16.msra.mxu0 0
    %163 = vmatprep.subr.bf16.mxu0 0
    %164 = vmatpush1.bf16.msra.mxu0 0
    %165 = vmatprep.subr.bf16.mxu0 0
    %166 = vmatpush1.bf16.msra.mxu0 0
    %167 = vmatprep.subr.bf16.mxu0 0
    %168 = vmatpush1.bf16.msra.mxu0 0
    %169 = vmatprep.subr.bf16.mxu0 0
    %170 = vmatpush1.bf16.msra.mxu0 0
    %171 = vmatprep.subr.bf16.mxu0 0
    %172 = vmatpush1.bf16.msra.mxu0 0
    %173 = vmatprep.subr.bf16.mxu0 0
    %174 = vmatpush1.bf16.msra.mxu0 0
    %175 = vmatprep.subr.bf16.mxu0 0
    %176 = vmatpush1.bf16.msra.mxu0 0
    %177 = vmatprep.subr.bf16.mxu0 0
    %178 = vmatpush1.bf16.msra.mxu0 0
    %179 = vmatprep.subr.bf16.mxu0 0
    %180 = vmatpush1.bf16.msra.mxu0 0
    %181 = vmatprep.subr.bf16.mxu0 0
    %182 = vmatpush1.bf16.msra.mxu0 0
    %183 = vmatprep.subr.bf16.mxu0 0
    %184 = vmatpush1.bf16.msra.mxu0 0
    %185 = vmatprep.mubr.bf16.mxu0 0
    %186 = vmatmul.mubr.bf16.gmra.mrb[0].mxu0 %v95
    %v187 = vpop.f32.mrb[0].mxu0
    %v188 = vadd.f32 0.0, %v187
    %v189 = vpop.f32.mrb[0].mxu0
    %v190 = vadd.f32 0.0, %v189
    %v191 = vpop.f32.mrb[0].mxu0
    %v192 = vadd.f32 0.0, %v191
    %v193 = vpop.f32.mrb[0].mxu0
    %v194 = vadd.f32 0.0, %v193
    %195 = vdwg.mxu0
    %196 = vst [vmem:[#allocation2] sm:$0xff] 0
    %197 = vst [vmem:[#allocation2 + $0x8] sm:$0xff] 0
    %vm198 = vcmask 130048
    %199 = vst.msk [vmem:[#allocation2 + $0x10] sm:$0xff] %vm198, 0
    %vm200 = vcmask 1047680
    %201 = vst.msk [vmem:[#allocation2 + $0x30] sm:$0xff] %vm200, 0
    %202 = vst [vmem:[#allocation2 + $0x38] sm:$0xff] 0
    %vm203 = vcmask 261120
    %204 = vst.msk [vmem:[#allocation2 + $0x40] sm:$0xff] %vm203, 0
    %v205 = vpack.c.bf16 %v149, %v145
    %v206 = vpack.c.bf16 %v151, %v147
    %v207 = vpack.c.bf16 %v192, %v188
    %v208 = vpack.c.bf16 %v194, %v190
    %213 = vrot.lane.b32.xlu0 %v205, 16
    %v214 = vpop.permute.xlu0 %213
    %215 = vrot.lane.b32.xlu0 %v206, 16
    %v216 = vpop.permute.xlu0 %215
    %217 = vrot.lane.b32.xlu0 %v207, 16
    %v218 = vpop.permute.xlu0 %217
    %219 = vrot.lane.b32.xlu0 %v208, 16
    %v220 = vpop.permute.xlu0 %219
    %vm221 = vcmask 130048
    %v222 = vsel %vm221, %v214, %v216
    %v223 = vsel %vm221, %v216, %v218
    %v224 = vsel %vm221, %v218, %v220
    %230 = vst.msk [vmem:[#allocation2 + $0x10] sm:$0xff] %vm200, %v214
    %231 = vst [vmem:[#allocation2 + $0x18] sm:$0xff] %v222
    %232 = vst [vmem:[#allocation2 + $0x20] sm:$0xff] %v223
    %233 = vst [vmem:[#allocation2 + $0x28] sm:$0xff] %v224
    %234 = vst.msk [vmem:[#allocation2 + $0x30] sm:$0xff] %vm198, %v220
    %v235 = vld [vmem:[#allocation2 + $0x8] sm:$0xff]
    %v236 = vld [vmem:[#allocation2 + $0x10] sm:$0xff]
    %v237 = vld [vmem:[#allocation2 + $0x18] sm:$0xff]
    %v238 = vld [vmem:[#allocation2 + $0x20] sm:$0xff]
    %v239 = vld [vmem:[#allocation2 + $0x28] sm:$0xff]
    %v240 = vld [vmem:[#allocation7] sm:$0xff]
    %v241 = vld [vmem:[#allocation7 + $0x8] sm:$0xff]
    %v242 = vld [vmem:[#allocation7 + $0x10] sm:$0xff]
    %v243 = vld [vmem:[#allocation7 + $0x18] sm:$0xff]
    %v248 = vunpack.c.l.b16 %v240
    %v249 = vunpack.c.h.b16 %v240
    %v250 = vunpack.c.l.b16 %v241
    %v251 = vunpack.c.h.b16 %v241
    %v252 = vunpack.c.l.b16 %v242
    %v253 = vunpack.c.h.b16 %v242
    %v254 = vunpack.c.l.b16 %v243
    %v255 = vunpack.c.h.b16 %v243
    %v256 = vpack.c.b16 %v252, %v248
    %v257 = vpack.c.b16 %v253, %v249
    %v258 = vpack.c.b16 %v254, %v250
    %v259 = vpack.c.b16 %v255, %v251
    %260 = vrot.lane.b32.xlu0 %v256, 127
    %v261 = vpop.permute.xlu0 %260
    %262 = vrot.lane.b32.xlu0 %v257, 127
    %v263 = vpop.permute.xlu0 %262
    %264 = vrot.lane.b32.xlu0 %v258, 127
    %v265 = vpop.permute.xlu0 %264
    %266 = vrot.lane.b32.xlu0 %v259, 127
    %v267 = vpop.permute.xlu0 %266
    %vm268 = vcmask 1039360
    %v269 = vsel %vm268, %v261, %v263
    %v270 = vsel %vm268, %v263, %v265
    %v271 = vsel %vm268, %v265, %v267
    %v277 = vmul.bf16 %v235, %v261
    %v278 = vmul.bf16 %v236, %v269
    %v279 = vmul.bf16 %v237, %v270
    %v280 = vmul.bf16 %v238, %v271
    %v281 = vmul.bf16 %v239, %v267
    %v282 = vld [vmem:[#allocation7 + $0x20] sm:$0xff]
    %v283 = vld [vmem:[#allocation7 + $0x28] sm:$0xff]
    %v284 = vld [vmem:[#allocation7 + $0x30] sm:$0xff]
    %v285 = vld [vmem:[#allocation7 + $0x38] sm:$0xff]
    %v290 = vunpack.c.l.b16 %v282
    %v291 = vunpack.c.h.b16 %v282
    %v292 = vunpack.c.l.b16 %v283
    %v293 = vunpack.c.h.b16 %v283
    %v294 = vunpack.c.l.b16 %v284
    %v295 = vunpack.c.h.b16 %v284
    %v296 = vunpack.c.l.b16 %v285
    %v297 = vunpack.c.h.b16 %v285
    %v298 = vpack.c.b16 %v294, %v290
    %v299 = vpack.c.b16 %v295, %v291
    %v300 = vpack.c.b16 %v296, %v292
    %v301 = vpack.c.b16 %v297, %v293
    %v306 = vmul.bf16 %v236, %v298
    %v307 = vmul.bf16 %v237, %v299
    %v308 = vmul.bf16 %v238, %v300
    %v309 = vmul.bf16 %v239, %v301
    %314 = vrot.lane.b32.xlu0 %v306, 127
    %v315 = vpop.permute.xlu0 %314
    %316 = vrot.lane.b32.xlu0 %v307, 127
    %v317 = vpop.permute.xlu0 %316
    %318 = vrot.lane.b32.xlu0 %v308, 127
    %v319 = vpop.permute.xlu0 %318
    %320 = vrot.lane.b32.xlu0 %v309, 127
    %v321 = vpop.permute.xlu0 %320
    %v322 = vsel %vm268, %v315, %v317
    %v323 = vsel %vm268, %v317, %v319
    %v324 = vsel %vm268, %v319, %v321
    %v330 = vadd.bf16 %v277, %v315
    %v331 = vadd.bf16 %v278, %v322
    %v332 = vadd.bf16 %v279, %v323
    %v333 = vadd.bf16 %v280, %v324
    %v334 = vadd.bf16 %v281, %v321
    %v335 = vld [vmem:[#allocation2 + $0x30] sm:$0xff]
    %v336 = vld [vmem:[#allocation7 + $0x40] sm:$0xff]
    %v337 = vld [vmem:[#allocation7 + $0x48] sm:$0xff]
    %v338 = vld [vmem:[#allocation7 + $0x50] sm:$0xff]
    %v339 = vld [vmem:[#allocation7 + $0x58] sm:$0xff]
    %v344 = vunpack.c.l.b16 %v336
    %v345 = vunpack.c.h.b16 %v336
    %v346 = vunpack.c.l.b16 %v337
    %v347 = vunpack.c.h.b16 %v337
    %v348 = vunpack.c.l.b16 %v338
    %v349 = vunpack.c.h.b16 %v338
    %v350 = vunpack.c.l.b16 %v339
    %v351 = vunpack.c.h.b16 %v339
    %v352 = vpack.c.b16 %v348, %v344
    %v353 = vpack.c.b16 %v349, %v345
    %v354 = vpack.c.b16 %v350, %v346
    %v355 = vpack.c.b16 %v351, %v347
    %356 = vrot.lane.b32.xlu0 %v352, 1
    %v357 = vpop.permute.xlu0 %356
    %358 = vrot.lane.b32.xlu0 %v353, 1
    %v359 = vpop.permute.xlu0 %358
    %360 = vrot.lane.b32.xlu0 %v354, 1
    %v361 = vpop.permute.xlu0 %360
    %362 = vrot.lane.b32.xlu0 %v355, 1
    %v363 = vpop.permute.xlu0 %362
    %vm364 = vcmask 7168
    %v365 = vsel %vm364, %v357, %v359
    %v366 = vsel %vm364, %v359, %v361
    %v367 = vsel %vm364, %v361, %v363
    %v373 = vmul.bf16 %v236, %v357
    %v374 = vmul.bf16 %v237, %v365
    %v375 = vmul.bf16 %v238, %v366
    %v376 = vmul.bf16 %v239, %v367
    %v377 = vmul.bf16 %v335, %v363
    %383 = vrot.lane.b32.xlu0 %v373, 126
    %v384 = vpop.permute.xlu0 %383
    %385 = vrot.lane.b32.xlu0 %v374, 126
    %v386 = vpop.permute.xlu0 %385
    %387 = vrot.lane.b32.xlu0 %v375, 126
    %v388 = vpop.permute.xlu0 %387
    %389 = vrot.lane.b32.xlu0 %v376, 126
    %v390 = vpop.permute.xlu0 %389
    %391 = vrot.lane.b32.xlu0 %v377, 126
    %v392 = vpop.permute.xlu0 %391
    %vm393 = vcmask 1031168
    %v394 = vsel %vm393, %v384, %v386
    %v395 = vsel %vm393, %v386, %v388
    %v396 = vsel %vm393, %v388, %v390
    %v397 = vsel %vm393, %v390, %v392
    %v403 = vadd.bf16 %v330, %v384
    %v404 = vadd.bf16 %v331, %v394
    %v405 = vadd.bf16 %v332, %v395
    %v406 = vadd.bf16 %v333, %v396
    %v407 = vadd.bf16 %v334, %v397
    %v408 = vld [vmem:[#allocation7 + $0x60] sm:$0xff]
    %v409 = vld [vmem:[#allocation7 + $0x68] sm:$0xff]
    %v410 = vld [vmem:[#allocation7 + $0x70] sm:$0xff]
    %v411 = vld [vmem:[#allocation7 + $0x78] sm:$0xff]
    %v416 = vunpack.c.l.b16 %v408
    %v417 = vunpack.c.h.b16 %v408
    %v418 = vunpack.c.l.b16 %v409
    %v419 = vunpack.c.h.b16 %v409
    %v420 = vunpack.c.l.b16 %v410
    %v421 = vunpack.c.h.b16 %v410
    %v422 = vunpack.c.l.b16 %v411
    %v423 = vunpack.c.h.b16 %v411
    %v424 = vpack.c.b16 %v420, %v416
    %v425 = vpack.c.b16 %v421, %v417
    %v426 = vpack.c.b16 %v422, %v418
    %v427 = vpack.c.b16 %v423, %v419
    %428 = vrot.lane.b32.xlu0 %v424, 15
    %v429 = vpop.permute.xlu0 %428
    %430 = vrot.lane.b32.xlu0 %v425, 15
    %v431 = vpop.permute.xlu0 %430
    %432 = vrot.lane.b32.xlu0 %v426, 15
    %v433 = vpop.permute.xlu0 %432
    %434 = vrot.lane.b32.xlu0 %v427, 15
    %v435 = vpop.permute.xlu0 %434
    %vm436 = vcmask 121856
    %v437 = vsel %vm436, %v429, %v431
    %v438 = vsel %vm436, %v431, %v433
    %v439 = vsel %vm436, %v433, %v435
    %v445 = vmul.bf16 %v236, %v429
    %v446 = vmul.bf16 %v237, %v437
    %v447 = vmul.bf16 %v238, %v438
    %v448 = vmul.bf16 %v239, %v439
    %v449 = vmul.bf16 %v335, %v435
    %455 = vrot.lane.b32.xlu0 %v445, 112
    %v456 = vpop.permute.xlu0 %455
    %457 = vrot.lane.b32.xlu0 %v446, 112
    %v458 = vpop.permute.xlu0 %457
    %459 = vrot.lane.b32.xlu0 %v447, 112
    %v460 = vpop.permute.xlu0 %459
    %461 = vrot.lane.b32.xlu0 %v448, 112
    %v462 = vpop.permute.xlu0 %461
    %463 = vrot.lane.b32.xlu0 %v449, 112
    %v464 = vpop.permute.xlu0 %463
    %vm465 = vcmask 916480
    %v466 = vsel %vm465, %v456, %v458
    %v467 = vsel %vm465, %v458, %v460
    %v468 = vsel %vm465, %v460, %v462
    %v469 = vsel %vm465, %v462, %v464
    %v475 = vadd.bf16 %v403, %v456
    %v476 = vadd.bf16 %v404, %v466
    %v477 = vadd.bf16 %v405, %v467
    %v478 = vadd.bf16 %v406, %v468
    %v479 = vadd.bf16 %v407, %v469
    %485 = vrot.lane.b32.xlu0 %v475, 1
    %v486 = vpop.permute.xlu0 %485
    %487 = vrot.lane.b32.xlu0 %v476, 1
    %v488 = vpop.permute.xlu0 %487
    %489 = vrot.lane.b32.xlu0 %v477, 1
    %v490 = vpop.permute.xlu0 %489
    %491 = vrot.lane.b32.xlu0 %v478, 1
    %v492 = vpop.permute.xlu0 %491
    %493 = vrot.lane.b32.xlu0 %v479, 1
    %v494 = vpop.permute.xlu0 %493
    %v495 = vsel %vm364, %v486, %v488
    %v496 = vsel %vm364, %v488, %v490
    %v497 = vsel %vm364, %v490, %v492
    %v498 = vsel %vm364, %v492, %v494
    %503 = vst [vmem:[#allocation3] sm:$0xff] %v495
    %504 = vst [vmem:[#allocation3 + $0x8] sm:$0xff] %v496
    %505 = vst [vmem:[#allocation3 + $0x10] sm:$0xff] %v497
    %506 = vst [vmem:[#allocation3 + $0x18] sm:$0xff] %v498
    %v507 = vld [vmem:[#allocation2 + $0x10] sm:$0xff]
    %v508 = vld [vmem:[#allocation2 + $0x18] sm:$0xff]
    %v509 = vld [vmem:[#allocation2 + $0x20] sm:$0xff]
    %v510 = vld [vmem:[#allocation2 + $0x28] sm:$0xff]
    %v511 = vld [vmem:[#allocation2 + $0x30] sm:$0xff]
    %v512 = vld [vmem:[#allocation7 + $0x80] sm:$0xff]
    %v513 = vld [vmem:[#allocation7 + $0x88] sm:$0xff]
    %v514 = vld [vmem:[#allocation7 + $0x90] sm:$0xff]
    %v515 = vld [vmem:[#allocation7 + $0x98] sm:$0xff]
    %v520 = vunpack.c.l.b16 %v512
    %v521 = vunpack.c.h.b16 %v512
    %v522 = vunpack.c.l.b16 %v513
    %v523 = vunpack.c.h.b16 %v513
    %v524 = vunpack.c.l.b16 %v514
    %v525 = vunpack.c.h.b16 %v514
    %v526 = vunpack.c.l.b16 %v515
    %v527 = vunpack.c.h.b16 %v515
    %v528 = vpack.c.b16 %v524, %v520
    %v529 = vpack.c.b16 %v525, %v521
    %v530 = vpack.c.b16 %v526, %v522
    %v531 = vpack.c.b16 %v527, %v523
    %532 = vrot.lane.b32.xlu0 %v528, 16
    %v533 = vpop.permute.xlu0 %532
    %534 = vrot.lane.b32.xlu0 %v529, 16
    %v535 = vpop.permute.xlu0 %534
    %536 = vrot.lane.b32.xlu0 %v530, 16
    %v537 = vpop.permute.xlu0 %536
    %538 = vrot.lane.b32.xlu0 %v531, 16
    %v539 = vpop.permute.xlu0 %538
    %v540 = vsel %vm221, %v533, %v535
    %v541 = vsel %vm221, %v535, %v537
    %v542 = vsel %vm221, %v537, %v539
    %v548 = vmul.bf16 %v507, %v533
    %v549 = vmul.bf16 %v508, %v540
    %v550 = vmul.bf16 %v509, %v541
    %v551 = vmul.bf16 %v510, %v542
    %v552 = vmul.bf16 %v511, %v539
    %v553 = vld [vmem:[#allocation7 + $0xa0] sm:$0xff]
    %v554 = vld [vmem:[#allocation7 + $0xa8] sm:$0xff]
    %v555 = vld [vmem:[#allocation7 + $0xb0] sm:$0xff]
    %v556 = vld [vmem:[#allocation7 + $0xb8] sm:$0xff]
    %v561 = vunpack.c.l.b16 %v553
    %v562 = vunpack.c.h.b16 %v553
    %v563 = vunpack.c.l.b16 %v554
    %v564 = vunpack.c.h.b16 %v554
    %v565 = vunpack.c.l.b16 %v555
    %v566 = vunpack.c.h.b16 %v555
    %v567 = vunpack.c.l.b16 %v556
    %v568 = vunpack.c.h.b16 %v556
    %v569 = vpack.c.b16 %v565, %v561
    %v570 = vpack.c.b16 %v566, %v562
    %v571 = vpack.c.b16 %v567, %v563
    %v572 = vpack.c.b16 %v568, %v564
    %573 = vrot.lane.b32.xlu0 %v569, 17
    %v574 = vpop.permute.xlu0 %573
    %575 = vrot.lane.b32.xlu0 %v570, 17
    %v576 = vpop.permute.xlu0 %575
    %577 = vrot.lane.b32.xlu0 %v571, 17
    %v578 = vpop.permute.xlu0 %577
    %579 = vrot.lane.b32.xlu0 %v572, 17
    %v580 = vpop.permute.xlu0 %579
    %vm581 = vcmask 138240
    %v582 = vsel %vm581, %v574, %v576
    %v583 = vsel %vm581, %v576, %v578
    %v584 = vsel %vm581, %v578, %v580
    %v590 = vmul.bf16 %v507, %v574
    %v591 = vmul.bf16 %v508, %v582
    %v592 = vmul.bf16 %v509, %v583
    %v593 = vmul.bf16 %v510, %v584
    %v594 = vmul.bf16 %v511, %v580
    %600 = vrot.lane.b32.xlu0 %v590, 127
    %v601 = vpop.permute.xlu0 %600
    %602 = vrot.lane.b32.xlu0 %v591, 127
    %v603 = vpop.permute.xlu0 %602
    %604 = vrot.lane.b32.xlu0 %v592, 127
    %v605 = vpop.permute.xlu0 %604
    %606 = vrot.lane.b32.xlu0 %v593, 127
    %v607 = vpop.permute.xlu0 %606
    %608 = vrot.lane.b32.xlu0 %v594, 127
    %v609 = vpop.permute.xlu0 %608
    %v610 = vsel %vm268, %v601, %v603
    %v611 = vsel %vm268, %v603, %v605
    %v612 = vsel %vm268, %v605, %v607
    %v613 = vsel %vm268, %v607, %v609
    %v619 = vadd.bf16 %v548, %v610
    %v620 = vadd.bf16 %v549, %v611
    %v621 = vadd.bf16 %v550, %v612
    %v622 = vadd.bf16 %v551, %v613
    %v623 = vadd.bf16 %v552, %v609
    %v624 = vld [vmem:[#allocation7 + $0xc0] sm:$0xff]
    %v625 = vld [vmem:[#allocation7 + $0xc8] sm:$0xff]
    %v626 = vld [vmem:[#allocation7 + $0xd0] sm:$0xff]
    %v627 = vld [vmem:[#allocation7 + $0xd8] sm:$0xff]
    %v632 = vunpack.c.l.b16 %v624
    %v633 = vunpack.c.h.b16 %v624
    %v634 = vunpack.c.l.b16 %v625
    %v635 = vunpack.c.h.b16 %v625
    %v636 = vunpack.c.l.b16 %v626
    %v637 = vunpack.c.h.b16 %v626
    %v638 = vunpack.c.l.b16 %v627
    %v639 = vunpack.c.h.b16 %v627
    %v640 = vpack.c.b16 %v636, %v632
    %v641 = vpack.c.b16 %v637, %v633
    %v642 = vpack.c.b16 %v638, %v634
    %v643 = vpack.c.b16 %v639, %v635
    %644 = vrot.lane.b32.xlu0 %v640, 31
    %v645 = vpop.permute.xlu0 %644
    %646 = vrot.lane.b32.xlu0 %v641, 31
    %v647 = vpop.permute.xlu0 %646
    %648 = vrot.lane.b32.xlu0 %v642, 31
    %v649 = vpop.permute.xlu0 %648
    %650 = vrot.lane.b32.xlu0 %v643, 31
    %v651 = vpop.permute.xlu0 %650
    %vm652 = vcmask 252928
    %v653 = vsel %vm652, %v645, %v647
    %v654 = vsel %vm652, %v647, %v649
    %v655 = vsel %vm652, %v649, %v651
    %v661 = vmul.bf16 %v507, %v645
    %v662 = vmul.bf16 %v508, %v653
    %v663 = vmul.bf16 %v509, %v654
    %v664 = vmul.bf16 %v510, %v655
    %v665 = vmul.bf16 %v511, %v651
    %671 = vrot.lane.b32.xlu0 %v661, 113
    %v672 = vpop.permute.xlu0 %671
    %673 = vrot.lane.b32.xlu0 %v662, 113
    %v674 = vpop.permute.xlu0 %673
    %675 = vrot.lane.b32.xlu0 %v663, 113
    %v676 = vpop.permute.xlu0 %675
    %677 = vrot.lane.b32.xlu0 %v664, 113
    %v678 = vpop.permute.xlu0 %677
    %679 = vrot.lane.b32.xlu0 %v665, 113
    %v680 = vpop.permute.xlu0 %679
    %vm681 = vcmask 924672
    %v682 = vsel %vm681, %v672, %v674
    %v683 = vsel %vm681, %v674, %v676
    %v684 = vsel %vm681, %v676, %v678
    %v685 = vsel %vm681, %v678, %v680
    %v691 = vadd.bf16 %v619, %v682
    %v692 = vadd.bf16 %v620, %v683
    %v693 = vadd.bf16 %v621, %v684
    %v694 = vadd.bf16 %v622, %v685
    %v695 = vadd.bf16 %v623, %v680
    %v696 = vld [vmem:[#allocation7 + $0xe0] sm:$0xff]
    %v697 = vld [vmem:[#allocation7 + $0xe8] sm:$0xff]
    %v698 = vld [vmem:[#allocation7 + $0xf0] sm:$0xff]
    %v699 = vld [vmem:[#allocation7 + $0xf8] sm:$0xff]
    %v704 = vunpack.c.l.b16 %v696
    %v705 = vunpack.c.h.b16 %v696
    %v706 = vunpack.c.l.b16 %v697
    %v707 = vunpack.c.h.b16 %v697
    %v708 = vunpack.c.l.b16 %v698
    %v709 = vunpack.c.h.b16 %v698
    %v710 = vunpack.c.l.b16 %v699
    %v711 = vunpack.c.h.b16 %v699
    %v712 = vpack.c.b16 %v708, %v704
    %v713 = vpack.c.b16 %v709, %v705
    %v714 = vpack.c.b16 %v710, %v706
    %v715 = vpack.c.b16 %v711, %v707
    %716 = vrot.lane.b32.xlu0 %v712, 32
    %v717 = vpop.permute.xlu0 %716
    %718 = vrot.lane.b32.xlu0 %v713, 32
    %v719 = vpop.permute.xlu0 %718
    %720 = vrot.lane.b32.xlu0 %v714, 32
    %v721 = vpop.permute.xlu0 %720
    %722 = vrot.lane.b32.xlu0 %v715, 32
    %v723 = vpop.permute.xlu0 %722
    %vm724 = vcmask 261120
    %v725 = vsel %vm724, %v717, %v719
    %v726 = vsel %vm724, %v719, %v721
    %v727 = vsel %vm724, %v721, %v723
    %v733 = vmul.bf16 %v507, %v717
    %v734 = vmul.bf16 %v508, %v725
    %v735 = vmul.bf16 %v509, %v726
    %v736 = vmul.bf16 %v510, %v727
    %v737 = vmul.bf16 %v511, %v723
    %743 = vrot.lane.b32.xlu0 %v733, 112
    %v744 = vpop.permute.xlu0 %743
    %745 = vrot.lane.b32.xlu0 %v734, 112
    %v746 = vpop.permute.xlu0 %745
    %747 = vrot.lane.b32.xlu0 %v735, 112
    %v748 = vpop.permute.xlu0 %747
    %749 = vrot.lane.b32.xlu0 %v736, 112
    %v750 = vpop.permute.xlu0 %749
    %751 = vrot.lane.b32.xlu0 %v737, 112
    %v752 = vpop.permute.xlu0 %751
    %v753 = vsel %vm465, %v744, %v746
    %v754 = vsel %vm465, %v746, %v748
    %v755 = vsel %vm465, %v748, %v750
    %v756 = vsel %vm465, %v750, %v752
    %v762 = vadd.bf16 %v691, %v753
    %v763 = vadd.bf16 %v692, %v754
    %v764 = vadd.bf16 %v693, %v755
    %v765 = vadd.bf16 %v694, %v756
    %v766 = vadd.bf16 %v695, %v752
    %772 = vrot.lane.b32.xlu0 %v762, 112
    %v773 = vpop.permute.xlu0 %772
    %774 = vrot.lane.b32.xlu0 %v763, 112
    %v775 = vpop.permute.xlu0 %774
    %776 = vrot.lane.b32.xlu0 %v764, 112
    %v777 = vpop.permute.xlu0 %776
    %778 = vrot.lane.b32.xlu0 %v765, 112
    %v779 = vpop.permute.xlu0 %778
    %780 = vrot.lane.b32.xlu0 %v766, 112
    %v781 = vpop.permute.xlu0 %780
    %v782 = vsel %vm465, %v773, %v775
    %v783 = vsel %vm465, %v775, %v777
    %v784 = vsel %vm465, %v777, %v779
    %v785 = vsel %vm465, %v779, %v781
    %790 = vst [vmem:[#allocation3 + $0x20] sm:$0xff] %v782
    %791 = vst [vmem:[#allocation3 + $0x28] sm:$0xff] %v783
    %792 = vst [vmem:[#allocation3 + $0x30] sm:$0xff] %v784
    %793 = vst [vmem:[#allocation3 + $0x38] sm:$0xff] %v785
    %v794 = vld [vmem:[#allocation2 + $0x10] sm:$0xff]
    %v795 = vld [vmem:[#allocation2 + $0x18] sm:$0xff]
    %v796 = vld [vmem:[#allocation2 + $0x20] sm:$0xff]
    %v797 = vld [vmem:[#allocation2 + $0x28] sm:$0xff]
    %v798 = vld [vmem:[#allocation2 + $0x30] sm:$0xff]
    %v799 = vld [vmem:[#allocation7 + $0x100] sm:$0xff]
    %v800 = vld [vmem:[#allocation7 + $0x108] sm:$0xff]
    %v801 = vld [vmem:[#allocation7 + $0x110] sm:$0xff]
    %v802 = vld [vmem:[#allocation7 + $0x118] sm:$0xff]
    %v807 = vunpack.c.l.b16 %v799
    %v808 = vunpack.c.h.b16 %v799
    %v809 = vunpack.c.l.b16 %v800
    %v810 = vunpack.c.h.b16 %v800
    %v811 = vunpack.c.l.b16 %v801
    %v812 = vunpack.c.h.b16 %v801
    %v813 = vunpack.c.l.b16 %v802
    %v814 = vunpack.c.h.b16 %v802
    %v815 = vpack.c.b16 %v811, %v807
    %v816 = vpack.c.b16 %v812, %v808
    %v817 = vpack.c.b16 %v813, %v809
    %v818 = vpack.c.b16 %v814, %v810
    %819 = vrot.lane.b32.xlu0 %v815, 33
    %v820 = vpop.permute.xlu0 %819
    %821 = vrot.lane.b32.xlu0 %v816, 33
    %v822 = vpop.permute.xlu0 %821
    %823 = vrot.lane.b32.xlu0 %v817, 33
    %v824 = vpop.permute.xlu0 %823
    %825 = vrot.lane.b32.xlu0 %v818, 33
    %v826 = vpop.permute.xlu0 %825
    %vm827 = vcmask 269312
    %v828 = vsel %vm827, %v820, %v822
    %v829 = vsel %vm827, %v822, %v824
    %v830 = vsel %vm827, %v824, %v826
    %v836 = vmul.bf16 %v794, %v820
    %v837 = vmul.bf16 %v795, %v828
    %v838 = vmul.bf16 %v796, %v829
    %v839 = vmul.bf16 %v797, %v830
    %v840 = vmul.bf16 %v798, %v826
    %v841 = vld [vmem:[#allocation2 + $0x8] sm:$0xff]
    %v842 = vld [vmem:[#allocation7 + $0x120] sm:$0xff]
    %v843 = vld [vmem:[#allocation7 + $0x128] sm:$0xff]
    %v844 = vld [vmem:[#allocation7 + $0x130] sm:$0xff]
    %v845 = vld [vmem:[#allocation7 + $0x138] sm:$0xff]
    %v850 = vunpack.c.l.b16 %v842
    %v851 = vunpack.c.h.b16 %v842
    %v852 = vunpack.c.l.b16 %v843
    %v853 = vunpack.c.h.b16 %v843
    %v854 = vunpack.c.l.b16 %v844
    %v855 = vunpack.c.h.b16 %v844
    %v856 = vunpack.c.l.b16 %v845
    %v857 = vunpack.c.h.b16 %v845
    %v858 = vpack.c.b16 %v854, %v850
    %v859 = vpack.c.b16 %v855, %v851
    %v860 = vpack.c.b16 %v856, %v852
    %v861 = vpack.c.b16 %v857, %v853
    %862 = vrot.lane.b32.xlu0 %v858, 110
    %v863 = vpop.permute.xlu0 %862
    %864 = vrot.lane.b32.xlu0 %v859, 110
    %v865 = vpop.permute.xlu0 %864
    %866 = vrot.lane.b32.xlu0 %v860, 110
    %v867 = vpop.permute.xlu0 %866
    %868 = vrot.lane.b32.xlu0 %v861, 110
    %v869 = vpop.permute.xlu0 %868
    %vm870 = vcmask 900096
    %v871 = vsel %vm870, %v863, %v865
    %v872 = vsel %vm870, %v865, %v867
    %v873 = vsel %vm870, %v867, %v869
    %v879 = vmul.bf16 %v841, %v863
    %v880 = vmul.bf16 %v794, %v871
    %v881 = vmul.bf16 %v795, %v872
    %v882 = vmul.bf16 %v796, %v873
    %v883 = vmul.bf16 %v797, %v869
    %889 = vrot.lane.b32.xlu0 %v879, 51
    %v890 = vpop.permute.xlu0 %889
    %891 = vrot.lane.b32.xlu0 %v880, 51
    %v892 = vpop.permute.xlu0 %891
    %893 = vrot.lane.b32.xlu0 %v881, 51
    %v894 = vpop.permute.xlu0 %893
    %895 = vrot.lane.b32.xlu0 %v882, 51
    %v896 = vpop.permute.xlu0 %895
    %897 = vrot.lane.b32.xlu0 %v883, 51
    %v898 = vpop.permute.xlu0 %897
    %vm899 = vcmask 416768
    %v900 = vsel %vm899, %v890, %v892
    %v901 = vsel %vm899, %v892, %v894
    %v902 = vsel %vm899, %v894, %v896
    %v903 = vsel %vm899, %v896, %v898
    %v909 = vadd.bf16 %v836, %v900
    %v910 = vadd.bf16 %v837, %v901
    %v911 = vadd.bf16 %v838, %v902
    %v912 = vadd.bf16 %v839, %v903
    %v913 = vadd.bf16 %v840, %v898
    %v914 = vld [vmem:[#allocation7 + $0x140] sm:$0xff]
    %v915 = vld [vmem:[#allocation7 + $0x148] sm:$0xff]
    %v916 = vld [vmem:[#allocation7 + $0x150] sm:$0xff]
    %v917 = vld [vmem:[#allocation7 + $0x158] sm:$0xff]
    %v922 = vunpack.c.l.b16 %v914
    %v923 = vunpack.c.h.b16 %v914
    %v924 = vunpack.c.l.b16 %v915
    %v925 = vunpack.c.h.b16 %v915
    %v926 = vunpack.c.l.b16 %v916
    %v927 = vunpack.c.h.b16 %v916
    %v928 = vunpack.c.l.b16 %v917
    %v929 = vunpack.c.h.b16 %v917
    %v930 = vpack.c.b16 %v926, %v922
    %v931 = vpack.c.b16 %v927, %v923
    %v932 = vpack.c.b16 %v928, %v924
    %v933 = vpack.c.b16 %v929, %v925
    %934 = vrot.lane.b32.xlu0 %v930, 112
    %v935 = vpop.permute.xlu0 %934
    %936 = vrot.lane.b32.xlu0 %v931, 112
    %v937 = vpop.permute.xlu0 %936
    %938 = vrot.lane.b32.xlu0 %v932, 112
    %v939 = vpop.permute.xlu0 %938
    %940 = vrot.lane.b32.xlu0 %v933, 112
    %v941 = vpop.permute.xlu0 %940
    %v942 = vsel %vm465, %v935, %v937
    %v943 = vsel %vm465, %v937, %v939
    %v944 = vsel %vm465, %v939, %v941
    %v950 = vmul.bf16 %v841, %v935
    %v951 = vmul.bf16 %v794, %v942
    %v952 = vmul.bf16 %v795, %v943
    %v953 = vmul.bf16 %v796, %v944
    %v954 = vmul.bf16 %v797, %v941
    %960 = vrot.lane.b32.xlu0 %v950, 49
    %v961 = vpop.permute.xlu0 %960
    %962 = vrot.lane.b32.xlu0 %v951, 49
    %v963 = vpop.permute.xlu0 %962
    %964 = vrot.lane.b32.xlu0 %v952, 49
    %v965 = vpop.permute.xlu0 %964
    %966 = vrot.lane.b32.xlu0 %v953, 49
    %v967 = vpop.permute.xlu0 %966
    %968 = vrot.lane.b32.xlu0 %v954, 49
    %v969 = vpop.permute.xlu0 %968
    %vm970 = vcmask 400384
    %v971 = vsel %vm970, %v961, %v963
    %v972 = vsel %vm970, %v963, %v965
    %v973 = vsel %vm970, %v965, %v967
    %v974 = vsel %vm970, %v967, %v969
    %v980 = vadd.bf16 %v909, %v971
    %v981 = vadd.bf16 %v910, %v972
    %v982 = vadd.bf16 %v911, %v973
    %v983 = vadd.bf16 %v912, %v974
    %v984 = vadd.bf16 %v913, %v969
    %v985 = vld [vmem:[#allocation7 + $0x160] sm:$0xff]
    %v986 = vld [vmem:[#allocation7 + $0x168] sm:$0xff]
    %v987 = vld [vmem:[#allocation7 + $0x170] sm:$0xff]
    %v988 = vld [vmem:[#allocation7 + $0x178] sm:$0xff]
    %v993 = vunpack.c.l.b16 %v985
    %v994 = vunpack.c.h.b16 %v985
    %v995 = vunpack.c.l.b16 %v986
    %v996 = vunpack.c.h.b16 %v986
    %v997 = vunpack.c.l.b16 %v987
    %v998 = vunpack.c.h.b16 %v987
    %v999 = vunpack.c.l.b16 %v988
    %v1000 = vunpack.c.h.b16 %v988
    %v1001 = vpack.c.b16 %v997, %v993
    %v1002 = vpack.c.b16 %v998, %v994
    %v1003 = vpack.c.b16 %v999, %v995
    %v1004 = vpack.c.b16 %v1000, %v996
    %1005 = vrot.lane.b32.xlu0 %v1001, 114
    %v1006 = vpop.permute.xlu0 %1005
    %1007 = vrot.lane.b32.xlu0 %v1002, 114
    %v1008 = vpop.permute.xlu0 %1007
    %1009 = vrot.lane.b32.xlu0 %v1003, 114
    %v1010 = vpop.permute.xlu0 %1009
    %1011 = vrot.lane.b32.xlu0 %v1004, 114
    %v1012 = vpop.permute.xlu0 %1011
    %vm1013 = vcmask 932864
    %v1014 = vsel %vm1013, %v1006, %v1008
    %v1015 = vsel %vm1013, %v1008, %v1010
    %v1016 = vsel %vm1013, %v1010, %v1012
    %v1022 = vmul.bf16 %v841, %v1006
    %v1023 = vmul.bf16 %v794, %v1014
    %v1024 = vmul.bf16 %v795, %v1015
    %v1025 = vmul.bf16 %v796, %v1016
    %v1026 = vmul.bf16 %v797, %v1012
    %1032 = vrot.lane.b32.xlu0 %v1022, 47
    %v1033 = vpop.permute.xlu0 %1032
    %1034 = vrot.lane.b32.xlu0 %v1023, 47
    %v1035 = vpop.permute.xlu0 %1034
    %1036 = vrot.lane.b32.xlu0 %v1024, 47
    %v1037 = vpop.permute.xlu0 %1036
    %1038 = vrot.lane.b32.xlu0 %v1025, 47
    %v1039 = vpop.permute.xlu0 %1038
    %1040 = vrot.lane.b32.xlu0 %v1026, 47
    %v1041 = vpop.permute.xlu0 %1040
    %vm1042 = vcmask 384000
    %v1043 = vsel %vm1042, %v1033, %v1035
    %v1044 = vsel %vm1042, %v1035, %v1037
    %v1045 = vsel %vm1042, %v1037, %v1039
    %v1046 = vsel %vm1042, %v1039, %v1041
    %v1052 = vadd.bf16 %v980, %v1043
    %v1053 = vadd.bf16 %v981, %v1044
    %v1054 = vadd.bf16 %v982, %v1045
    %v1055 = vadd.bf16 %v983, %v1046
    %v1056 = vadd.bf16 %v984, %v1041
    %1062 = vrot.lane.b32.xlu0 %v1052, 95
    %v1063 = vpop.permute.xlu0 %1062
    %1064 = vrot.lane.b32.xlu0 %v1053, 95
    %v1065 = vpop.permute.xlu0 %1064
    %1066 = vrot.lane.b32.xlu0 %v1054, 95
    %v1067 = vpop.permute.xlu0 %1066
    %1068 = vrot.lane.b32.xlu0 %v1055, 95
    %v1069 = vpop.permute.xlu0 %1068
    %1070 = vrot.lane.b32.xlu0 %v1056, 95
    %v1071 = vpop.permute.xlu0 %1070
    %vm1072 = vcmask 777216
    %v1073 = vsel %vm1072, %v1063, %v1065
    %v1074 = vsel %vm1072, %v1065, %v1067
    %v1075 = vsel %vm1072, %v1067, %v1069
    %v1076 = vsel %vm1072, %v1069, %v1071
    %1081 = vst [vmem:[#allocation3 + $0x40] sm:$0xff] %v1073
    %1082 = vst [vmem:[#allocation3 + $0x48] sm:$0xff] %v1074
    %1083 = vst [vmem:[#allocation3 + $0x50] sm:$0xff] %v1075
    %1084 = vst [vmem:[#allocation3 + $0x58] sm:$0xff] %v1076
    %v1085 = vld [vmem:[#allocation2 + $0x10] sm:$0xff]
    %v1086 = vld [vmem:[#allocation2 + $0x18] sm:$0xff]
    %v1087 = vld [vmem:[#allocation2 + $0x20] sm:$0xff]
    %v1088 = vld [vmem:[#allocation2 + $0x28] sm:$0xff]
    %v1089 = vld [vmem:[#allocation2 + $0x30] sm:$0xff]
    %v1090 = vld [vmem:[#allocation7 + $0x180] sm:$0xff]
    %v1091 = vld [vmem:[#allocation7 + $0x188] sm:$0xff]
    %v1092 = vld [vmem:[#allocation7 + $0x190] sm:$0xff]
    %v1093 = vld [vmem:[#allocation7 + $0x198] sm:$0xff]
    %v1098 = vunpack.c.l.b16 %v1090
    %v1099 = vunpack.c.h.b16 %v1090
    %v1100 = vunpack.c.l.b16 %v1091
    %v1101 = vunpack.c.h.b16 %v1091
    %v1102 = vunpack.c.l.b16 %v1092
    %v1103 = vunpack.c.h.b16 %v1092
    %v1104 = vunpack.c.l.b16 %v1093
    %v1105 = vunpack.c.h.b16 %v1093
    %v1106 = vpack.c.b16 %v1102, %v1098
    %v1107 = vpack.c.b16 %v1103, %v1099
    %v1108 = vpack.c.b16 %v1104, %v1100
    %v1109 = vpack.c.b16 %v1105, %v1101
    %1110 = vrot.lane.b32.xlu0 %v1106, 14
    %v1111 = vpop.permute.xlu0 %1110
    %1112 = vrot.lane.b32.xlu0 %v1107, 14
    %v1113 = vpop.permute.xlu0 %1112
    %1114 = vrot.lane.b32.xlu0 %v1108, 14
    %v1115 = vpop.permute.xlu0 %1114
    %1116 = vrot.lane.b32.xlu0 %v1109, 14
    %v1117 = vpop.permute.xlu0 %1116
    %vm1118 = vcmask 113664
    %v1119 = vsel %vm1118, %v1111, %v1113
    %v1120 = vsel %vm1118, %v1113, %v1115
    %v1121 = vsel %vm1118, %v1115, %v1117
    %v1127 = vmul.bf16 %v1085, %v1111
    %v1128 = vmul.bf16 %v1086, %v1119
    %v1129 = vmul.bf16 %v1087, %v1120
    %v1130 = vmul.bf16 %v1088, %v1121
    %v1131 = vmul.bf16 %v1089, %v1117
    %v1132 = vld [vmem:[#allocation7 + $0x1a0] sm:$0xff]
    %v1133 = vld [vmem:[#allocation7 + $0x1a8] sm:$0xff]
    %v1134 = vld [vmem:[#allocation7 + $0x1b0] sm:$0xff]
    %v1135 = vld [vmem:[#allocation7 + $0x1b8] sm:$0xff]
    %v1140 = vunpack.c.l.b16 %v1132
    %v1141 = vunpack.c.h.b16 %v1132
    %v1142 = vunpack.c.l.b16 %v1133
    %v1143 = vunpack.c.h.b16 %v1133
    %v1144 = vunpack.c.l.b16 %v1134
    %v1145 = vunpack.c.h.b16 %v1134
    %v1146 = vunpack.c.l.b16 %v1135
    %v1147 = vunpack.c.h.b16 %v1135
    %v1148 = vpack.c.b16 %v1144, %v1140
    %v1149 = vpack.c.b16 %v1145, %v1141
    %v1150 = vpack.c.b16 %v1146, %v1142
    %v1151 = vpack.c.b16 %v1147, %v1143
    %1152 = vrot.lane.b32.xlu0 %v1148, 16
    %v1153 = vpop.permute.xlu0 %1152
    %1154 = vrot.lane.b32.xlu0 %v1149, 16
    %v1155 = vpop.permute.xlu0 %1154
    %1156 = vrot.lane.b32.xlu0 %v1150, 16
    %v1157 = vpop.permute.xlu0 %1156
    %1158 = vrot.lane.b32.xlu0 %v1151, 16
    %v1159 = vpop.permute.xlu0 %1158
    %v1160 = vsel %vm221, %v1153, %v1155
    %v1161 = vsel %vm221, %v1155, %v1157
    %v1162 = vsel %vm221, %v1157, %v1159
    %v1168 = vmul.bf16 %v1085, %v1153
    %v1169 = vmul.bf16 %v1086, %v1160
    %v1170 = vmul.bf16 %v1087, %v1161
    %v1171 = vmul.bf16 %v1088, %v1162
    %v1172 = vmul.bf16 %v1089, %v1159
    %1178 = vrot.lane.b32.xlu0 %v1168, 126
    %v1179 = vpop.permute.xlu0 %1178
    %1180 = vrot.lane.b32.xlu0 %v1169, 126
    %v1181 = vpop.permute.xlu0 %1180
    %1182 = vrot.lane.b32.xlu0 %v1170, 126
    %v1183 = vpop.permute.xlu0 %1182
    %1184 = vrot.lane.b32.xlu0 %v1171, 126
    %v1185 = vpop.permute.xlu0 %1184
    %1186 = vrot.lane.b32.xlu0 %v1172, 126
    %v1187 = vpop.permute.xlu0 %1186
    %v1188 = vsel %vm393, %v1179, %v1181
    %v1189 = vsel %vm393, %v1181, %v1183
    %v1190 = vsel %vm393, %v1183, %v1185
    %v1191 = vsel %vm393, %v1185, %v1187
    %v1197 = vadd.bf16 %v1127, %v1188
    %v1198 = vadd.bf16 %v1128, %v1189
    %v1199 = vadd.bf16 %v1129, %v1190
    %v1200 = vadd.bf16 %v1130, %v1191
    %v1201 = vadd.bf16 %v1131, %v1187
    %v1202 = vld [vmem:[#allocation7 + $0x1c0] sm:$0xff]
    %v1203 = vld [vmem:[#allocation7 + $0x1c8] sm:$0xff]
    %v1204 = vld [vmem:[#allocation7 + $0x1d0] sm:$0xff]
    %v1205 = vld [vmem:[#allocation7 + $0x1d8] sm:$0xff]
    %v1210 = vunpack.c.l.b16 %v1202
    %v1211 = vunpack.c.h.b16 %v1202
    %v1212 = vunpack.c.l.b16 %v1203
    %v1213 = vunpack.c.h.b16 %v1203
    %v1214 = vunpack.c.l.b16 %v1204
    %v1215 = vunpack.c.h.b16 %v1204
    %v1216 = vunpack.c.l.b16 %v1205
    %v1217 = vunpack.c.h.b16 %v1205
    %v1218 = vpack.c.b16 %v1214, %v1210
    %v1219 = vpack.c.b16 %v1215, %v1211
    %v1220 = vpack.c.b16 %v1216, %v1212
    %v1221 = vpack.c.b16 %v1217, %v1213
    %1222 = vrot.lane.b32.xlu0 %v1218, 18
    %v1223 = vpop.permute.xlu0 %1222
    %1224 = vrot.lane.b32.xlu0 %v1219, 18
    %v1225 = vpop.permute.xlu0 %1224
    %1226 = vrot.lane.b32.xlu0 %v1220, 18
    %v1227 = vpop.permute.xlu0 %1226
    %1228 = vrot.lane.b32.xlu0 %v1221, 18
    %v1229 = vpop.permute.xlu0 %1228
    %vm1230 = vcmask 146432
    %v1231 = vsel %vm1230, %v1223, %v1225
    %v1232 = vsel %vm1230, %v1225, %v1227
    %v1233 = vsel %vm1230, %v1227, %v1229
    %v1239 = vmul.bf16 %v1085, %v1223
    %v1240 = vmul.bf16 %v1086, %v1231
    %v1241 = vmul.bf16 %v1087, %v1232
    %v1242 = vmul.bf16 %v1088, %v1233
    %v1243 = vmul.bf16 %v1089, %v1229
    %1249 = vrot.lane.b32.xlu0 %v1239, 124
    %v1250 = vpop.permute.xlu0 %1249
    %1251 = vrot.lane.b32.xlu0 %v1240, 124
    %v1252 = vpop.permute.xlu0 %1251
    %1253 = vrot.lane.b32.xlu0 %v1241, 124
    %v1254 = vpop.permute.xlu0 %1253
    %1255 = vrot.lane.b32.xlu0 %v1242, 124
    %v1256 = vpop.permute.xlu0 %1255
    %1257 = vrot.lane.b32.xlu0 %v1243, 124
    %v1258 = vpop.permute.xlu0 %1257
    %vm1259 = vcmask 1014784
    %v1260 = vsel %vm1259, %v1250, %v1252
    %v1261 = vsel %vm1259, %v1252, %v1254
    %v1262 = vsel %vm1259, %v1254, %v1256
    %v1263 = vsel %vm1259, %v1256, %v1258
    %v1269 = vadd.bf16 %v1197, %v1260
    %v1270 = vadd.bf16 %v1198, %v1261
    %v1271 = vadd.bf16 %v1199, %v1262
    %v1272 = vadd.bf16 %v1200, %v1263
    %v1273 = vadd.bf16 %v1201, %v1258
    %v1274 = vld [vmem:[#allocation7 + $0x1e0] sm:$0xff]
    %v1275 = vld [vmem:[#allocation7 + $0x1e8] sm:$0xff]
    %v1276 = vld [vmem:[#allocation7 + $0x1f0] sm:$0xff]
    %v1277 = vld [vmem:[#allocation7 + $0x1f8] sm:$0xff]
    %v1282 = vunpack.c.l.b16 %v1274
    %v1283 = vunpack.c.h.b16 %v1274
    %v1284 = vunpack.c.l.b16 %v1275
    %v1285 = vunpack.c.h.b16 %v1275
    %v1286 = vunpack.c.l.b16 %v1276
    %v1287 = vunpack.c.h.b16 %v1276
    %v1288 = vunpack.c.l.b16 %v1277
    %v1289 = vunpack.c.h.b16 %v1277
    %v1290 = vpack.c.b16 %v1286, %v1282
    %v1291 = vpack.c.b16 %v1287, %v1283
    %v1292 = vpack.c.b16 %v1288, %v1284
    %v1293 = vpack.c.b16 %v1289, %v1285
    %1294 = vrot.lane.b32.xlu0 %v1290, 46
    %v1295 = vpop.permute.xlu0 %1294
    %1296 = vrot.lane.b32.xlu0 %v1291, 46
    %v1297 = vpop.permute.xlu0 %1296
    %1298 = vrot.lane.b32.xlu0 %v1292, 46
    %v1299 = vpop.permute.xlu0 %1298
    %1300 = vrot.lane.b32.xlu0 %v1293, 46
    %v1301 = vpop.permute.xlu0 %1300
    %vm1302 = vcmask 375808
    %v1303 = vsel %vm1302, %v1295, %v1297
    %v1304 = vsel %vm1302, %v1297, %v1299
    %v1305 = vsel %vm1302, %v1299, %v1301
    %v1311 = vmul.bf16 %v1085, %v1295
    %v1312 = vmul.bf16 %v1086, %v1303
    %v1313 = vmul.bf16 %v1087, %v1304
    %v1314 = vmul.bf16 %v1088, %v1305
    %v1315 = vmul.bf16 %v1089, %v1301
    %1321 = vrot.lane.b32.xlu0 %v1311, 96
    %v1322 = vpop.permute.xlu0 %1321
    %1323 = vrot.lane.b32.xlu0 %v1312, 96
    %v1324 = vpop.permute.xlu0 %1323
    %1325 = vrot.lane.b32.xlu0 %v1313, 96
    %v1326 = vpop.permute.xlu0 %1325
    %1327 = vrot.lane.b32.xlu0 %v1314, 96
    %v1328 = vpop.permute.xlu0 %1327
    %1329 = vrot.lane.b32.xlu0 %v1315, 96
    %v1330 = vpop.permute.xlu0 %1329
    %vm1331 = vcmask 785408
    %v1332 = vsel %vm1331, %v1322, %v1324
    %v1333 = vsel %vm1331, %v1324, %v1326
    %v1334 = vsel %vm1331, %v1326, %v1328
    %v1335 = vsel %vm1331, %v1328, %v1330
    %v1341 = vadd.bf16 %v1269, %v1332
    %v1342 = vadd.bf16 %v1270, %v1333
    %v1343 = vadd.bf16 %v1271, %v1334
    %v1344 = vadd.bf16 %v1272, %v1335
    %v1345 = vadd.bf16 %v1273, %v1330
    %1351 = vrot.lane.b32.xlu0 %v1341, 114
    %v1352 = vpop.permute.xlu0 %1351
    %1353 = vrot.lane.b32.xlu0 %v1342, 114
    %v1354 = vpop.permute.xlu0 %1353
    %1355 = vrot.lane.b32.xlu0 %v1343, 114
    %v1356 = vpop.permute.xlu0 %1355
    %1357 = vrot.lane.b32.xlu0 %v1344, 114
    %v1358 = vpop.permute.xlu0 %1357
    %1359 = vrot.lane.b32.xlu0 %v1345, 114
    %v1360 = vpop.permute.xlu0 %1359
    %v1361 = vsel %vm1013, %v1352, %v1354
    %v1362 = vsel %vm1013, %v1354, %v1356
    %v1363 = vsel %vm1013, %v1356, %v1358
    %v1364 = vsel %vm1013, %v1358, %v1360
    %1369 = vst [vmem:[#allocation3 + $0x60] sm:$0xff] %v1361
    %1370 = vst [vmem:[#allocation3 + $0x68] sm:$0xff] %v1362
    %1371 = vst [vmem:[#allocation3 + $0x70] sm:$0xff] %v1363
    %1372 = vst [vmem:[#allocation3 + $0x78] sm:$0xff] %v1364
    %v1373 = vld [vmem:[#allocation2 + $0x10] sm:$0xff]
    %v1374 = vld [vmem:[#allocation2 + $0x18] sm:$0xff]
    %v1375 = vld [vmem:[#allocation2 + $0x20] sm:$0xff]
    %v1376 = vld [vmem:[#allocation2 + $0x28] sm:$0xff]
    %v1377 = vld [vmem:[#allocation2 + $0x30] sm:$0xff]
    %v1378 = vld [vmem:[#allocation7 + $0x200] sm:$0xff]
    %v1379 = vld [vmem:[#allocation7 + $0x208] sm:$0xff]
    %v1380 = vld [vmem:[#allocation7 + $0x210] sm:$0xff]
    %v1381 = vld [vmem:[#allocation7 + $0x218] sm:$0xff]
    %v1386 = vunpack.c.l.b16 %v1378
    %v1387 = vunpack.c.h.b16 %v1378
    %v1388 = vunpack.c.l.b16 %v1379
    %v1389 = vunpack.c.h.b16 %v1379
    %v1390 = vunpack.c.l.b16 %v1380
    %v1391 = vunpack.c.h.b16 %v1380
    %v1392 = vunpack.c.l.b16 %v1381
    %v1393 = vunpack.c.h.b16 %v1381
    %v1394 = vpack.c.b16 %v1390, %v1386
    %v1395 = vpack.c.b16 %v1391, %v1387
    %v1396 = vpack.c.b16 %v1392, %v1388
    %v1397 = vpack.c.b16 %v1393, %v1389
    %1398 = vrot.lane.b32.xlu0 %v1394, 48
    %v1399 = vpop.permute.xlu0 %1398
    %1400 = vrot.lane.b32.xlu0 %v1395, 48
    %v1401 = vpop.permute.xlu0 %1400
    %1402 = vrot.lane.b32.xlu0 %v1396, 48
    %v1403 = vpop.permute.xlu0 %1402
    %1404 = vrot.lane.b32.xlu0 %v1397, 48
    %v1405 = vpop.permute.xlu0 %1404
    %vm1406 = vcmask 392192
    %v1407 = vsel %vm1406, %v1399, %v1401
    %v1408 = vsel %vm1406, %v1401, %v1403
    %v1409 = vsel %vm1406, %v1403, %v1405
    %v1415 = vmul.bf16 %v1373, %v1399
    %v1416 = vmul.bf16 %v1374, %v1407
    %v1417 = vmul.bf16 %v1375, %v1408
    %v1418 = vmul.bf16 %v1376, %v1409
    %v1419 = vmul.bf16 %v1377, %v1405
    %v1420 = vld [vmem:[#allocation7 + $0x220] sm:$0xff]
    %v1421 = vld [vmem:[#allocation7 + $0x228] sm:$0xff]
    %v1422 = vld [vmem:[#allocation7 + $0x230] sm:$0xff]
    %v1423 = vld [vmem:[#allocation7 + $0x238] sm:$0xff]
    %v1428 = vunpack.c.l.b16 %v1420
    %v1429 = vunpack.c.h.b16 %v1420
    %v1430 = vunpack.c.l.b16 %v1421
    %v1431 = vunpack.c.h.b16 %v1421
    %v1432 = vunpack.c.l.b16 %v1422
    %v1433 = vunpack.c.h.b16 %v1422
    %v1434 = vunpack.c.l.b16 %v1423
    %v1435 = vunpack.c.h.b16 %v1423
    %v1436 = vpack.c.b16 %v1432, %v1428
    %v1437 = vpack.c.b16 %v1433, %v1429
    %v1438 = vpack.c.b16 %v1434, %v1430
    %v1439 = vpack.c.b16 %v1435, %v1431
    %1440 = vrot.lane.b32.xlu0 %v1436, 50
    %v1441 = vpop.permute.xlu0 %1440
    %1442 = vrot.lane.b32.xlu0 %v1437, 50
    %v1443 = vpop.permute.xlu0 %1442
    %1444 = vrot.lane.b32.xlu0 %v1438, 50
    %v1445 = vpop.permute.xlu0 %1444
    %1446 = vrot.lane.b32.xlu0 %v1439, 50
    %v1447 = vpop.permute.xlu0 %1446
    %vm1448 = vcmask 408576
    %v1449 = vsel %vm1448, %v1441, %v1443
    %v1450 = vsel %vm1448, %v1443, %v1445
    %v1451 = vsel %vm1448, %v1445, %v1447
    %v1457 = vmul.bf16 %v1373, %v1441
    %v1458 = vmul.bf16 %v1374, %v1449
    %v1459 = vmul.bf16 %v1375, %v1450
    %v1460 = vmul.bf16 %v1376, %v1451
    %v1461 = vmul.bf16 %v1377, %v1447
    %1467 = vrot.lane.b32.xlu0 %v1457, 126
    %v1468 = vpop.permute.xlu0 %1467
    %1469 = vrot.lane.b32.xlu0 %v1458, 126
    %v1470 = vpop.permute.xlu0 %1469
    %1471 = vrot.lane.b32.xlu0 %v1459, 126
    %v1472 = vpop.permute.xlu0 %1471
    %1473 = vrot.lane.b32.xlu0 %v1460, 126
    %v1474 = vpop.permute.xlu0 %1473
    %1475 = vrot.lane.b32.xlu0 %v1461, 126
    %v1476 = vpop.permute.xlu0 %1475
    %v1477 = vsel %vm393, %v1468, %v1470
    %v1478 = vsel %vm393, %v1470, %v1472
    %v1479 = vsel %vm393, %v1472, %v1474
    %v1480 = vsel %vm393, %v1474, %v1476
    %v1486 = vadd.bf16 %v1415, %v1477
    %v1487 = vadd.bf16 %v1416, %v1478
    %v1488 = vadd.bf16 %v1417, %v1479
    %v1489 = vadd.bf16 %v1418, %v1480
    %v1490 = vadd.bf16 %v1419, %v1476
    %v1491 = vld [vmem:[#allocation2 + $0x8] sm:$0xff]
    %v1492 = vld [vmem:[#allocation7 + $0x240] sm:$0xff]
    %v1493 = vld [vmem:[#allocation7 + $0x248] sm:$0xff]
    %v1494 = vld [vmem:[#allocation7 + $0x250] sm:$0xff]
    %v1495 = vld [vmem:[#allocation7 + $0x258] sm:$0xff]
    %v1500 = vunpack.c.l.b16 %v1492
    %v1501 = vunpack.c.h.b16 %v1492
    %v1502 = vunpack.c.l.b16 %v1493
    %v1503 = vunpack.c.h.b16 %v1493
    %v1504 = vunpack.c.l.b16 %v1494
    %v1505 = vunpack.c.h.b16 %v1494
    %v1506 = vunpack.c.l.b16 %v1495
    %v1507 = vunpack.c.h.b16 %v1495
    %v1508 = vpack.c.b16 %v1504, %v1500
    %v1509 = vpack.c.b16 %v1505, %v1501
    %v1510 = vpack.c.b16 %v1506, %v1502
    %v1511 = vpack.c.b16 %v1507, %v1503
    %1512 = vrot.lane.b32.xlu0 %v1508, 76
    %v1513 = vpop.permute.xlu0 %1512
    %1514 = vrot.lane.b32.xlu0 %v1509, 76
    %v1515 = vpop.permute.xlu0 %1514
    %1516 = vrot.lane.b32.xlu0 %v1510, 76
    %v1517 = vpop.permute.xlu0 %1516
    %1518 = vrot.lane.b32.xlu0 %v1511, 76
    %v1519 = vpop.permute.xlu0 %1518
    %vm1520 = vcmask 621568
    %v1521 = vsel %vm1520, %v1513, %v1515
    %v1522 = vsel %vm1520, %v1515, %v1517
    %v1523 = vsel %vm1520, %v1517, %v1519
    %v1529 = vmul.bf16 %v1491, %v1513
    %v1530 = vmul.bf16 %v1373, %v1521
    %v1531 = vmul.bf16 %v1374, %v1522
    %v1532 = vmul.bf16 %v1375, %v1523
    %v1533 = vmul.bf16 %v1376, %v1519
    %1539 = vrot.lane.b32.xlu0 %v1529, 100
    %v1540 = vpop.permute.xlu0 %1539
    %1541 = vrot.lane.b32.xlu0 %v1530, 100
    %v1542 = vpop.permute.xlu0 %1541
    %1543 = vrot.lane.b32.xlu0 %v1531, 100
    %v1544 = vpop.permute.xlu0 %1543
    %1545 = vrot.lane.b32.xlu0 %v1532, 100
    %v1546 = vpop.permute.xlu0 %1545
    %1547 = vrot.lane.b32.xlu0 %v1533, 100
    %v1548 = vpop.permute.xlu0 %1547
    %vm1549 = vcmask 818176
    %v1550 = vsel %vm1549, %v1540, %v1542
    %v1551 = vsel %vm1549, %v1542, %v1544
    %v1552 = vsel %vm1549, %v1544, %v1546
    %v1553 = vsel %vm1549, %v1546, %v1548
    %v1559 = vadd.bf16 %v1486, %v1550
    %v1560 = vadd.bf16 %v1487, %v1551
    %v1561 = vadd.bf16 %v1488, %v1552
    %v1562 = vadd.bf16 %v1489, %v1553
    %v1563 = vadd.bf16 %v1490, %v1548
    %v1564 = vld [vmem:[#allocation7 + $0x260] sm:$0xff]
    %v1565 = vld [vmem:[#allocation7 + $0x268] sm:$0xff]
    %v1566 = vld [vmem:[#allocation7 + $0x270] sm:$0xff]
    %v1567 = vld [vmem:[#allocation7 + $0x278] sm:$0xff]
    %v1572 = vunpack.c.l.b16 %v1564
    %v1573 = vunpack.c.h.b16 %v1564
    %v1574 = vunpack.c.l.b16 %v1565
    %v1575 = vunpack.c.h.b16 %v1565
    %v1576 = vunpack.c.l.b16 %v1566
    %v1577 = vunpack.c.h.b16 %v1566
    %v1578 = vunpack.c.l.b16 %v1567
    %v1579 = vunpack.c.h.b16 %v1567
    %v1580 = vpack.c.b16 %v1576, %v1572
    %v1581 = vpack.c.b16 %v1577, %v1573
    %v1582 = vpack.c.b16 %v1578, %v1574
    %v1583 = vpack.c.b16 %v1579, %v1575
    %1584 = vrot.lane.b32.xlu0 %v1580, 80
    %v1585 = vpop.permute.xlu0 %1584
    %1586 = vrot.lane.b32.xlu0 %v1581, 80
    %v1587 = vpop.permute.xlu0 %1586
    %1588 = vrot.lane.b32.xlu0 %v1582, 80
    %v1589 = vpop.permute.xlu0 %1588
    %1590 = vrot.lane.b32.xlu0 %v1583, 80
    %v1591 = vpop.permute.xlu0 %1590
    %vm1592 = vcmask 654336
    %v1593 = vsel %vm1592, %v1585, %v1587
    %v1594 = vsel %vm1592, %v1587, %v1589
    %v1595 = vsel %vm1592, %v1589, %v1591
    %v1601 = vmul.bf16 %v1491, %v1585
    %v1602 = vmul.bf16 %v1373, %v1593
    %v1603 = vmul.bf16 %v1374, %v1594
    %v1604 = vmul.bf16 %v1375, %v1595
    %v1605 = vmul.bf16 %v1376, %v1591
    %1611 = vrot.lane.b32.xlu0 %v1601, 96
    %v1612 = vpop.permute.xlu0 %1611
    %1613 = vrot.lane.b32.xlu0 %v1602, 96
    %v1614 = vpop.permute.xlu0 %1613
    %1615 = vrot.lane.b32.xlu0 %v1603, 96
    %v1616 = vpop.permute.xlu0 %1615
    %1617 = vrot.lane.b32.xlu0 %v1604, 96
    %v1618 = vpop.permute.xlu0 %1617
    %1619 = vrot.lane.b32.xlu0 %v1605, 96
    %v1620 = vpop.permute.xlu0 %1619
    %v1621 = vsel %vm1331, %v1612, %v1614
    %v1622 = vsel %vm1331, %v1614, %v1616
    %v1623 = vsel %vm1331, %v1616, %v1618
    %v1624 = vsel %vm1331, %v1618, %v1620
    %v1630 = vadd.bf16 %v1559, %v1621
    %v1631 = vadd.bf16 %v1560, %v1622
    %v1632 = vadd.bf16 %v1561, %v1623
    %v1633 = vadd.bf16 %v1562, %v1624
    %v1634 = vadd.bf16 %v1563, %v1620
    %1640 = vrot.lane.b32.xlu0 %v1630, 80
    %v1641 = vpop.permute.xlu0 %1640
    %1642 = vrot.lane.b32.xlu0 %v1631, 80
    %v1643 = vpop.permute.xlu0 %1642
    %1644 = vrot.lane.b32.xlu0 %v1632, 80
    %v1645 = vpop.permute.xlu0 %1644
    %1646 = vrot.lane.b32.xlu0 %v1633, 80
    %v1647 = vpop.permute.xlu0 %1646
    %1648 = vrot.lane.b32.xlu0 %v1634, 80
    %v1649 = vpop.permute.xlu0 %1648
    %v1650 = vsel %vm1592, %v1641, %v1643
    %v1651 = vsel %vm1592, %v1643, %v1645
    %v1652 = vsel %vm1592, %v1645, %v1647
    %v1653 = vsel %vm1592, %v1647, %v1649
    %1658 = vst [vmem:[#allocation3 + $0x80] sm:$0xff] %v1650
    %1659 = vst [vmem:[#allocation3 + $0x88] sm:$0xff] %v1651
    %1660 = vst [vmem:[#allocation3 + $0x90] sm:$0xff] %v1652
    %1661 = vst [vmem:[#allocation3 + $0x98] sm:$0xff] %v1653
    %v1662 = vld [vmem:[#allocation2 + $0x8] sm:$0xff]
    %v1663 = vld [vmem:[#allocation2 + $0x10] sm:$0xff]
    %v1664 = vld [vmem:[#allocation2 + $0x18] sm:$0xff]
    %v1665 = vld [vmem:[#allocation2 + $0x20] sm:$0xff]
    %v1666 = vld [vmem:[#allocation2 + $0x28] sm:$0xff]
    %v1667 = vld [vmem:[#allocation7 + $0x280] sm:$0xff]
    %v1668 = vld [vmem:[#allocation7 + $0x288] sm:$0xff]
    %v1669 = vld [vmem:[#allocation7 + $0x290] sm:$0xff]
    %v1670 = vld [vmem:[#allocation7 + $0x298] sm:$0xff]
    %v1675 = vunpack.c.l.b16 %v1667
    %v1676 = vunpack.c.h.b16 %v1667
    %v1677 = vunpack.c.l.b16 %v1668
    %v1678 = vunpack.c.h.b16 %v1668
    %v1679 = vunpack.c.l.b16 %v1669
    %v1680 = vunpack.c.h.b16 %v1669
    %v1681 = vunpack.c.l.b16 %v1670
    %v1682 = vunpack.c.h.b16 %v1670
    %v1683 = vpack.c.b16 %v1679, %v1675
    %v1684 = vpack.c.b16 %v1680, %v1676
    %v1685 = vpack.c.b16 %v1681, %v1677
    %v1686 = vpack.c.b16 %v1682, %v1678
    %1687 = vrot.lane.b32.xlu0 %v1683, 84
    %v1688 = vpop.permute.xlu0 %1687
    %1689 = vrot.lane.b32.xlu0 %v1684, 84
    %v1690 = vpop.permute.xlu0 %1689
    %1691 = vrot.lane.b32.xlu0 %v1685, 84
    %v1692 = vpop.permute.xlu0 %1691
    %1693 = vrot.lane.b32.xlu0 %v1686, 84
    %v1694 = vpop.permute.xlu0 %1693
    %vm1695 = vcmask 687104
    %v1696 = vsel %vm1695, %v1688, %v1690
    %v1697 = vsel %vm1695, %v1690, %v1692
    %v1698 = vsel %vm1695, %v1692, %v1694
    %v1704 = vmul.bf16 %v1662, %v1688
    %v1705 = vmul.bf16 %v1663, %v1696
    %v1706 = vmul.bf16 %v1664, %v1697
    %v1707 = vmul.bf16 %v1665, %v1698
    %v1708 = vmul.bf16 %v1666, %v1694
    %v1709 = vld [vmem:[#allocation2 + $0x30] sm:$0xff]
    %v1710 = vld [vmem:[#allocation7 + $0x2a0] sm:$0xff]
    %v1711 = vld [vmem:[#allocation7 + $0x2a8] sm:$0xff]
    %v1712 = vld [vmem:[#allocation7 + $0x2b0] sm:$0xff]
    %v1713 = vld [vmem:[#allocation7 + $0x2b8] sm:$0xff]
    %v1718 = vunpack.c.l.b16 %v1710
    %v1719 = vunpack.c.h.b16 %v1710
    %v1720 = vunpack.c.l.b16 %v1711
    %v1721 = vunpack.c.h.b16 %v1711
    %v1722 = vunpack.c.l.b16 %v1712
    %v1723 = vunpack.c.h.b16 %v1712
    %v1724 = vunpack.c.l.b16 %v1713
    %v1725 = vunpack.c.h.b16 %v1713
    %v1726 = vpack.c.b16 %v1722, %v1718
    %v1727 = vpack.c.b16 %v1723, %v1719
    %v1728 = vpack.c.b16 %v1724, %v1720
    %v1729 = vpack.c.b16 %v1725, %v1721
    %1730 = vrot.lane.b32.xlu0 %v1726, 12
    %v1731 = vpop.permute.xlu0 %1730
    %1732 = vrot.lane.b32.xlu0 %v1727, 12
    %v1733 = vpop.permute.xlu0 %1732
    %1734 = vrot.lane.b32.xlu0 %v1728, 12
    %v1735 = vpop.permute.xlu0 %1734
    %1736 = vrot.lane.b32.xlu0 %v1729, 12
    %v1737 = vpop.permute.xlu0 %1736
    %vm1738 = vcmask 97280
    %v1739 = vsel %vm1738, %v1731, %v1733
    %v1740 = vsel %vm1738, %v1733, %v1735
    %v1741 = vsel %vm1738, %v1735, %v1737
    %v1747 = vmul.bf16 %v1663, %v1731
    %v1748 = vmul.bf16 %v1664, %v1739
    %v1749 = vmul.bf16 %v1665, %v1740
    %v1750 = vmul.bf16 %v1666, %v1741
    %v1751 = vmul.bf16 %v1709, %v1737
    %1757 = vrot.lane.b32.xlu0 %v1747, 72
    %v1758 = vpop.permute.xlu0 %1757
    %1759 = vrot.lane.b32.xlu0 %v1748, 72
    %v1760 = vpop.permute.xlu0 %1759
    %1761 = vrot.lane.b32.xlu0 %v1749, 72
    %v1762 = vpop.permute.xlu0 %1761
    %1763 = vrot.lane.b32.xlu0 %v1750, 72
    %v1764 = vpop.permute.xlu0 %1763
    %1765 = vrot.lane.b32.xlu0 %v1751, 72
    %v1766 = vpop.permute.xlu0 %1765
    %vm1767 = vcmask 588800
    %v1768 = vsel %vm1767, %v1758, %v1760
    %v1769 = vsel %vm1767, %v1760, %v1762
    %v1770 = vsel %vm1767, %v1762, %v1764
    %v1771 = vsel %vm1767, %v1764, %v1766
    %v1777 = vadd.bf16 %v1704, %v1758
    %v1778 = vadd.bf16 %v1705, %v1768
    %v1779 = vadd.bf16 %v1706, %v1769
    %v1780 = vadd.bf16 %v1707, %v1770
    %v1781 = vadd.bf16 %v1708, %v1771
    %v1782 = vld [vmem:[#allocation7 + $0x2c0] sm:$0xff]
    %v1783 = vld [vmem:[#allocation7 + $0x2c8] sm:$0xff]
    %v1784 = vld [vmem:[#allocation7 + $0x2d0] sm:$0xff]
    %v1785 = vld [vmem:[#allocation7 + $0x2d8] sm:$0xff]
    %v1790 = vunpack.c.l.b16 %v1782
    %v1791 = vunpack.c.h.b16 %v1782
    %v1792 = vunpack.c.l.b16 %v1783
    %v1793 = vunpack.c.h.b16 %v1783
    %v1794 = vunpack.c.l.b16 %v1784
    %v1795 = vunpack.c.h.b16 %v1784
    %v1796 = vunpack.c.l.b16 %v1785
    %v1797 = vunpack.c.h.b16 %v1785
    %v1798 = vpack.c.b16 %v1794, %v1790
    %v1799 = vpack.c.b16 %v1795, %v1791
    %v1800 = vpack.c.b16 %v1796, %v1792
    %v1801 = vpack.c.b16 %v1797, %v1793
    %1802 = vrot.lane.b32.xlu0 %v1798, 16
    %v1803 = vpop.permute.xlu0 %1802
    %1804 = vrot.lane.b32.xlu0 %v1799, 16
    %v1805 = vpop.permute.xlu0 %1804
    %1806 = vrot.lane.b32.xlu0 %v1800, 16
    %v1807 = vpop.permute.xlu0 %1806
    %1808 = vrot.lane.b32.xlu0 %v1801, 16
    %v1809 = vpop.permute.xlu0 %1808
    %v1810 = vsel %vm221, %v1803, %v1805
    %v1811 = vsel %vm221, %v1805, %v1807
    %v1812 = vsel %vm221, %v1807, %v1809
    %v1818 = vmul.bf16 %v1663, %v1803
    %v1819 = vmul.bf16 %v1664, %v1810
    %v1820 = vmul.bf16 %v1665, %v1811
    %v1821 = vmul.bf16 %v1666, %v1812
    %v1822 = vmul.bf16 %v1709, %v1809
    %1828 = vrot.lane.b32.xlu0 %v1818, 68
    %v1829 = vpop.permute.xlu0 %1828
    %1830 = vrot.lane.b32.xlu0 %v1819, 68
    %v1831 = vpop.permute.xlu0 %1830
    %1832 = vrot.lane.b32.xlu0 %v1820, 68
    %v1833 = vpop.permute.xlu0 %1832
    %1834 = vrot.lane.b32.xlu0 %v1821, 68
    %v1835 = vpop.permute.xlu0 %1834
    %1836 = vrot.lane.b32.xlu0 %v1822, 68
    %v1837 = vpop.permute.xlu0 %1836
    %vm1838 = vcmask 556032
    %v1839 = vsel %vm1838, %v1829, %v1831
    %v1840 = vsel %vm1838, %v1831, %v1833
    %v1841 = vsel %vm1838, %v1833, %v1835
    %v1842 = vsel %vm1838, %v1835, %v1837
    %v1848 = vadd.bf16 %v1777, %v1829
    %v1849 = vadd.bf16 %v1778, %v1839
    %v1850 = vadd.bf16 %v1779, %v1840
    %v1851 = vadd.bf16 %v1780, %v1841
    %v1852 = vadd.bf16 %v1781, %v1842
    %v1853 = vld [vmem:[#allocation7 + $0x2e0] sm:$0xff]
    %v1854 = vld [vmem:[#allocation7 + $0x2e8] sm:$0xff]
    %v1855 = vld [vmem:[#allocation7 + $0x2f0] sm:$0xff]
    %v1856 = vld [vmem:[#allocation7 + $0x2f8] sm:$0xff]
    %v1861 = vunpack.c.l.b16 %v1853
    %v1862 = vunpack.c.h.b16 %v1853
    %v1863 = vunpack.c.l.b16 %v1854
    %v1864 = vunpack.c.h.b16 %v1854
    %v1865 = vunpack.c.l.b16 %v1855
    %v1866 = vunpack.c.h.b16 %v1855
    %v1867 = vunpack.c.l.b16 %v1856
    %v1868 = vunpack.c.h.b16 %v1856
    %v1869 = vpack.c.b16 %v1865, %v1861
    %v1870 = vpack.c.b16 %v1866, %v1862
    %v1871 = vpack.c.b16 %v1867, %v1863
    %v1872 = vpack.c.b16 %v1868, %v1864
    %1873 = vrot.lane.b32.xlu0 %v1869, 20
    %v1874 = vpop.permute.xlu0 %1873
    %1875 = vrot.lane.b32.xlu0 %v1870, 20
    %v1876 = vpop.permute.xlu0 %1875
    %1877 = vrot.lane.b32.xlu0 %v1871, 20
    %v1878 = vpop.permute.xlu0 %1877
    %1879 = vrot.lane.b32.xlu0 %v1872, 20
    %v1880 = vpop.permute.xlu0 %1879
    %vm1881 = vcmask 162816
    %v1882 = vsel %vm1881, %v1874, %v1876
    %v1883 = vsel %vm1881, %v1876, %v1878
    %v1884 = vsel %vm1881, %v1878, %v1880
    %v1890 = vmul.bf16 %v1663, %v1874
    %v1891 = vmul.bf16 %v1664, %v1882
    %v1892 = vmul.bf16 %v1665, %v1883
    %v1893 = vmul.bf16 %v1666, %v1884
    %v1894 = vmul.bf16 %v1709, %v1880
    %1900 = vrot.lane.b32.xlu0 %v1890, 64
    %v1901 = vpop.permute.xlu0 %1900
    %1902 = vrot.lane.b32.xlu0 %v1891, 64
    %v1903 = vpop.permute.xlu0 %1902
    %1904 = vrot.lane.b32.xlu0 %v1892, 64
    %v1905 = vpop.permute.xlu0 %1904
    %1906 = vrot.lane.b32.xlu0 %v1893, 64
    %v1907 = vpop.permute.xlu0 %1906
    %1908 = vrot.lane.b32.xlu0 %v1894, 64
    %v1909 = vpop.permute.xlu0 %1908
    %vm1910 = vcmask 523264
    %v1911 = vsel %vm1910, %v1901, %v1903
    %v1912 = vsel %vm1910, %v1903, %v1905
    %v1913 = vsel %vm1910, %v1905, %v1907
    %v1914 = vsel %vm1910, %v1907, %v1909
    %v1920 = vadd.bf16 %v1848, %v1901
    %v1921 = vadd.bf16 %v1849, %v1911
    %v1922 = vadd.bf16 %v1850, %v1912
    %v1923 = vadd.bf16 %v1851, %v1913
    %v1924 = vadd.bf16 %v1852, %v1914
    %1930 = vrot.lane.b32.xlu0 %v1920, 44
    %v1931 = vpop.permute.xlu0 %1930
    %1932 = vrot.lane.b32.xlu0 %v1921, 44
    %v1933 = vpop.permute.xlu0 %1932
    %1934 = vrot.lane.b32.xlu0 %v1922, 44
    %v1935 = vpop.permute.xlu0 %1934
    %1936 = vrot.lane.b32.xlu0 %v1923, 44
    %v1937 = vpop.permute.xlu0 %1936
    %1938 = vrot.lane.b32.xlu0 %v1924, 44
    %v1939 = vpop.permute.xlu0 %1938
    %vm1940 = vcmask 359424
    %v1941 = vsel %vm1940, %v1931, %v1933
    %v1942 = vsel %vm1940, %v1933, %v1935
    %v1943 = vsel %vm1940, %v1935, %v1937
    %v1944 = vsel %vm1940, %v1937, %v1939
    %1949 = vst [vmem:[#allocation3 + $0xa0] sm:$0xff] %v1941
    %1950 = vst [vmem:[#allocation3 + $0xa8] sm:$0xff] %v1942
    %1951 = vst [vmem:[#allocation3 + $0xb0] sm:$0xff] %v1943
    %1952 = vst [vmem:[#allocation3 + $0xb8] sm:$0xff] %v1944
    %v1953 = vld [vmem:[#allocation2 + $0x10] sm:$0xff]
    %v1954 = vld [vmem:[#allocation2 + $0x18] sm:$0xff]
    %v1955 = vld [vmem:[#allocation2 + $0x20] sm:$0xff]
    %v1956 = vld [vmem:[#allocation2 + $0x28] sm:$0xff]
    %v1957 = vld [vmem:[#allocation2 + $0x30] sm:$0xff]
    %v1958 = vld [vmem:[#allocation7 + $0x300] sm:$0xff]
    %v1959 = vld [vmem:[#allocation7 + $0x308] sm:$0xff]
    %v1960 = vld [vmem:[#allocation7 + $0x310] sm:$0xff]
    %v1961 = vld [vmem:[#allocation7 + $0x318] sm:$0xff]
    %v1966 = vunpack.c.l.b16 %v1958
    %v1967 = vunpack.c.h.b16 %v1958
    %v1968 = vunpack.c.l.b16 %v1959
    %v1969 = vunpack.c.h.b16 %v1959
    %v1970 = vunpack.c.l.b16 %v1960
    %v1971 = vunpack.c.h.b16 %v1960
    %v1972 = vunpack.c.l.b16 %v1961
    %v1973 = vunpack.c.h.b16 %v1961
    %v1974 = vpack.c.b16 %v1970, %v1966
    %v1975 = vpack.c.b16 %v1971, %v1967
    %v1976 = vpack.c.b16 %v1972, %v1968
    %v1977 = vpack.c.b16 %v1973, %v1969
    %1978 = vrot.lane.b32.xlu0 %v1974, 76
    %v1979 = vpop.permute.xlu0 %1978
    %1980 = vrot.lane.b32.xlu0 %v1975, 76
    %v1981 = vpop.permute.xlu0 %1980
    %1982 = vrot.lane.b32.xlu0 %v1976, 76
    %v1983 = vpop.permute.xlu0 %1982
    %1984 = vrot.lane.b32.xlu0 %v1977, 76
    %v1985 = vpop.permute.xlu0 %1984
    %v1986 = vsel %vm1520, %v1979, %v1981
    %v1987 = vsel %vm1520, %v1981, %v1983
    %v1988 = vsel %vm1520, %v1983, %v1985
    %v1994 = vmul.bf16 %v1953, %v1979
    %v1995 = vmul.bf16 %v1954, %v1986
    %v1996 = vmul.bf16 %v1955, %v1987
    %v1997 = vmul.bf16 %v1956, %v1988
    %v1998 = vmul.bf16 %v1957, %v1985
    %v1999 = vld [vmem:[#allocation7 + $0x320] sm:$0xff]
    %v2000 = vld [vmem:[#allocation7 + $0x328] sm:$0xff]
    %v2001 = vld [vmem:[#allocation7 + $0x330] sm:$0xff]
    %v2002 = vld [vmem:[#allocation7 + $0x338] sm:$0xff]
    %v2007 = vunpack.c.l.b16 %v1999
    %v2008 = vunpack.c.h.b16 %v1999
    %v2009 = vunpack.c.l.b16 %v2000
    %v2010 = vunpack.c.h.b16 %v2000
    %v2011 = vunpack.c.l.b16 %v2001
    %v2012 = vunpack.c.h.b16 %v2001
    %v2013 = vunpack.c.l.b16 %v2002
    %v2014 = vunpack.c.h.b16 %v2002
    %v2015 = vpack.c.b16 %v2011, %v2007
    %v2016 = vpack.c.b16 %v2012, %v2008
    %v2017 = vpack.c.b16 %v2013, %v2009
    %v2018 = vpack.c.b16 %v2014, %v2010
    %2019 = vrot.lane.b32.xlu0 %v2015, 80
    %v2020 = vpop.permute.xlu0 %2019
    %2021 = vrot.lane.b32.xlu0 %v2016, 80
    %v2022 = vpop.permute.xlu0 %2021
    %2023 = vrot.lane.b32.xlu0 %v2017, 80
    %v2024 = vpop.permute.xlu0 %2023
    %2025 = vrot.lane.b32.xlu0 %v2018, 80
    %v2026 = vpop.permute.xlu0 %2025
    %v2027 = vsel %vm1592, %v2020, %v2022
    %v2028 = vsel %vm1592, %v2022, %v2024
    %v2029 = vsel %vm1592, %v2024, %v2026
    %v2035 = vmul.bf16 %v1953, %v2020
    %v2036 = vmul.bf16 %v1954, %v2027
    %v2037 = vmul.bf16 %v1955, %v2028
    %v2038 = vmul.bf16 %v1956, %v2029
    %v2039 = vmul.bf16 %v1957, %v2026
    %2045 = vrot.lane.b32.xlu0 %v2035, 124
    %v2046 = vpop.permute.xlu0 %2045
    %2047 = vrot.lane.b32.xlu0 %v2036, 124
    %v2048 = vpop.permute.xlu0 %2047
    %2049 = vrot.lane.b32.xlu0 %v2037, 124
    %v2050 = vpop.permute.xlu0 %2049
    %2051 = vrot.lane.b32.xlu0 %v2038, 124
    %v2052 = vpop.permute.xlu0 %2051
    %2053 = vrot.lane.b32.xlu0 %v2039, 124
    %v2054 = vpop.permute.xlu0 %2053
    %v2055 = vsel %vm1259, %v2046, %v2048
    %v2056 = vsel %vm1259, %v2048, %v2050
    %v2057 = vsel %vm1259, %v2050, %v2052
    %v2058 = vsel %vm1259, %v2052, %v2054
    %v2064 = vadd.bf16 %v1994, %v2055
    %v2065 = vadd.bf16 %v1995, %v2056
    %v2066 = vadd.bf16 %v1996, %v2057
    %v2067 = vadd.bf16 %v1997, %v2058
    %v2068 = vadd.bf16 %v1998, %v2054
    %v2069 = vld [vmem:[#allocation7 + $0x340] sm:$0xff]
    %v2070 = vld [vmem:[#allocation7 + $0x348] sm:$0xff]
    %v2071 = vld [vmem:[#allocation7 + $0x350] sm:$0xff]
    %v2072 = vld [vmem:[#allocation7 + $0x358] sm:$0xff]
    %v2077 = vunpack.c.l.b16 %v2069
    %v2078 = vunpack.c.h.b16 %v2069
    %v2079 = vunpack.c.l.b16 %v2070
    %v2080 = vunpack.c.h.b16 %v2070
    %v2081 = vunpack.c.l.b16 %v2071
    %v2082 = vunpack.c.h.b16 %v2071
    %v2083 = vunpack.c.l.b16 %v2072
    %v2084 = vunpack.c.h.b16 %v2072
    %v2085 = vpack.c.b16 %v2081, %v2077
    %v2086 = vpack.c.b16 %v2082, %v2078
    %v2087 = vpack.c.b16 %v2083, %v2079
    %v2088 = vpack.c.b16 %v2084, %v2080
    %2089 = vrot.lane.b32.xlu0 %v2085, 84
    %v2090 = vpop.permute.xlu0 %2089
    %2091 = vrot.lane.b32.xlu0 %v2086, 84
    %v2092 = vpop.permute.xlu0 %2091
    %2093 = vrot.lane.b32.xlu0 %v2087, 84
    %v2094 = vpop.permute.xlu0 %2093
    %2095 = vrot.lane.b32.xlu0 %v2088, 84
    %v2096 = vpop.permute.xlu0 %2095
    %v2097 = vsel %vm1695, %v2090, %v2092
    %v2098 = vsel %vm1695, %v2092, %v2094
    %v2099 = vsel %vm1695, %v2094, %v2096
    %v2105 = vmul.bf16 %v1953, %v2090
    %v2106 = vmul.bf16 %v1954, %v2097
    %v2107 = vmul.bf16 %v1955, %v2098
    %v2108 = vmul.bf16 %v1956, %v2099
    %v2109 = vmul.bf16 %v1957, %v2096
    %2115 = vrot.lane.b32.xlu0 %v2105, 120
    %v2116 = vpop.permute.xlu0 %2115
    %2117 = vrot.lane.b32.xlu0 %v2106, 120
    %v2118 = vpop.permute.xlu0 %2117
    %2119 = vrot.lane.b32.xlu0 %v2107, 120
    %v2120 = vpop.permute.xlu0 %2119
    %2121 = vrot.lane.b32.xlu0 %v2108, 120
    %v2122 = vpop.permute.xlu0 %2121
    %2123 = vrot.lane.b32.xlu0 %v2109, 120
    %v2124 = vpop.permute.xlu0 %2123
    %vm2125 = vcmask 982016
    %v2126 = vsel %vm2125, %v2116, %v2118
    %v2127 = vsel %vm2125, %v2118, %v2120
    %v2128 = vsel %vm2125, %v2120, %v2122
    %v2129 = vsel %vm2125, %v2122, %v2124
    %v2135 = vadd.bf16 %v2064, %v2126
    %v2136 = vadd.bf16 %v2065, %v2127
    %v2137 = vadd.bf16 %v2066, %v2128
    %v2138 = vadd.bf16 %v2067, %v2129
    %v2139 = vadd.bf16 %v2068, %v2124
    %v2140 = vld [vmem:[#allocation2 + $0x8] sm:$0xff]
    %v2141 = vld [vmem:[#allocation7 + $0x360] sm:$0xff]
    %v2142 = vld [vmem:[#allocation7 + $0x368] sm:$0xff]
    %v2143 = vld [vmem:[#allocation7 + $0x370] sm:$0xff]
    %v2144 = vld [vmem:[#allocation7 + $0x378] sm:$0xff]
    %v2149 = vunpack.c.l.b16 %v2141
    %v2150 = vunpack.c.h.b16 %v2141
    %v2151 = vunpack.c.l.b16 %v2142
    %v2152 = vunpack.c.h.b16 %v2142
    %v2153 = vunpack.c.l.b16 %v2143
    %v2154 = vunpack.c.h.b16 %v2143
    %v2155 = vunpack.c.l.b16 %v2144
    %v2156 = vunpack.c.h.b16 %v2144
    %v2157 = vpack.c.b16 %v2153, %v2149
    %v2158 = vpack.c.b16 %v2154, %v2150
    %v2159 = vpack.c.b16 %v2155, %v2151
    %v2160 = vpack.c.b16 %v2156, %v2152
    %2161 = vrot.lane.b32.xlu0 %v2157, 8
    %v2162 = vpop.permute.xlu0 %2161
    %2163 = vrot.lane.b32.xlu0 %v2158, 8
    %v2164 = vpop.permute.xlu0 %2163
    %2165 = vrot.lane.b32.xlu0 %v2159, 8
    %v2166 = vpop.permute.xlu0 %2165
    %2167 = vrot.lane.b32.xlu0 %v2160, 8
    %v2168 = vpop.permute.xlu0 %2167
    %vm2169 = vcmask 64512
    %v2170 = vsel %vm2169, %v2162, %v2164
    %v2171 = vsel %vm2169, %v2164, %v2166
    %v2172 = vsel %vm2169, %v2166, %v2168
    %v2178 = vmul.bf16 %v2140, %v2162
    %v2179 = vmul.bf16 %v1953, %v2170
    %v2180 = vmul.bf16 %v1954, %v2171
    %v2181 = vmul.bf16 %v1955, %v2172
    %v2182 = vmul.bf16 %v1956, %v2168
    %2188 = vrot.lane.b32.xlu0 %v2178, 68
    %v2189 = vpop.permute.xlu0 %2188
    %2190 = vrot.lane.b32.xlu0 %v2179, 68
    %v2191 = vpop.permute.xlu0 %2190
    %2192 = vrot.lane.b32.xlu0 %v2180, 68
    %v2193 = vpop.permute.xlu0 %2192
    %2194 = vrot.lane.b32.xlu0 %v2181, 68
    %v2195 = vpop.permute.xlu0 %2194
    %2196 = vrot.lane.b32.xlu0 %v2182, 68
    %v2197 = vpop.permute.xlu0 %2196
    %v2198 = vsel %vm1838, %v2189, %v2191
    %v2199 = vsel %vm1838, %v2191, %v2193
    %v2200 = vsel %vm1838, %v2193, %v2195
    %v2201 = vsel %vm1838, %v2195, %v2197
    %v2207 = vadd.bf16 %v2135, %v2189
    %v2208 = vadd.bf16 %v2136, %v2198
    %v2209 = vadd.bf16 %v2137, %v2199
    %v2210 = vadd.bf16 %v2138, %v2200
    %v2211 = vadd.bf16 %v2139, %v2201
    %2217 = vrot.lane.b32.xlu0 %v2207, 52
    %v2218 = vpop.permute.xlu0 %2217
    %2219 = vrot.lane.b32.xlu0 %v2208, 52
    %v2220 = vpop.permute.xlu0 %2219
    %2221 = vrot.lane.b32.xlu0 %v2209, 52
    %v2222 = vpop.permute.xlu0 %2221
    %2223 = vrot.lane.b32.xlu0 %v2210, 52
    %v2224 = vpop.permute.xlu0 %2223
    %2225 = vrot.lane.b32.xlu0 %v2211, 52
    %v2226 = vpop.permute.xlu0 %2225
    %vm2227 = vcmask 424960
    %v2228 = vsel %vm2227, %v2218, %v2220
    %v2229 = vsel %vm2227, %v2220, %v2222
    %v2230 = vsel %vm2227, %v2222, %v2224
    %v2231 = vsel %vm2227, %v2224, %v2226
    %2236 = vst [vmem:[#allocation3 + $0xc0] sm:$0xff] %v2228
    %2237 = vst [vmem:[#allocation3 + $0xc8] sm:$0xff] %v2229
    %2238 = vst [vmem:[#allocation3 + $0xd0] sm:$0xff] %v2230
    %2239 = vst [vmem:[#allocation3 + $0xd8] sm:$0xff] %v2231
    %v2240 = vld [vmem:[#allocation2 + $0x8] sm:$0xff]
    %v2241 = vld [vmem:[#allocation2 + $0x10] sm:$0xff]
    %v2242 = vld [vmem:[#allocation2 + $0x18] sm:$0xff]
    %v2243 = vld [vmem:[#allocation2 + $0x20] sm:$0xff]
    %v2244 = vld [vmem:[#allocation2 + $0x28] sm:$0xff]
    %v2245 = vld [vmem:[#allocation7 + $0x380] sm:$0xff]
    %v2246 = vld [vmem:[#allocation7 + $0x388] sm:$0xff]
    %v2247 = vld [vmem:[#allocation7 + $0x390] sm:$0xff]
    %v2248 = vld [vmem:[#allocation7 + $0x398] sm:$0xff]
    %v2253 = vunpack.c.l.b16 %v2245
    %v2254 = vunpack.c.h.b16 %v2245
    %v2255 = vunpack.c.l.b16 %v2246
    %v2256 = vunpack.c.h.b16 %v2246
    %v2257 = vunpack.c.l.b16 %v2247
    %v2258 = vunpack.c.h.b16 %v2247
    %v2259 = vunpack.c.l.b16 %v2248
    %v2260 = vunpack.c.h.b16 %v2248
    %v2261 = vpack.c.b16 %v2257, %v2253
    %v2262 = vpack.c.b16 %v2258, %v2254
    %v2263 = vpack.c.b16 %v2259, %v2255
    %v2264 = vpack.c.b16 %v2260, %v2256
    %2265 = vrot.lane.b32.xlu0 %v2261, 16
    %v2266 = vpop.permute.xlu0 %2265
    %2267 = vrot.lane.b32.xlu0 %v2262, 16
    %v2268 = vpop.permute.xlu0 %2267
    %2269 = vrot.lane.b32.xlu0 %v2263, 16
    %v2270 = vpop.permute.xlu0 %2269
    %2271 = vrot.lane.b32.xlu0 %v2264, 16
    %v2272 = vpop.permute.xlu0 %2271
    %v2273 = vsel %vm221, %v2266, %v2268
    %v2274 = vsel %vm221, %v2268, %v2270
    %v2275 = vsel %vm221, %v2270, %v2272
    %v2281 = vmul.bf16 %v2240, %v2266
    %v2282 = vmul.bf16 %v2241, %v2273
    %v2283 = vmul.bf16 %v2242, %v2274
    %v2284 = vmul.bf16 %v2243, %v2275
    %v2285 = vmul.bf16 %v2244, %v2272
    %v2286 = vld [vmem:[#allocation7 + $0x3a0] sm:$0xff]
    %v2287 = vld [vmem:[#allocation7 + $0x3a8] sm:$0xff]
    %v2288 = vld [vmem:[#allocation7 + $0x3b0] sm:$0xff]
    %v2289 = vld [vmem:[#allocation7 + $0x3b8] sm:$0xff]
    %v2294 = vunpack.c.l.b16 %v2286
    %v2295 = vunpack.c.h.b16 %v2286
    %v2296 = vunpack.c.l.b16 %v2287
    %v2297 = vunpack.c.h.b16 %v2287
    %v2298 = vunpack.c.l.b16 %v2288
    %v2299 = vunpack.c.h.b16 %v2288
    %v2300 = vunpack.c.l.b16 %v2289
    %v2301 = vunpack.c.h.b16 %v2289
    %v2302 = vpack.c.b16 %v2298, %v2294
    %v2303 = vpack.c.b16 %v2299, %v2295
    %v2304 = vpack.c.b16 %v2300, %v2296
    %v2305 = vpack.c.b16 %v2301, %v2297
    %2306 = vrot.lane.b32.xlu0 %v2302, 24
    %v2307 = vpop.permute.xlu0 %2306
    %2308 = vrot.lane.b32.xlu0 %v2303, 24
    %v2309 = vpop.permute.xlu0 %2308
    %2310 = vrot.lane.b32.xlu0 %v2304, 24
    %v2311 = vpop.permute.xlu0 %2310
    %2312 = vrot.lane.b32.xlu0 %v2305, 24
    %v2313 = vpop.permute.xlu0 %2312
    %vm2314 = vcmask 195584
    %v2315 = vsel %vm2314, %v2307, %v2309
    %v2316 = vsel %vm2314, %v2309, %v2311
    %v2317 = vsel %vm2314, %v2311, %v2313
    %v2323 = vmul.bf16 %v2240, %v2307
    %v2324 = vmul.bf16 %v2241, %v2315
    %v2325 = vmul.bf16 %v2242, %v2316
    %v2326 = vmul.bf16 %v2243, %v2317
    %v2327 = vmul.bf16 %v2244, %v2313
    %2333 = vrot.lane.b32.xlu0 %v2323, 120
    %v2334 = vpop.permute.xlu0 %2333
    %2335 = vrot.lane.b32.xlu0 %v2324, 120
    %v2336 = vpop.permute.xlu0 %2335
    %2337 = vrot.lane.b32.xlu0 %v2325, 120
    %v2338 = vpop.permute.xlu0 %2337
    %2339 = vrot.lane.b32.xlu0 %v2326, 120
    %v2340 = vpop.permute.xlu0 %2339
    %2341 = vrot.lane.b32.xlu0 %v2327, 120
    %v2342 = vpop.permute.xlu0 %2341
    %v2343 = vsel %vm2125, %v2334, %v2336
    %v2344 = vsel %vm2125, %v2336, %v2338
    %v2345 = vsel %vm2125, %v2338, %v2340
    %v2346 = vsel %vm2125, %v2340, %v2342
    %v2352 = vadd.bf16 %v2281, %v2343
    %v2353 = vadd.bf16 %v2282, %v2344
    %v2354 = vadd.bf16 %v2283, %v2345
    %v2355 = vadd.bf16 %v2284, %v2346
    %v2356 = vadd.bf16 %v2285, %v2342
    %v2357 = vld [vmem:[#allocation2 + $0x30] sm:$0xff]
    %v2358 = vld [vmem:[#allocation7 + $0x3c0] sm:$0xff]
    %v2359 = vld [vmem:[#allocation7 + $0x3c8] sm:$0xff]
    %v2360 = vld [vmem:[#allocation7 + $0x3d0] sm:$0xff]
    %v2361 = vld [vmem:[#allocation7 + $0x3d8] sm:$0xff]
    %v2366 = vunpack.c.l.b16 %v2358
    %v2367 = vunpack.c.h.b16 %v2358
    %v2368 = vunpack.c.l.b16 %v2359
    %v2369 = vunpack.c.h.b16 %v2359
    %v2370 = vunpack.c.l.b16 %v2360
    %v2371 = vunpack.c.h.b16 %v2360
    %v2372 = vunpack.c.l.b16 %v2361
    %v2373 = vunpack.c.h.b16 %v2361
    %v2374 = vpack.c.b16 %v2370, %v2366
    %v2375 = vpack.c.b16 %v2371, %v2367
    %v2376 = vpack.c.b16 %v2372, %v2368
    %v2377 = vpack.c.b16 %v2373, %v2369
    %2378 = vrot.lane.b32.xlu0 %v2374, 8
    %v2379 = vpop.permute.xlu0 %2378
    %2380 = vrot.lane.b32.xlu0 %v2375, 8
    %v2381 = vpop.permute.xlu0 %2380
    %2382 = vrot.lane.b32.xlu0 %v2376, 8
    %v2383 = vpop.permute.xlu0 %2382
    %2384 = vrot.lane.b32.xlu0 %v2377, 8
    %v2385 = vpop.permute.xlu0 %2384
    %v2386 = vsel %vm2169, %v2379, %v2381
    %v2387 = vsel %vm2169, %v2381, %v2383
    %v2388 = vsel %vm2169, %v2383, %v2385
    %v2394 = vmul.bf16 %v2241, %v2379
    %v2395 = vmul.bf16 %v2242, %v2386
    %v2396 = vmul.bf16 %v2243, %v2387
    %v2397 = vmul.bf16 %v2244, %v2388
    %v2398 = vmul.bf16 %v2357, %v2385
    %2404 = vrot.lane.b32.xlu0 %v2394, 8
    %v2405 = vpop.permute.xlu0 %2404
    %2406 = vrot.lane.b32.xlu0 %v2395, 8
    %v2407 = vpop.permute.xlu0 %2406
    %2408 = vrot.lane.b32.xlu0 %v2396, 8
    %v2409 = vpop.permute.xlu0 %2408
    %2410 = vrot.lane.b32.xlu0 %v2397, 8
    %v2411 = vpop.permute.xlu0 %2410
    %2412 = vrot.lane.b32.xlu0 %v2398, 8
    %v2413 = vpop.permute.xlu0 %2412
    %v2414 = vsel %vm2169, %v2405, %v2407
    %v2415 = vsel %vm2169, %v2407, %v2409
    %v2416 = vsel %vm2169, %v2409, %v2411
    %v2417 = vsel %vm2169, %v2411, %v2413
    %v2423 = vadd.bf16 %v2352, %v2405
    %v2424 = vadd.bf16 %v2353, %v2414
    %v2425 = vadd.bf16 %v2354, %v2415
    %v2426 = vadd.bf16 %v2355, %v2416
    %v2427 = vadd.bf16 %v2356, %v2417
    %v2428 = vld [vmem:[#allocation7 + $0x3e0] sm:$0xff]
    %v2429 = vld [vmem:[#allocation7 + $0x3e8] sm:$0xff]
    %v2430 = vld [vmem:[#allocation7 + $0x3f0] sm:$0xff]
    %v2431 = vld [vmem:[#allocation7 + $0x3f8] sm:$0xff]
    %v2436 = vunpack.c.l.b16 %v2428
    %v2437 = vunpack.c.h.b16 %v2428
    %v2438 = vunpack.c.l.b16 %v2429
    %v2439 = vunpack.c.h.b16 %v2429
    %v2440 = vunpack.c.l.b16 %v2430
    %v2441 = vunpack.c.h.b16 %v2430
    %v2442 = vunpack.c.l.b16 %v2431
    %v2443 = vunpack.c.h.b16 %v2431
    %v2444 = vpack.c.b16 %v2440, %v2436
    %v2445 = vpack.c.b16 %v2441, %v2437
    %v2446 = vpack.c.b16 %v2442, %v2438
    %v2447 = vpack.c.b16 %v2443, %v2439
    %2448 = vrot.lane.b32.xlu0 %v2444, 16
    %v2449 = vpop.permute.xlu0 %2448
    %2450 = vrot.lane.b32.xlu0 %v2445, 16
    %v2451 = vpop.permute.xlu0 %2450
    %2452 = vrot.lane.b32.xlu0 %v2446, 16
    %v2453 = vpop.permute.xlu0 %2452
    %2454 = vrot.lane.b32.xlu0 %v2447, 16
    %v2455 = vpop.permute.xlu0 %2454
    %v2456 = vsel %vm221, %v2449, %v2451
    %v2457 = vsel %vm221, %v2451, %v2453
    %v2458 = vsel %vm221, %v2453, %v2455
    %v2464 = vmul.bf16 %v2241, %v2449
    %v2465 = vmul.bf16 %v2242, %v2456
    %v2466 = vmul.bf16 %v2243, %v2457
    %v2467 = vmul.bf16 %v2244, %v2458
    %v2468 = vmul.bf16 %v2357, %v2455
    %v2469 = vadd.bf16 %v2423, %v2464
    %v2470 = vadd.bf16 %v2424, %v2465
    %v2471 = vadd.bf16 %v2425, %v2466
    %v2472 = vadd.bf16 %v2426, %v2467
    %v2473 = vadd.bf16 %v2427, %v2468
    %2479 = vrot.lane.b32.xlu0 %v2469, 112
    %v2480 = vpop.permute.xlu0 %2479
    %2481 = vrot.lane.b32.xlu0 %v2470, 112
    %v2482 = vpop.permute.xlu0 %2481
    %2483 = vrot.lane.b32.xlu0 %v2471, 112
    %v2484 = vpop.permute.xlu0 %2483
    %2485 = vrot.lane.b32.xlu0 %v2472, 112
    %v2486 = vpop.permute.xlu0 %2485
    %2487 = vrot.lane.b32.xlu0 %v2473, 112
    %v2488 = vpop.permute.xlu0 %2487
    %v2489 = vsel %vm465, %v2480, %v2482
    %v2490 = vsel %vm465, %v2482, %v2484
    %v2491 = vsel %vm465, %v2484, %v2486
    %v2492 = vsel %vm465, %v2486, %v2488
    %2497 = vst [vmem:[#allocation3 + $0xe0] sm:$0xff] %v2489
    %2498 = vst [vmem:[#allocation3 + $0xe8] sm:$0xff] %v2490
    %2499 = vst [vmem:[#allocation3 + $0xf0] sm:$0xff] %v2491
    %2500 = vst [vmem:[#allocation3 + $0xf8] sm:$0xff] %v2492
    %v2501 = vld [vmem:[#allocation2 + $0x10] sm:$0xff]
    %v2502 = vld [vmem:[#allocation2 + $0x18] sm:$0xff]
    %v2503 = vld [vmem:[#allocation2 + $0x20] sm:$0xff]
    %v2504 = vld [vmem:[#allocation2 + $0x28] sm:$0xff]
    %v2505 = vld [vmem:[#allocation2 + $0x30] sm:$0xff]
    %v2506 = vld [vmem:[#allocation7 + $0x400] sm:$0xff]
    %v2507 = vld [vmem:[#allocation7 + $0x408] sm:$0xff]
    %v2508 = vld [vmem:[#allocation7 + $0x410] sm:$0xff]
    %v2509 = vld [vmem:[#allocation7 + $0x418] sm:$0xff]
    %v2514 = vunpack.c.l.b16 %v2506
    %v2515 = vunpack.c.h.b16 %v2506
    %v2516 = vunpack.c.l.b16 %v2507
    %v2517 = vunpack.c.h.b16 %v2507
    %v2518 = vunpack.c.l.b16 %v2508
    %v2519 = vunpack.c.h.b16 %v2508
    %v2520 = vunpack.c.l.b16 %v2509
    %v2521 = vunpack.c.h.b16 %v2509
    %v2522 = vpack.c.b16 %v2518, %v2514
    %v2523 = vpack.c.b16 %v2519, %v2515
    %v2524 = vpack.c.b16 %v2520, %v2516
    %v2525 = vpack.c.b16 %v2521, %v2517
    %2526 = vrot.lane.b32.xlu0 %v2522, 24
    %v2527 = vpop.permute.xlu0 %2526
    %2528 = vrot.lane.b32.xlu0 %v2523, 24
    %v2529 = vpop.permute.xlu0 %2528
    %2530 = vrot.lane.b32.xlu0 %v2524, 24
    %v2531 = vpop.permute.xlu0 %2530
    %2532 = vrot.lane.b32.xlu0 %v2525, 24
    %v2533 = vpop.permute.xlu0 %2532
    %v2534 = vsel %vm2314, %v2527, %v2529
    %v2535 = vsel %vm2314, %v2529, %v2531
    %v2536 = vsel %vm2314, %v2531, %v2533
    %v2542 = vmul.bf16 %v2501, %v2527
    %v2543 = vmul.bf16 %v2502, %v2534
    %v2544 = vmul.bf16 %v2503, %v2535
    %v2545 = vmul.bf16 %v2504, %v2536
    %v2546 = vmul.bf16 %v2505, %v2533
    %v2547 = vld [vmem:[#allocation2 + $0x38] sm:$0xff]
    %v2548 = vld [vmem:[#allocation7 + $0x420] sm:$0xff]
    %v2549 = vld [vmem:[#allocation7 + $0x428] sm:$0xff]
    %v2550 = vld [vmem:[#allocation7 + $0x430] sm:$0xff]
    %v2551 = vld [vmem:[#allocation7 + $0x438] sm:$0xff]
    %v2556 = vunpack.c.l.b16 %v2548
    %v2557 = vunpack.c.h.b16 %v2548
    %v2558 = vunpack.c.l.b16 %v2549
    %v2559 = vunpack.c.h.b16 %v2549
    %v2560 = vunpack.c.l.b16 %v2550
    %v2561 = vunpack.c.h.b16 %v2550
    %v2562 = vunpack.c.l.b16 %v2551
    %v2563 = vunpack.c.h.b16 %v2551
    %v2564 = vpack.c.b16 %v2560, %v2556
    %v2565 = vpack.c.b16 %v2561, %v2557
    %v2566 = vpack.c.b16 %v2562, %v2558
    %v2567 = vpack.c.b16 %v2563, %v2559
    %2568 = vrot.lane.b32.xlu0 %v2564, 8
    %v2569 = vpop.permute.xlu0 %2568
    %2570 = vrot.lane.b32.xlu0 %v2565, 8
    %v2571 = vpop.permute.xlu0 %2570
    %2572 = vrot.lane.b32.xlu0 %v2566, 8
    %v2573 = vpop.permute.xlu0 %2572
    %2574 = vrot.lane.b32.xlu0 %v2567, 8
    %v2575 = vpop.permute.xlu0 %2574
    %v2576 = vsel %vm2169, %v2569, %v2571
    %v2577 = vsel %vm2169, %v2571, %v2573
    %v2578 = vsel %vm2169, %v2573, %v2575
    %v2584 = vmul.bf16 %v2502, %v2569
    %v2585 = vmul.bf16 %v2503, %v2576
    %v2586 = vmul.bf16 %v2504, %v2577
    %v2587 = vmul.bf16 %v2505, %v2578
    %v2588 = vmul.bf16 %v2547, %v2575
    %2594 = vrot.lane.b32.xlu0 %v2584, 16
    %v2595 = vpop.permute.xlu0 %2594
    %2596 = vrot.lane.b32.xlu0 %v2585, 16
    %v2597 = vpop.permute.xlu0 %2596
    %2598 = vrot.lane.b32.xlu0 %v2586, 16
    %v2599 = vpop.permute.xlu0 %2598
    %2600 = vrot.lane.b32.xlu0 %v2587, 16
    %v2601 = vpop.permute.xlu0 %2600
    %2602 = vrot.lane.b32.xlu0 %v2588, 16
    %v2603 = vpop.permute.xlu0 %2602
    %v2604 = vsel %vm221, %v2595, %v2597
    %v2605 = vsel %vm221, %v2597, %v2599
    %v2606 = vsel %vm221, %v2599, %v2601
    %v2607 = vsel %vm221, %v2601, %v2603
    %v2613 = vadd.bf16 %v2542, %v2595
    %v2614 = vadd.bf16 %v2543, %v2604
    %v2615 = vadd.bf16 %v2544, %v2605
    %v2616 = vadd.bf16 %v2545, %v2606
    %v2617 = vadd.bf16 %v2546, %v2607
    %v2618 = vld [vmem:[#allocation7 + $0x440] sm:$0xff]
    %v2619 = vld [vmem:[#allocation7 + $0x448] sm:$0xff]
    %v2620 = vld [vmem:[#allocation7 + $0x450] sm:$0xff]
    %v2621 = vld [vmem:[#allocation7 + $0x458] sm:$0xff]
    %v2626 = vunpack.c.l.b16 %v2618
    %v2627 = vunpack.c.h.b16 %v2618
    %v2628 = vunpack.c.l.b16 %v2619
    %v2629 = vunpack.c.h.b16 %v2619
    %v2630 = vunpack.c.l.b16 %v2620
    %v2631 = vunpack.c.h.b16 %v2620
    %v2632 = vunpack.c.l.b16 %v2621
    %v2633 = vunpack.c.h.b16 %v2621
    %v2634 = vpack.c.b16 %v2630, %v2626
    %v2635 = vpack.c.b16 %v2631, %v2627
    %v2636 = vpack.c.b16 %v2632, %v2628
    %v2637 = vpack.c.b16 %v2633, %v2629
    %2638 = vrot.lane.b32.xlu0 %v2634, 16
    %v2639 = vpop.permute.xlu0 %2638
    %2640 = vrot.lane.b32.xlu0 %v2635, 16
    %v2641 = vpop.permute.xlu0 %2640
    %2642 = vrot.lane.b32.xlu0 %v2636, 16
    %v2643 = vpop.permute.xlu0 %2642
    %2644 = vrot.lane.b32.xlu0 %v2637, 16
    %v2645 = vpop.permute.xlu0 %2644
    %v2646 = vsel %vm221, %v2639, %v2641
    %v2647 = vsel %vm221, %v2641, %v2643
    %v2648 = vsel %vm221, %v2643, %v2645
    %v2654 = vmul.bf16 %v2502, %v2639
    %v2655 = vmul.bf16 %v2503, %v2646
    %v2656 = vmul.bf16 %v2504, %v2647
    %v2657 = vmul.bf16 %v2505, %v2648
    %v2658 = vmul.bf16 %v2547, %v2645
    %2664 = vrot.lane.b32.xlu0 %v2654, 8
    %v2665 = vpop.permute.xlu0 %2664
    %2666 = vrot.lane.b32.xlu0 %v2655, 8
    %v2667 = vpop.permute.xlu0 %2666
    %2668 = vrot.lane.b32.xlu0 %v2656, 8
    %v2669 = vpop.permute.xlu0 %2668
    %2670 = vrot.lane.b32.xlu0 %v2657, 8
    %v2671 = vpop.permute.xlu0 %2670
    %2672 = vrot.lane.b32.xlu0 %v2658, 8
    %v2673 = vpop.permute.xlu0 %2672
    %v2674 = vsel %vm2169, %v2665, %v2667
    %v2675 = vsel %vm2169, %v2667, %v2669
    %v2676 = vsel %vm2169, %v2669, %v2671
    %v2677 = vsel %vm2169, %v2671, %v2673
    %v2683 = vadd.bf16 %v2613, %v2665
    %v2684 = vadd.bf16 %v2614, %v2674
    %v2685 = vadd.bf16 %v2615, %v2675
    %v2686 = vadd.bf16 %v2616, %v2676
    %v2687 = vadd.bf16 %v2617, %v2677
    %v2688 = vld [vmem:[#allocation7 + $0x460] sm:$0xff]
    %v2689 = vld [vmem:[#allocation7 + $0x468] sm:$0xff]
    %v2690 = vld [vmem:[#allocation7 + $0x470] sm:$0xff]
    %v2691 = vld [vmem:[#allocation7 + $0x478] sm:$0xff]
    %v2696 = vunpack.c.l.b16 %v2688
    %v2697 = vunpack.c.h.b16 %v2688
    %v2698 = vunpack.c.l.b16 %v2689
    %v2699 = vunpack.c.h.b16 %v2689
    %v2700 = vunpack.c.l.b16 %v2690
    %v2701 = vunpack.c.h.b16 %v2690
    %v2702 = vunpack.c.l.b16 %v2691
    %v2703 = vunpack.c.h.b16 %v2691
    %v2704 = vpack.c.b16 %v2700, %v2696
    %v2705 = vpack.c.b16 %v2701, %v2697
    %v2706 = vpack.c.b16 %v2702, %v2698
    %v2707 = vpack.c.b16 %v2703, %v2699
    %2708 = vrot.lane.b32.xlu0 %v2704, 24
    %v2709 = vpop.permute.xlu0 %2708
    %2710 = vrot.lane.b32.xlu0 %v2705, 24
    %v2711 = vpop.permute.xlu0 %2710
    %2712 = vrot.lane.b32.xlu0 %v2706, 24
    %v2713 = vpop.permute.xlu0 %2712
    %2714 = vrot.lane.b32.xlu0 %v2707, 24
    %v2715 = vpop.permute.xlu0 %2714
    %v2716 = vsel %vm2314, %v2709, %v2711
    %v2717 = vsel %vm2314, %v2711, %v2713
    %v2718 = vsel %vm2314, %v2713, %v2715
    %v2724 = vmul.bf16 %v2502, %v2709
    %v2725 = vmul.bf16 %v2503, %v2716
    %v2726 = vmul.bf16 %v2504, %v2717
    %v2727 = vmul.bf16 %v2505, %v2718
    %v2728 = vmul.bf16 %v2547, %v2715
    %v2729 = vadd.bf16 %v2683, %v2724
    %v2730 = vadd.bf16 %v2684, %v2725
    %v2731 = vadd.bf16 %v2685, %v2726
    %v2732 = vadd.bf16 %v2686, %v2727
    %v2733 = vadd.bf16 %v2687, %v2728
    %2739 = vrot.lane.b32.xlu0 %v2729, 104
    %v2740 = vpop.permute.xlu0 %2739
    %2741 = vrot.lane.b32.xlu0 %v2730, 104
    %v2742 = vpop.permute.xlu0 %2741
    %2743 = vrot.lane.b32.xlu0 %v2731, 104
    %v2744 = vpop.permute.xlu0 %2743
    %2745 = vrot.lane.b32.xlu0 %v2732, 104
    %v2746 = vpop.permute.xlu0 %2745
    %2747 = vrot.lane.b32.xlu0 %v2733, 104
    %v2748 = vpop.permute.xlu0 %2747
    %vm2749 = vcmask 850944
    %v2750 = vsel %vm2749, %v2740, %v2742
    %v2751 = vsel %vm2749, %v2742, %v2744
    %v2752 = vsel %vm2749, %v2744, %v2746
    %v2753 = vsel %vm2749, %v2746, %v2748
    %2758 = vst [vmem:[#allocation3 + $0x100] sm:$0xff] %v2750
    %2759 = vst [vmem:[#allocation3 + $0x108] sm:$0xff] %v2751
    %2760 = vst [vmem:[#allocation3 + $0x110] sm:$0xff] %v2752
    %2761 = vst [vmem:[#allocation3 + $0x118] sm:$0xff] %v2753
    %v2762 = vld [vmem:[#allocation2] sm:$0xff]
    %v2763 = vld [vmem:[#allocation2 + $0x8] sm:$0xff]
    %v2764 = vld [vmem:[#allocation2 + $0x10] sm:$0xff]
    %v2765 = vld [vmem:[#allocation2 + $0x18] sm:$0xff]
    %v2766 = vld [vmem:[#allocation7 + $0x480] sm:$0xff]
    %v2767 = vld [vmem:[#allocation7 + $0x488] sm:$0xff]
    %v2768 = vld [vmem:[#allocation7 + $0x490] sm:$0xff]
    %v2769 = vld [vmem:[#allocation7 + $0x498] sm:$0xff]
    %v2774 = vunpack.c.l.b16 %v2766
    %v2775 = vunpack.c.h.b16 %v2766
    %v2776 = vunpack.c.l.b16 %v2767
    %v2777 = vunpack.c.h.b16 %v2767
    %v2778 = vunpack.c.l.b16 %v2768
    %v2779 = vunpack.c.h.b16 %v2768
    %v2780 = vunpack.c.l.b16 %v2769
    %v2781 = vunpack.c.h.b16 %v2769
    %v2782 = vpack.c.b16 %v2778, %v2774
    %v2783 = vpack.c.b16 %v2779, %v2775
    %v2784 = vpack.c.b16 %v2780, %v2776
    %v2785 = vpack.c.b16 %v2781, %v2777
    %v2790 = vmul.bf16 %v2762, %v2782
    %v2791 = vmul.bf16 %v2763, %v2783
    %v2792 = vmul.bf16 %v2764, %v2784
    %v2793 = vmul.bf16 %v2765, %v2785
    %v2794 = vld [vmem:[#allocation2 + $0x20] sm:$0xff]
    %v2795 = vld [vmem:[#allocation7 + $0x4a0] sm:$0xff]
    %v2796 = vld [vmem:[#allocation7 + $0x4a8] sm:$0xff]
    %v2797 = vld [vmem:[#allocation7 + $0x4b0] sm:$0xff]
    %v2798 = vld [vmem:[#allocation7 + $0x4b8] sm:$0xff]
    %v2803 = vunpack.c.l.b16 %v2795
    %v2804 = vunpack.c.h.b16 %v2795
    %v2805 = vunpack.c.l.b16 %v2796
    %v2806 = vunpack.c.h.b16 %v2796
    %v2807 = vunpack.c.l.b16 %v2797
    %v2808 = vunpack.c.h.b16 %v2797
    %v2809 = vunpack.c.l.b16 %v2798
    %v2810 = vunpack.c.h.b16 %v2798
    %v2811 = vpack.c.b16 %v2807, %v2803
    %v2812 = vpack.c.b16 %v2808, %v2804
    %v2813 = vpack.c.b16 %v2809, %v2805
    %v2814 = vpack.c.b16 %v2810, %v2806
    %2815 = vrot.lane.b32.xlu0 %v2811, 16
    %v2816 = vpop.permute.xlu0 %2815
    %2817 = vrot.lane.b32.xlu0 %v2812, 16
    %v2818 = vpop.permute.xlu0 %2817
    %2819 = vrot.lane.b32.xlu0 %v2813, 16
    %v2820 = vpop.permute.xlu0 %2819
    %2821 = vrot.lane.b32.xlu0 %v2814, 16
    %v2822 = vpop.permute.xlu0 %2821
    %v2823 = vsel %vm221, %v2816, %v2818
    %v2824 = vsel %vm221, %v2818, %v2820
    %v2825 = vsel %vm221, %v2820, %v2822
    %v2831 = vmul.bf16 %v2762, %v2816
    %v2832 = vmul.bf16 %v2763, %v2823
    %v2833 = vmul.bf16 %v2764, %v2824
    %v2834 = vmul.bf16 %v2765, %v2825
    %v2835 = vmul.bf16 %v2794, %v2822
    %2841 = vrot.lane.b32.xlu0 %v2831, 112
    %v2842 = vpop.permute.xlu0 %2841
    %2843 = vrot.lane.b32.xlu0 %v2832, 112
    %v2844 = vpop.permute.xlu0 %2843
    %2845 = vrot.lane.b32.xlu0 %v2833, 112
    %v2846 = vpop.permute.xlu0 %2845
    %2847 = vrot.lane.b32.xlu0 %v2834, 112
    %v2848 = vpop.permute.xlu0 %2847
    %2849 = vrot.lane.b32.xlu0 %v2835, 112
    %v2850 = vpop.permute.xlu0 %2849
    %v2851 = vsel %vm465, %v2842, %v2844
    %v2852 = vsel %vm465, %v2844, %v2846
    %v2853 = vsel %vm465, %v2846, %v2848
    %v2854 = vsel %vm465, %v2848, %v2850
    %v2859 = vadd.bf16 %v2790, %v2851
    %v2860 = vadd.bf16 %v2791, %v2852
    %v2861 = vadd.bf16 %v2792, %v2853
    %v2862 = vadd.bf16 %v2793, %v2854
    %v2863 = vld [vmem:[#allocation7 + $0x4c0] sm:$0xff]
    %v2864 = vld [vmem:[#allocation7 + $0x4c8] sm:$0xff]
    %v2865 = vld [vmem:[#allocation7 + $0x4d0] sm:$0xff]
    %v2866 = vld [vmem:[#allocation7 + $0x4d8] sm:$0xff]
    %v2871 = vunpack.c.l.b16 %v2863
    %v2872 = vunpack.c.h.b16 %v2863
    %v2873 = vunpack.c.l.b16 %v2864
    %v2874 = vunpack.c.h.b16 %v2864
    %v2875 = vunpack.c.l.b16 %v2865
    %v2876 = vunpack.c.h.b16 %v2865
    %v2877 = vunpack.c.l.b16 %v2866
    %v2878 = vunpack.c.h.b16 %v2866
    %v2879 = vpack.c.b16 %v2875, %v2871
    %v2880 = vpack.c.b16 %v2876, %v2872
    %v2881 = vpack.c.b16 %v2877, %v2873
    %v2882 = vpack.c.b16 %v2878, %v2874
    %2883 = vrot.lane.b32.xlu0 %v2879, 32
    %v2884 = vpop.permute.xlu0 %2883
    %2885 = vrot.lane.b32.xlu0 %v2880, 32
    %v2886 = vpop.permute.xlu0 %2885
    %2887 = vrot.lane.b32.xlu0 %v2881, 32
    %v2888 = vpop.permute.xlu0 %2887
    %2889 = vrot.lane.b32.xlu0 %v2882, 32
    %v2890 = vpop.permute.xlu0 %2889
    %v2891 = vsel %vm724, %v2884, %v2886
    %v2892 = vsel %vm724, %v2886, %v2888
    %v2893 = vsel %vm724, %v2888, %v2890
    %v2899 = vmul.bf16 %v2762, %v2884
    %v2900 = vmul.bf16 %v2763, %v2891
    %v2901 = vmul.bf16 %v2764, %v2892
    %v2902 = vmul.bf16 %v2765, %v2893
    %v2903 = vmul.bf16 %v2794, %v2890
    %2909 = vrot.lane.b32.xlu0 %v2899, 96
    %v2910 = vpop.permute.xlu0 %2909
    %2911 = vrot.lane.b32.xlu0 %v2900, 96
    %v2912 = vpop.permute.xlu0 %2911
    %2913 = vrot.lane.b32.xlu0 %v2901, 96
    %v2914 = vpop.permute.xlu0 %2913
    %2915 = vrot.lane.b32.xlu0 %v2902, 96
    %v2916 = vpop.permute.xlu0 %2915
    %2917 = vrot.lane.b32.xlu0 %v2903, 96
    %v2918 = vpop.permute.xlu0 %2917
    %v2919 = vsel %vm1331, %v2910, %v2912
    %v2920 = vsel %vm1331, %v2912, %v2914
    %v2921 = vsel %vm1331, %v2914, %v2916
    %v2922 = vsel %vm1331, %v2916, %v2918
    %v2927 = vadd.bf16 %v2859, %v2919
    %v2928 = vadd.bf16 %v2860, %v2920
    %v2929 = vadd.bf16 %v2861, %v2921
    %v2930 = vadd.bf16 %v2862, %v2922
    %v2931 = vld [vmem:[#allocation2 + $0x28] sm:$0xff]
    %v2932 = vld [vmem:[#allocation7 + $0x4e0] sm:$0xff]
    %v2933 = vld [vmem:[#allocation7 + $0x4e8] sm:$0xff]
    %v2934 = vld [vmem:[#allocation7 + $0x4f0] sm:$0xff]
    %v2935 = vld [vmem:[#allocation7 + $0x4f8] sm:$0xff]
    %v2940 = vunpack.c.l.b16 %v2932
    %v2941 = vunpack.c.h.b16 %v2932
    %v2942 = vunpack.c.l.b16 %v2933
    %v2943 = vunpack.c.h.b16 %v2933
    %v2944 = vunpack.c.l.b16 %v2934
    %v2945 = vunpack.c.h.b16 %v2934
    %v2946 = vunpack.c.l.b16 %v2935
    %v2947 = vunpack.c.h.b16 %v2935
    %v2948 = vpack.c.b16 %v2944, %v2940
    %v2949 = vpack.c.b16 %v2945, %v2941
    %v2950 = vpack.c.b16 %v2946, %v2942
    %v2951 = vpack.c.b16 %v2947, %v2943
    %v2956 = vmul.bf16 %v2764, %v2948
    %v2957 = vmul.bf16 %v2765, %v2949
    %v2958 = vmul.bf16 %v2794, %v2950
    %v2959 = vmul.bf16 %v2931, %v2951
    %v2960 = vadd.bf16 %v2927, %v2956
    %v2961 = vadd.bf16 %v2928, %v2957
    %v2962 = vadd.bf16 %v2929, %v2958
    %v2963 = vadd.bf16 %v2930, %v2959
    %2964 = vst [vmem:[#allocation3 + $0x120] sm:$0xff] %v2960
    %2965 = vst [vmem:[#allocation3 + $0x128] sm:$0xff] %v2961
    %2966 = vst [vmem:[#allocation3 + $0x130] sm:$0xff] %v2962
    %2967 = vst [vmem:[#allocation3 + $0x138] sm:$0xff] %v2963
    %v2968 = vld [vmem:[#allocation2 + $0x10] sm:$0xff]
    %v2969 = vld [vmem:[#allocation2 + $0x18] sm:$0xff]
    %v2970 = vld [vmem:[#allocation2 + $0x20] sm:$0xff]
    %v2971 = vld [vmem:[#allocation2 + $0x28] sm:$0xff]
    %v2972 = vld [vmem:[#allocation2 + $0x30] sm:$0xff]
    %v2973 = vld [vmem:[#allocation7 + $0x500] sm:$0xff]
    %v2974 = vld [vmem:[#allocation7 + $0x508] sm:$0xff]
    %v2975 = vld [vmem:[#allocation7 + $0x510] sm:$0xff]
    %v2976 = vld [vmem:[#allocation7 + $0x518] sm:$0xff]
    %v2981 = vunpack.c.l.b16 %v2973
    %v2982 = vunpack.c.h.b16 %v2973
    %v2983 = vunpack.c.l.b16 %v2974
    %v2984 = vunpack.c.h.b16 %v2974
    %v2985 = vunpack.c.l.b16 %v2975
    %v2986 = vunpack.c.h.b16 %v2975
    %v2987 = vunpack.c.l.b16 %v2976
    %v2988 = vunpack.c.h.b16 %v2976
    %v2989 = vpack.c.b16 %v2985, %v2981
    %v2990 = vpack.c.b16 %v2986, %v2982
    %v2991 = vpack.c.b16 %v2987, %v2983
    %v2992 = vpack.c.b16 %v2988, %v2984
    %2993 = vrot.lane.b32.xlu0 %v2989, 16
    %v2994 = vpop.permute.xlu0 %2993
    %2995 = vrot.lane.b32.xlu0 %v2990, 16
    %v2996 = vpop.permute.xlu0 %2995
    %2997 = vrot.lane.b32.xlu0 %v2991, 16
    %v2998 = vpop.permute.xlu0 %2997
    %2999 = vrot.lane.b32.xlu0 %v2992, 16
    %v3000 = vpop.permute.xlu0 %2999
    %v3001 = vsel %vm221, %v2994, %v2996
    %v3002 = vsel %vm221, %v2996, %v2998
    %v3003 = vsel %vm221, %v2998, %v3000
    %v3009 = vmul.bf16 %v2968, %v2994
    %v3010 = vmul.bf16 %v2969, %v3001
    %v3011 = vmul.bf16 %v2970, %v3002
    %v3012 = vmul.bf16 %v2971, %v3003
    %v3013 = vmul.bf16 %v2972, %v3000
    %v3014 = vld [vmem:[#allocation7 + $0x520] sm:$0xff]
    %v3015 = vld [vmem:[#allocation7 + $0x528] sm:$0xff]
    %v3016 = vld [vmem:[#allocation7 + $0x530] sm:$0xff]
    %v3017 = vld [vmem:[#allocation7 + $0x538] sm:$0xff]
    %v3022 = vunpack.c.l.b16 %v3014
    %v3023 = vunpack.c.h.b16 %v3014
    %v3024 = vunpack.c.l.b16 %v3015
    %v3025 = vunpack.c.h.b16 %v3015
    %v3026 = vunpack.c.l.b16 %v3016
    %v3027 = vunpack.c.h.b16 %v3016
    %v3028 = vunpack.c.l.b16 %v3017
    %v3029 = vunpack.c.h.b16 %v3017
    %v3030 = vpack.c.b16 %v3026, %v3022
    %v3031 = vpack.c.b16 %v3027, %v3023
    %v3032 = vpack.c.b16 %v3028, %v3024
    %v3033 = vpack.c.b16 %v3029, %v3025
    %3034 = vrot.lane.b32.xlu0 %v3030, 32
    %v3035 = vpop.permute.xlu0 %3034
    %3036 = vrot.lane.b32.xlu0 %v3031, 32
    %v3037 = vpop.permute.xlu0 %3036
    %3038 = vrot.lane.b32.xlu0 %v3032, 32
    %v3039 = vpop.permute.xlu0 %3038
    %3040 = vrot.lane.b32.xlu0 %v3033, 32
    %v3041 = vpop.permute.xlu0 %3040
    %v3042 = vsel %vm724, %v3035, %v3037
    %v3043 = vsel %vm724, %v3037, %v3039
    %v3044 = vsel %vm724, %v3039, %v3041
    %v3050 = vmul.bf16 %v2968, %v3035
    %v3051 = vmul.bf16 %v2969, %v3042
    %v3052 = vmul.bf16 %v2970, %v3043
    %v3053 = vmul.bf16 %v2971, %v3044
    %v3054 = vmul.bf16 %v2972, %v3041
    %3060 = vrot.lane.b32.xlu0 %v3050, 112
    %v3061 = vpop.permute.xlu0 %3060
    %3062 = vrot.lane.b32.xlu0 %v3051, 112
    %v3063 = vpop.permute.xlu0 %3062
    %3064 = vrot.lane.b32.xlu0 %v3052, 112
    %v3065 = vpop.permute.xlu0 %3064
    %3066 = vrot.lane.b32.xlu0 %v3053, 112
    %v3067 = vpop.permute.xlu0 %3066
    %3068 = vrot.lane.b32.xlu0 %v3054, 112
    %v3069 = vpop.permute.xlu0 %3068
    %v3070 = vsel %vm465, %v3061, %v3063
    %v3071 = vsel %vm465, %v3063, %v3065
    %v3072 = vsel %vm465, %v3065, %v3067
    %v3073 = vsel %vm465, %v3067, %v3069
    %v3079 = vadd.bf16 %v3009, %v3070
    %v3080 = vadd.bf16 %v3010, %v3071
    %v3081 = vadd.bf16 %v3011, %v3072
    %v3082 = vadd.bf16 %v3012, %v3073
    %v3083 = vadd.bf16 %v3013, %v3069
    %v3084 = vld [vmem:[#allocation2 + $0x38] sm:$0xff]
    %v3085 = vld [vmem:[#allocation7 + $0x540] sm:$0xff]
    %v3086 = vld [vmem:[#allocation7 + $0x548] sm:$0xff]
    %v3087 = vld [vmem:[#allocation7 + $0x550] sm:$0xff]
    %v3088 = vld [vmem:[#allocation7 + $0x558] sm:$0xff]
    %v3093 = vunpack.c.l.b16 %v3085
    %v3094 = vunpack.c.h.b16 %v3085
    %v3095 = vunpack.c.l.b16 %v3086
    %v3096 = vunpack.c.h.b16 %v3086
    %v3097 = vunpack.c.l.b16 %v3087
    %v3098 = vunpack.c.h.b16 %v3087
    %v3099 = vunpack.c.l.b16 %v3088
    %v3100 = vunpack.c.h.b16 %v3088
    %v3101 = vpack.c.b16 %v3097, %v3093
    %v3102 = vpack.c.b16 %v3098, %v3094
    %v3103 = vpack.c.b16 %v3099, %v3095
    %v3104 = vpack.c.b16 %v3100, %v3096
    %v3109 = vmul.bf16 %v2970, %v3101
    %v3110 = vmul.bf16 %v2971, %v3102
    %v3111 = vmul.bf16 %v2972, %v3103
    %v3112 = vmul.bf16 %v3084, %v3104
    %3117 = vrot.lane.b32.xlu0 %v3109, 16
    %v3118 = vpop.permute.xlu0 %3117
    %3119 = vrot.lane.b32.xlu0 %v3110, 16
    %v3120 = vpop.permute.xlu0 %3119
    %3121 = vrot.lane.b32.xlu0 %v3111, 16
    %v3122 = vpop.permute.xlu0 %3121
    %3123 = vrot.lane.b32.xlu0 %v3112, 16
    %v3124 = vpop.permute.xlu0 %3123
    %v3125 = vsel %vm221, %v3118, %v3120
    %v3126 = vsel %vm221, %v3120, %v3122
    %v3127 = vsel %vm221, %v3122, %v3124
    %v3133 = vadd.bf16 %v3079, %v3118
    %v3134 = vadd.bf16 %v3080, %v3125
    %v3135 = vadd.bf16 %v3081, %v3126
    %v3136 = vadd.bf16 %v3082, %v3127
    %v3137 = vadd.bf16 %v3083, %v3124
    %v3138 = vld [vmem:[#allocation2 + $0x40] sm:$0xff]
    %v3139 = vld [vmem:[#allocation7 + $0x560] sm:$0xff]
    %v3140 = vld [vmem:[#allocation7 + $0x568] sm:$0xff]
    %v3141 = vld [vmem:[#allocation7 + $0x570] sm:$0xff]
    %v3142 = vld [vmem:[#allocation7 + $0x578] sm:$0xff]
    %v3147 = vunpack.c.l.b16 %v3139
    %v3148 = vunpack.c.h.b16 %v3139
    %v3149 = vunpack.c.l.b16 %v3140
    %v3150 = vunpack.c.h.b16 %v3140
    %v3151 = vunpack.c.l.b16 %v3141
    %v3152 = vunpack.c.h.b16 %v3141
    %v3153 = vunpack.c.l.b16 %v3142
    %v3154 = vunpack.c.h.b16 %v3142
    %v3155 = vpack.c.b16 %v3151, %v3147
    %v3156 = vpack.c.b16 %v3152, %v3148
    %v3157 = vpack.c.b16 %v3153, %v3149
    %v3158 = vpack.c.b16 %v3154, %v3150
    %3159 = vrot.lane.b32.xlu0 %v3155, 16
    %v3160 = vpop.permute.xlu0 %3159
    %3161 = vrot.lane.b32.xlu0 %v3156, 16
    %v3162 = vpop.permute.xlu0 %3161
    %3163 = vrot.lane.b32.xlu0 %v3157, 16
    %v3164 = vpop.permute.xlu0 %3163
    %3165 = vrot.lane.b32.xlu0 %v3158, 16
    %v3166 = vpop.permute.xlu0 %3165
    %v3167 = vsel %vm221, %v3160, %v3162
    %v3168 = vsel %vm221, %v3162, %v3164
    %v3169 = vsel %vm221, %v3164, %v3166
    %v3175 = vmul.bf16 %v2970, %v3160
    %v3176 = vmul.bf16 %v2971, %v3167
    %v3177 = vmul.bf16 %v2972, %v3168
    %v3178 = vmul.bf16 %v3084, %v3169
    %v3179 = vmul.bf16 %v3138, %v3166
    %v3180 = vadd.bf16 %v3133, %v3175
    %v3181 = vadd.bf16 %v3134, %v3176
    %v3182 = vadd.bf16 %v3135, %v3177
    %v3183 = vadd.bf16 %v3136, %v3178
    %v3184 = vadd.bf16 %v3137, %v3179
    %3190 = vrot.lane.b32.xlu0 %v3180, 112
    %v3191 = vpop.permute.xlu0 %3190
    %3192 = vrot.lane.b32.xlu0 %v3181, 112
    %v3193 = vpop.permute.xlu0 %3192
    %3194 = vrot.lane.b32.xlu0 %v3182, 112
    %v3195 = vpop.permute.xlu0 %3194
    %3196 = vrot.lane.b32.xlu0 %v3183, 112
    %v3197 = vpop.permute.xlu0 %3196
    %3198 = vrot.lane.b32.xlu0 %v3184, 112
    %v3199 = vpop.permute.xlu0 %3198
    %v3200 = vsel %vm465, %v3191, %v3193
    %v3201 = vsel %vm465, %v3193, %v3195
    %v3202 = vsel %vm465, %v3195, %v3197
    %v3203 = vsel %vm465, %v3197, %v3199
    %3208 = vst [vmem:[#allocation3 + $0x140] sm:$0xff] %v3200
    %3209 = vst [vmem:[#allocation3 + $0x148] sm:$0xff] %v3201
    %3210 = vst [vmem:[#allocation3 + $0x150] sm:$0xff] %v3202
    %3211 = vst [vmem:[#allocation3 + $0x158] sm:$0xff] %v3203
    %v3212 = vld [vmem:[#allocation2 + $0x20] sm:$0xff]
    %v3213 = vld [vmem:[#allocation2 + $0x28] sm:$0xff]
    %v3214 = vld [vmem:[#allocation2 + $0x30] sm:$0xff]
    %v3215 = vld [vmem:[#allocation2 + $0x38] sm:$0xff]
    %v3216 = vld [vmem:[#allocation2 + $0x40] sm:$0xff]
    %v3217 = vld [vmem:[#allocation7 + $0x580] sm:$0xff]
    %v3218 = vld [vmem:[#allocation7 + $0x588] sm:$0xff]
    %v3219 = vld [vmem:[#allocation7 + $0x590] sm:$0xff]
    %v3220 = vld [vmem:[#allocation7 + $0x598] sm:$0xff]
    %v3225 = vunpack.c.l.b16 %v3217
    %v3226 = vunpack.c.h.b16 %v3217
    %v3227 = vunpack.c.l.b16 %v3218
    %v3228 = vunpack.c.h.b16 %v3218
    %v3229 = vunpack.c.l.b16 %v3219
    %v3230 = vunpack.c.h.b16 %v3219
    %v3231 = vunpack.c.l.b16 %v3220
    %v3232 = vunpack.c.h.b16 %v3220
    %v3233 = vpack.c.b16 %v3229, %v3225
    %v3234 = vpack.c.b16 %v3230, %v3226
    %v3235 = vpack.c.b16 %v3231, %v3227
    %v3236 = vpack.c.b16 %v3232, %v3228
    %3237 = vrot.lane.b32.xlu0 %v3233, 32
    %v3238 = vpop.permute.xlu0 %3237
    %3239 = vrot.lane.b32.xlu0 %v3234, 32
    %v3240 = vpop.permute.xlu0 %3239
    %3241 = vrot.lane.b32.xlu0 %v3235, 32
    %v3242 = vpop.permute.xlu0 %3241
    %3243 = vrot.lane.b32.xlu0 %v3236, 32
    %v3244 = vpop.permute.xlu0 %3243
    %v3245 = vsel %vm724, %v3238, %v3240
    %v3246 = vsel %vm724, %v3240, %v3242
    %v3247 = vsel %vm724, %v3242, %v3244
    %v3253 = vmul.bf16 %v3212, %v3238
    %v3254 = vmul.bf16 %v3213, %v3245
    %v3255 = vmul.bf16 %v3214, %v3246
    %v3256 = vmul.bf16 %v3215, %v3247
    %v3257 = vmul.bf16 %v3216, %v3244
    %v3258 = vld [vmem:[#allocation2 + $0x10] sm:$0xff]
    %v3259 = vld [vmem:[#allocation2 + $0x18] sm:$0xff]
    %v3260 = vld [vmem:[#allocation7 + $0x5a0] sm:$0xff]
    %v3261 = vld [vmem:[#allocation7 + $0x5a8] sm:$0xff]
    %v3262 = vld [vmem:[#allocation7 + $0x5b0] sm:$0xff]
    %v3263 = vld [vmem:[#allocation7 + $0x5b8] sm:$0xff]
    %v3268 = vunpack.c.l.b16 %v3260
    %v3269 = vunpack.c.h.b16 %v3260
    %v3270 = vunpack.c.l.b16 %v3261
    %v3271 = vunpack.c.h.b16 %v3261
    %v3272 = vunpack.c.l.b16 %v3262
    %v3273 = vunpack.c.h.b16 %v3262
    %v3274 = vunpack.c.l.b16 %v3263
    %v3275 = vunpack.c.h.b16 %v3263
    %v3276 = vpack.c.b16 %v3272, %v3268
    %v3277 = vpack.c.b16 %v3273, %v3269
    %v3278 = vpack.c.b16 %v3274, %v3270
    %v3279 = vpack.c.b16 %v3275, %v3271
    %3280 = vrot.lane.b32.xlu0 %v3276, 16
    %v3281 = vpop.permute.xlu0 %3280
    %3282 = vrot.lane.b32.xlu0 %v3277, 16
    %v3283 = vpop.permute.xlu0 %3282
    %3284 = vrot.lane.b32.xlu0 %v3278, 16
    %v3285 = vpop.permute.xlu0 %3284
    %3286 = vrot.lane.b32.xlu0 %v3279, 16
    %v3287 = vpop.permute.xlu0 %3286
    %v3288 = vsel %vm221, %v3281, %v3283
    %v3289 = vsel %vm221, %v3283, %v3285
    %v3290 = vsel %vm221, %v3285, %v3287
    %v3296 = vmul.bf16 %v3258, %v3281
    %v3297 = vmul.bf16 %v3259, %v3288
    %v3298 = vmul.bf16 %v3212, %v3289
    %v3299 = vmul.bf16 %v3213, %v3290
    %v3300 = vmul.bf16 %v3214, %v3287
    %3306 = vrot.lane.b32.xlu0 %v3296, 16
    %v3307 = vpop.permute.xlu0 %3306
    %3308 = vrot.lane.b32.xlu0 %v3297, 16
    %v3309 = vpop.permute.xlu0 %3308
    %3310 = vrot.lane.b32.xlu0 %v3298, 16
    %v3311 = vpop.permute.xlu0 %3310
    %3312 = vrot.lane.b32.xlu0 %v3299, 16
    %v3313 = vpop.permute.xlu0 %3312
    %3314 = vrot.lane.b32.xlu0 %v3300, 16
    %v3315 = vpop.permute.xlu0 %3314
    %v3316 = vsel %vm221, %v3307, %v3309
    %v3317 = vsel %vm221, %v3309, %v3311
    %v3318 = vsel %vm221, %v3311, %v3313
    %v3319 = vsel %vm221, %v3313, %v3315
    %v3325 = vadd.bf16 %v3253, %v3307
    %v3326 = vadd.bf16 %v3254, %v3316
    %v3327 = vadd.bf16 %v3255, %v3317
    %v3328 = vadd.bf16 %v3256, %v3318
    %v3329 = vadd.bf16 %v3257, %v3319
    %v3330 = vld [vmem:[#allocation7 + $0x5c0] sm:$0xff]
    %v3331 = vld [vmem:[#allocation7 + $0x5c8] sm:$0xff]
    %v3332 = vld [vmem:[#allocation7 + $0x5d0] sm:$0xff]
    %v3333 = vld [vmem:[#allocation7 + $0x5d8] sm:$0xff]
    %v3338 = vunpack.c.l.b16 %v3330
    %v3339 = vunpack.c.h.b16 %v3330
    %v3340 = vunpack.c.l.b16 %v3331
    %v3341 = vunpack.c.h.b16 %v3331
    %v3342 = vunpack.c.l.b16 %v3332
    %v3343 = vunpack.c.h.b16 %v3332
    %v3344 = vunpack.c.l.b16 %v3333
    %v3345 = vunpack.c.h.b16 %v3333
    %v3346 = vpack.c.b16 %v3342, %v3338
    %v3347 = vpack.c.b16 %v3343, %v3339
    %v3348 = vpack.c.b16 %v3344, %v3340
    %v3349 = vpack.c.b16 %v3345, %v3341
    %3350 = vrot.lane.b32.xlu0 %v3346, 16
    %v3351 = vpop.permute.xlu0 %3350
    %3352 = vrot.lane.b32.xlu0 %v3347, 16
    %v3353 = vpop.permute.xlu0 %3352
    %3354 = vrot.lane.b32.xlu0 %v3348, 16
    %v3355 = vpop.permute.xlu0 %3354
    %3356 = vrot.lane.b32.xlu0 %v3349, 16
    %v3357 = vpop.permute.xlu0 %3356
    %v3358 = vsel %vm221, %v3351, %v3353
    %v3359 = vsel %vm221, %v3353, %v3355
    %v3360 = vsel %vm221, %v3355, %v3357
    %v3366 = vmul.bf16 %v3258, %v3351
    %v3367 = vmul.bf16 %v3259, %v3358
    %v3368 = vmul.bf16 %v3212, %v3359
    %v3369 = vmul.bf16 %v3213, %v3360
    %v3370 = vmul.bf16 %v3214, %v3357
    %3376 = vrot.lane.b32.xlu0 %v3366, 16
    %v3377 = vpop.permute.xlu0 %3376
    %3378 = vrot.lane.b32.xlu0 %v3367, 16
    %v3379 = vpop.permute.xlu0 %3378
    %3380 = vrot.lane.b32.xlu0 %v3368, 16
    %v3381 = vpop.permute.xlu0 %3380
    %3382 = vrot.lane.b32.xlu0 %v3369, 16
    %v3383 = vpop.permute.xlu0 %3382
    %3384 = vrot.lane.b32.xlu0 %v3370, 16
    %v3385 = vpop.permute.xlu0 %3384
    %v3386 = vsel %vm221, %v3377, %v3379
    %v3387 = vsel %vm221, %v3379, %v3381
    %v3388 = vsel %vm221, %v3381, %v3383
    %v3389 = vsel %vm221, %v3383, %v3385
    %v3395 = vadd.bf16 %v3325, %v3377
    %v3396 = vadd.bf16 %v3326, %v3386
    %v3397 = vadd.bf16 %v3327, %v3387
    %v3398 = vadd.bf16 %v3328, %v3388
    %v3399 = vadd.bf16 %v3329, %v3389
    %v3400 = vld [vmem:[#allocation7 + $0x5e0] sm:$0xff]
    %v3401 = vld [vmem:[#allocation7 + $0x5e8] sm:$0xff]
    %v3402 = vld [vmem:[#allocation7 + $0x5f0] sm:$0xff]
    %v3403 = vld [vmem:[#allocation7 + $0x5f8] sm:$0xff]
    %v3408 = vunpack.c.l.b16 %v3400
    %v3409 = vunpack.c.h.b16 %v3400
    %v3410 = vunpack.c.l.b16 %v3401
    %v3411 = vunpack.c.h.b16 %v3401
    %v3412 = vunpack.c.l.b16 %v3402
    %v3413 = vunpack.c.h.b16 %v3402
    %v3414 = vunpack.c.l.b16 %v3403
    %v3415 = vunpack.c.h.b16 %v3403
    %v3416 = vpack.c.b16 %v3412, %v3408
    %v3417 = vpack.c.b16 %v3413, %v3409
    %v3418 = vpack.c.b16 %v3414, %v3410
    %v3419 = vpack.c.b16 %v3415, %v3411
    %3420 = vrot.lane.b32.xlu0 %v3416, 16
    %v3421 = vpop.permute.xlu0 %3420
    %3422 = vrot.lane.b32.xlu0 %v3417, 16
    %v3423 = vpop.permute.xlu0 %3422
    %3424 = vrot.lane.b32.xlu0 %v3418, 16
    %v3425 = vpop.permute.xlu0 %3424
    %3426 = vrot.lane.b32.xlu0 %v3419, 16
    %v3427 = vpop.permute.xlu0 %3426
    %v3428 = vsel %vm221, %v3421, %v3423
    %v3429 = vsel %vm221, %v3423, %v3425
    %v3430 = vsel %vm221, %v3425, %v3427
    %v3436 = vmul.bf16 %v3258, %v3421
    %v3437 = vmul.bf16 %v3259, %v3428
    %v3438 = vmul.bf16 %v3212, %v3429
    %v3439 = vmul.bf16 %v3213, %v3430
    %v3440 = vmul.bf16 %v3214, %v3427
    %3446 = vrot.lane.b32.xlu0 %v3436, 16
    %v3447 = vpop.permute.xlu0 %3446
    %3448 = vrot.lane.b32.xlu0 %v3437, 16
    %v3449 = vpop.permute.xlu0 %3448
    %3450 = vrot.lane.b32.xlu0 %v3438, 16
    %v3451 = vpop.permute.xlu0 %3450
    %3452 = vrot.lane.b32.xlu0 %v3439, 16
    %v3453 = vpop.permute.xlu0 %3452
    %3454 = vrot.lane.b32.xlu0 %v3440, 16
    %v3455 = vpop.permute.xlu0 %3454
    %v3456 = vsel %vm221, %v3447, %v3449
    %v3457 = vsel %vm221, %v3449, %v3451
    %v3458 = vsel %vm221, %v3451, %v3453
    %v3459 = vsel %vm221, %v3453, %v3455
    %v3465 = vadd.bf16 %v3395, %v3447
    %v3466 = vadd.bf16 %v3396, %v3456
    %v3467 = vadd.bf16 %v3397, %v3457
    %v3468 = vadd.bf16 %v3398, %v3458
    %v3469 = vadd.bf16 %v3399, %v3459
    %3475 = vrot.lane.b32.xlu0 %v3465, 96
    %v3476 = vpop.permute.xlu0 %3475
    %3477 = vrot.lane.b32.xlu0 %v3466, 96
    %v3478 = vpop.permute.xlu0 %3477
    %3479 = vrot.lane.b32.xlu0 %v3467, 96
    %v3480 = vpop.permute.xlu0 %3479
    %3481 = vrot.lane.b32.xlu0 %v3468, 96
    %v3482 = vpop.permute.xlu0 %3481
    %3483 = vrot.lane.b32.xlu0 %v3469, 96
    %v3484 = vpop.permute.xlu0 %3483
    %v3485 = vsel %vm1331, %v3476, %v3478
    %v3486 = vsel %vm1331, %v3478, %v3480
    %v3487 = vsel %vm1331, %v3480, %v3482
    %v3488 = vsel %vm1331, %v3482, %v3484
    %3493 = vst [vmem:[#allocation3 + $0x160] sm:$0xff] %v3485
    %3494 = vst [vmem:[#allocation3 + $0x168] sm:$0xff] %v3486
    %3495 = vst [vmem:[#allocation3 + $0x170] sm:$0xff] %v3487
    %3496 = vst [vmem:[#allocation3 + $0x178] sm:$0xff] %v3488
    %v3497 = vld [vmem:[%s2] sm:$0xff]
    %v3498 = vld [vmem:[%s2 + $0x8] sm:$0xff]
    %v3499 = vld [vmem:[%s2 + $0x10] sm:$0x33]
    %v3500 = vld [vmem:[#allocation3] sm:$0xff]
    %v3501 = vld [vmem:[#allocation3 + $0x8] sm:$0xff]
    %v3502 = vld [vmem:[#allocation3 + $0x10] sm:$0xff]
    %v3503 = vld [vmem:[#allocation3 + $0x18] sm:$0xff]
    %v3504 = vld [vmem:[#allocation3 + $0x20] sm:$0xff]
    %v3505 = vld [vmem:[#allocation3 + $0x28] sm:$0xff]
    %v3506 = vld [vmem:[#allocation3 + $0x30] sm:$0xff]
    %v3507 = vld [vmem:[#allocation3 + $0x38] sm:$0xff]
    %v3508 = vld [vmem:[#allocation3 + $0x40] sm:$0xff]
    %v3509 = vld [vmem:[#allocation3 + $0x48] sm:$0xff]
    %v3510 = vld [vmem:[#allocation3 + $0x50] sm:$0xff]
    %v3511 = vld [vmem:[#allocation3 + $0x58] sm:$0xff]
    %v3512 = vld [vmem:[#allocation3 + $0x60] sm:$0xff]
    %v3513 = vld [vmem:[#allocation3 + $0x68] sm:$0xff]
    %v3514 = vld [vmem:[#allocation3 + $0x70] sm:$0xff]
    %v3515 = vld [vmem:[#allocation3 + $0x78] sm:$0xff]
    %v3516 = vld [vmem:[#allocation3 + $0x80] sm:$0xff]
    %v3517 = vld [vmem:[#allocation3 + $0x88] sm:$0xff]
    %v3518 = vld [vmem:[#allocation3 + $0x90] sm:$0xff]
    %v3519 = vld [vmem:[#allocation3 + $0x98] sm:$0xff]
    %v3520 = vld [vmem:[#allocation3 + $0xa0] sm:$0xff]
    %v3521 = vld [vmem:[#allocation3 + $0xa8] sm:$0xff]
    %v3522 = vld [vmem:[#allocation3 + $0xb0] sm:$0xff]
    %v3523 = vld [vmem:[#allocation3 + $0xb8] sm:$0xff]
    %v3524 = vld [vmem:[#allocation3 + $0xc0] sm:$0xff]
    %v3525 = vld [vmem:[#allocation3 + $0xc8] sm:$0xff]
    %v3526 = vld [vmem:[#allocation3 + $0xd0] sm:$0xff]
    %v3527 = vld [vmem:[#allocation3 + $0xd8] sm:$0xff]
    %v3528 = vld [vmem:[#allocation3 + $0xe0] sm:$0xff]
    %v3529 = vld [vmem:[#allocation3 + $0xe8] sm:$0xff]
    %v3530 = vld [vmem:[#allocation3 + $0xf0] sm:$0xff]
    %v3531 = vld [vmem:[#allocation3 + $0xf8] sm:$0xff]
    %v3532 = vld [vmem:[#allocation3 + $0x100] sm:$0xff]
    %v3533 = vld [vmem:[#allocation3 + $0x108] sm:$0xff]
    %v3534 = vld [vmem:[#allocation3 + $0x110] sm:$0xff]
    %v3535 = vld [vmem:[#allocation3 + $0x118] sm:$0xff]
    %v3536 = vld [vmem:[#allocation3 + $0x120] sm:$0xff]
    %v3537 = vld [vmem:[#allocation3 + $0x128] sm:$0xff]
    %v3538 = vld [vmem:[#allocation3 + $0x130] sm:$0xff]
    %v3539 = vld [vmem:[#allocation3 + $0x138] sm:$0xff]
    %v3540 = vld [vmem:[#allocation3 + $0x140] sm:$0xff]
    %v3541 = vld [vmem:[#allocation3 + $0x148] sm:$0xff]
    %v3542 = vld [vmem:[#allocation3 + $0x150] sm:$0xff]
    %v3543 = vld [vmem:[#allocation3 + $0x158] sm:$0xff]
    %v3544 = vld [vmem:[#allocation3 + $0x160] sm:$0xff]
    %v3545 = vld [vmem:[#allocation3 + $0x168] sm:$0xff]
    %v3546 = vld [vmem:[#allocation3 + $0x170] sm:$0xff]
    %v3547 = vld [vmem:[#allocation3 + $0x178] sm:$0xff]
    %v3548 = vld [vmem:[#allocation4] sm:$0xff]
    %v3549 = vld [vmem:[#allocation4 + $0x8] sm:$0xff]
    %v3550 = vld [vmem:[#allocation4 + $0x10] sm:$0xff]
    %v3551 = vld [vmem:[#allocation4 + $0x18] sm:$0xff]
    %v3552 = vld [vmem:[#allocation4 + $0x20] sm:$0x33]
    %v3553 = vld [vmem:[#allocation4 + $0x28] sm:$0x33]
    %v3554 = vunpack.c.l.bf16 %v3548
    %v3555 = vunpack.c.h.bf16 %v3548
    %v3556 = vunpack.c.l.bf16 %v3549
    %v3557 = vunpack.c.h.bf16 %v3549
    %v3558 = vunpack.c.l.bf16 %v3550
    %v3559 = vunpack.c.h.bf16 %v3550
    %v3560 = vunpack.c.l.bf16 %v3551
    %v3561 = vunpack.c.h.bf16 %v3551
    %v3562 = vunpack.c.l.bf16 %v3552
    %v3563 = vunpack.c.h.bf16 %v3552
    %v3564 = vunpack.c.l.bf16 %v3553
    %v3565 = vunpack.c.h.bf16 %v3553
    %v3569 = vunpack.c.l.b16 %v3497
    %v3570 = vunpack.c.h.b16 %v3497
    %v3571 = vunpack.c.l.b16 %v3498
    %v3572 = vunpack.c.h.b16 %v3498
    %v3573 = vunpack.c.l.b16 %v3499
    %v3574 = vunpack.c.h.b16 %v3499
    %v3575 = vpack.c.b16 %v3571, %v3569
    %v3576 = vpack.c.b16 %v3572, %v3570
    %v3577 = vpack.c.b16 %v3573, %v3573
    %v3578 = vpack.c.b16 %v3574, %v3574
    %vm3581 = vcmask 523264
    %v3583 = vsel %vm3581, %v3576, 0
    %v3586 = vsel %vm3581, %v3578, 0
    %3588 = vmatprep.subr.bf16.mxu0 %v3501
    %3589 = vmatpush1.bf16.msra.mxu0 %v3500
    %3590 = vmatprep.subr.bf16.mxu0 %v3505
    %3591 = vmatpush1.bf16.msra.mxu0 %v3504
    %3592 = vmatprep.subr.bf16.mxu0 %v3509
    %3593 = vmatpush1.bf16.msra.mxu0 %v3508
    %3594 = vmatprep.subr.bf16.mxu0 %v3513
    %3595 = vmatpush1.bf16.msra.mxu0 %v3512
    %3596 = vmatprep.subr.bf16.mxu0 %v3517
    %3597 = vmatpush1.bf16.msra.mxu0 %v3516
    %3598 = vmatprep.subr.bf16.mxu0 %v3521
    %3599 = vmatpush1.bf16.msra.mxu0 %v3520
    %3600 = vmatprep.subr.bf16.mxu0 %v3525
    %3601 = vmatpush1.bf16.msra.mxu0 %v3524
    %3602 = vmatprep.subr.bf16.mxu0 %v3529
    %3603 = vmatpush1.bf16.msra.mxu0 %v3528
    %3604 = vmatprep.subr.bf16.mxu0 %v3533
    %3605 = vmatpush1.bf16.msra.mxu0 %v3532
    %3606 = vmatprep.subr.bf16.mxu0 %v3537
    %3607 = vmatpush1.bf16.msra.mxu0 %v3536
    %3608 = vmatprep.subr.bf16.mxu0 %v3541
    %3609 = vmatpush1.bf16.msra.mxu0 %v3540
    %3610 = vmatprep.subr.bf16.mxu0 %v3545
    %3611 = vmatpush1.bf16.msra.mxu0 %v3544
    %3612 = vmatprep.subr.bf16.mxu0 0
    %3613 = vmatpush1.bf16.msra.mxu0 0
    %3614 = vmatprep.subr.bf16.mxu0 0
    %3615 = vmatpush1.bf16.msra.mxu0 0
    %3616 = vmatprep.subr.bf16.mxu0 0
    %3617 = vmatpush1.bf16.msra.mxu0 0
    %3618 = vmatprep.subr.bf16.mxu0 0
    %3619 = vmatpush1.bf16.msra.mxu0 0
    %3620 = vmatprep.mubr.bf16.mxu0 %v3583
    %3621 = vmatmul.mubr.bf16.gmra.mrb[0].mxu0 %v3575
    %v3622 = vpop.f32.mrb[0].mxu0
    %v3623 = vadd.f32 %v3554, %v3622
    %v3624 = vpop.f32.mrb[0].mxu0
    %v3625 = vadd.f32 %v3555, %v3624
    %v3626 = vpop.f32.mrb[0].mxu0
    %v3627 = vadd.f32 %v3558, %v3626
    %v3628 = vpop.f32.mrb[0].mxu0
    %v3629 = vadd.f32 %v3559, %v3628
    %3630 = vmatprep.mubr.bf16.mxu0 %v3586
    %3631 = vmatmul.mubr.bf16.gmra.mrb[0].mxu0 %v3577
    %v3632 = vpop.f32.mrb[0].mxu0
    %v3633 = vadd.f32 %v3562, %v3632
    %v3634 = vpop.f32.mrb[0].mxu0
    %v3635 = vadd.f32 %v3563, %v3634
    %v3636 = vpop.f32.mrb[0].mxu0
    %v3637 = vpop.f32.mrb[0].mxu0
    %3638 = vdwg.mxu0
    %3639 = vmatprep.subr.bf16.mxu0 %v3503
    %3640 = vmatpush1.bf16.msra.mxu0 %v3502
    %3641 = vmatprep.subr.bf16.mxu0 %v3507
    %3642 = vmatpush1.bf16.msra.mxu0 %v3506
    %3643 = vmatprep.subr.bf16.mxu0 %v3511
    %3644 = vmatpush1.bf16.msra.mxu0 %v3510
    %3645 = vmatprep.subr.bf16.mxu0 %v3515
    %3646 = vmatpush1.bf16.msra.mxu0 %v3514
    %3647 = vmatprep.subr.bf16.mxu0 %v3519
    %3648 = vmatpush1.bf16.msra.mxu0 %v3518
    %3649 = vmatprep.subr.bf16.mxu0 %v3523
    %3650 = vmatpush1.bf16.msra.mxu0 %v3522
    %3651 = vmatprep.subr.bf16.mxu0 %v3527
    %3652 = vmatpush1.bf16.msra.mxu0 %v3526
    %3653 = vmatprep.subr.bf16.mxu0 %v3531
    %3654 = vmatpush1.bf16.msra.mxu0 %v3530
    %3655 = vmatprep.subr.bf16.mxu0 %v3535
    %3656 = vmatpush1.bf16.msra.mxu0 %v3534
    %3657 = vmatprep.subr.bf16.mxu0 %v3539
    %3658 = vmatpush1.bf16.msra.mxu0 %v3538
    %3659 = vmatprep.subr.bf16.mxu0 %v3543
    %3660 = vmatpush1.bf16.msra.mxu0 %v3542
    %3661 = vmatprep.subr.bf16.mxu0 %v3547
    %3662 = vmatpush1.bf16.msra.mxu0 %v3546
    %3663 = vmatprep.subr.bf16.mxu0 0
    %3664 = vmatpush1.bf16.msra.mxu0 0
    %3665 = vmatprep.subr.bf16.mxu0 0
    %3666 = vmatpush1.bf16.msra.mxu0 0
    %3667 = vmatprep.subr.bf16.mxu0 0
    %3668 = vmatpush1.bf16.msra.mxu0 0
    %3669 = vmatprep.subr.bf16.mxu0 0
    %3670 = vmatpush1.bf16.msra.mxu0 0
    %3671 = vmatprep.mubr.bf16.mxu0 %v3583
    %3672 = vmatmul.mubr.bf16.gmra.mrb[0].mxu0 %v3575
    %v3673 = vpop.f32.mrb[0].mxu0
    %v3674 = vadd.f32 %v3556, %v3673
    %v3675 = vpop.f32.mrb[0].mxu0
    %v3676 = vadd.f32 %v3557, %v3675
    %v3677 = vpop.f32.mrb[0].mxu0
    %v3678 = vadd.f32 %v3560, %v3677
    %v3679 = vpop.f32.mrb[0].mxu0
    %v3680 = vadd.f32 %v3561, %v3679
    %3681 = vmatprep.mubr.bf16.mxu0 %v3586
    %3682 = vmatmul.mubr.bf16.gmra.mrb[0].mxu0 %v3577
    %v3683 = vpop.f32.mrb[0].mxu0
    %v3684 = vadd.f32 %v3564, %v3683
    %v3685 = vpop.f32.mrb[0].mxu0
    %v3686 = vadd.f32 %v3565, %v3685
    %v3687 = vpop.f32.mrb[0].mxu0
    %v3688 = vpop.f32.mrb[0].mxu0
    %3689 = vdwg.mxu0
    %v3690 = vld [vmem:[%s4] sm:$0xff]
    %v3691 = vld [vmem:[%s4 + $0x8] sm:$0xff]
    %v3692 = vld [vmem:[%s4 + $0x10] sm:$0xf]
    %3694 = vset.pattern.permute.xlu0 0
    %3695 = vperm.xlu0 %3694, %v3690
    %v3696 = vpop.permute.xlu0 %3695
    %3699 = vset.pattern.permute.xlu0 0
    %3700 = vperm.xlu0 %3699, %v3691
    %v3701 = vpop.permute.xlu0 %3700
    %3704 = vset.pattern.permute.xlu0 0
    %3705 = vperm.xlu0 %3704, %v3692
    %v3706 = vpop.permute.xlu0 %3705
    %v3708 = vmul.f32 %v3623, %v3696
    %v3709 = vmul.f32 %v3625, %v3696
    %v3710 = vmul.f32 %v3674, %v3696
    %v3711 = vmul.f32 %v3676, %v3696
    %v3712 = vmul.f32 %v3627, %v3701
    %v3713 = vmul.f32 %v3629, %v3701
    %v3714 = vmul.f32 %v3678, %v3701
    %v3715 = vmul.f32 %v3680, %v3701
    %v3716 = vmul.f32 %v3633, %v3706
    %v3717 = vmul.f32 %v3635, %v3706
    %v3718 = vmul.f32 %v3684, %v3706
    %v3719 = vmul.f32 %v3686, %v3706
    %3720 = vset.pattern.permute.xlu0 1
    %3721 = vperm.xlu0 %3720, %v3690
    %v3722 = vpop.permute.xlu0 %3721
    %3724 = vset.pattern.permute.xlu0 1
    %3725 = vperm.xlu0 %3724, %v3691
    %v3726 = vpop.permute.xlu0 %3725
    %3728 = vset.pattern.permute.xlu0 1
    %3729 = vperm.xlu0 %3728, %v3692
    %v3730 = vpop.permute.xlu0 %3729
    %v3732 = vadd.f32 %v3708, %v3722
    %v3733 = vadd.f32 %v3709, %v3722
    %v3734 = vadd.f32 %v3710, %v3722
    %v3735 = vadd.f32 %v3711, %v3722
    %v3736 = vadd.f32 %v3712, %v3726
    %v3737 = vadd.f32 %v3713, %v3726
    %v3738 = vadd.f32 %v3714, %v3726
    %v3739 = vadd.f32 %v3715, %v3726
    %v3740 = vadd.f32 %v3716, %v3730
    %v3741 = vadd.f32 %v3717, %v3730
    %v3742 = vadd.f32 %v3718, %v3730
    %v3743 = vadd.f32 %v3719, %v3730
    %vm3744 = vcmp.ge.f32.partialorder %v3732, 0.0
    %vm3745 = vcmp.ge.f32.partialorder %v3733, 0.0
    %vm3746 = vcmp.ge.f32.partialorder %v3734, 0.0
    %vm3747 = vcmp.ge.f32.partialorder %v3735, 0.0
    %vm3748 = vcmp.ge.f32.partialorder %v3736, 0.0
    %vm3749 = vcmp.ge.f32.partialorder %v3737, 0.0
    %vm3750 = vcmp.ge.f32.partialorder %v3738, 0.0
    %vm3751 = vcmp.ge.f32.partialorder %v3739, 0.0
    %vm3752 = vcmp.ge.f32.partialorder %v3740, 0.0
    %vm3753 = vcmp.ge.f32.partialorder %v3741, 0.0
    %vm3754 = vcmp.ge.f32.partialorder %v3742, 0.0
    %vm3755 = vcmp.ge.f32.partialorder %v3743, 0.0
    %3756 = vset.pattern.permute.xlu0 2
    %3757 = vperm.xlu0 %3756, %v3690
    %v3758 = vpop.permute.xlu0 %3757
    %3760 = vset.pattern.permute.xlu0 2
    %3761 = vperm.xlu0 %3760, %v3691
    %v3762 = vpop.permute.xlu0 %3761
    %3764 = vset.pattern.permute.xlu0 2
    %3765 = vperm.xlu0 %3764, %v3692
    %v3766 = vpop.permute.xlu0 %3765
    %v3768 = vmul.f32 %v3758, %v3732
    %v3769 = vmul.f32 %v3758, %v3733
    %v3770 = vmul.f32 %v3758, %v3734
    %v3771 = vmul.f32 %v3758, %v3735
    %v3772 = vmul.f32 %v3762, %v3736
    %v3773 = vmul.f32 %v3762, %v3737
    %v3774 = vmul.f32 %v3762, %v3738
    %v3775 = vmul.f32 %v3762, %v3739
    %v3776 = vmul.f32 %v3766, %v3740
    %v3777 = vmul.f32 %v3766, %v3741
    %v3778 = vmul.f32 %v3766, %v3742
    %v3779 = vmul.f32 %v3766, %v3743
    %v3780 = vsel %vm3744, %v3732, %v3768
    %v3781 = vsel %vm3745, %v3733, %v3769
    %v3782 = vsel %vm3746, %v3734, %v3770
    %v3783 = vsel %vm3747, %v3735, %v3771
    %v3784 = vsel %vm3748, %v3736, %v3772
    %v3785 = vsel %vm3749, %v3737, %v3773
    %v3786 = vsel %vm3750, %v3738, %v3774
    %v3787 = vsel %vm3751, %v3739, %v3775
    %v3788 = vsel %vm3752, %v3740, %v3776
    %v3789 = vsel %vm3753, %v3741, %v3777
    %v3790 = vsel %vm3754, %v3742, %v3778
    %v3791 = vsel %vm3755, %v3743, %v3779
    %3792 = vst [vmem:[#allocation9] sm:$0xff] %v3780
    %3793 = vst [vmem:[#allocation9 + $0x8] sm:$0xff] %v3781
    %3794 = vst [vmem:[#allocation9 + $0x10] sm:$0xff] %v3782
    %3795 = vst [vmem:[#allocation9 + $0x18] sm:$0xff] %v3783
    %3796 = vst [vmem:[#allocation9 + $0x20] sm:$0xff] %v3784
    %3797 = vst [vmem:[#allocation9 + $0x28] sm:$0xff] %v3785
    %3798 = vst [vmem:[#allocation9 + $0x30] sm:$0xff] %v3786
    %3799 = vst [vmem:[#allocation9 + $0x38] sm:$0xff] %v3787
    %3800 = vst [vmem:[#allocation9 + $0x40] sm:$0xf] %v3788
    %3801 = vst [vmem:[#allocation9 + $0x48] sm:$0xf] %v3789
    %3802 = vst [vmem:[#allocation9 + $0x50] sm:$0xf] %v3790
    %3803 = vst [vmem:[#allocation9 + $0x58] sm:$0xf] %v3791
    // Predicated region
    $region30: #{tpu_custom_call.1} parent=1 // pred_check
      _
    $region31: #{tpu_custom_call.1} parent=1 // pred_check_branch
      %3805 = sbr.rel (0) target = $region33
    $region32: #{tpu_custom_call.1} parent=1 // pred_region
      %s3807 = ssub.s32 1536, 1536
      %3808 = vsyncadd [#allocation6], %s3807
      %s3809 = sshll.u32 [#allocation9], 4
      %s3810 = int_to_ptr.vmem [resolvable:$true] %s3809
      %3815 = dma.vmem_to_hbm [thread:$0]  %s3810, 1536, %s5, [#allocation6], 512, 512, 32
    $region33: #{tpu_custom_call.1} parent=1 // pred_fallthru
      _
    // Predicated region
    $region34: #{tpu_custom_call.1} parent=1 // pred_check
      _
    $region35: #{tpu_custom_call.1} parent=1 // pred_check_branch
      %3817 = sbr.rel (0) target = $region37
    $region36: #{tpu_custom_call.1} parent=1 // pred_region
      %3818 = dma.done [#allocation6], 1536
    $region37: #{tpu_custom_call.1} parent=1 // pred_fallthru
      _
    %3819 = vsyncpa [#allocation5], 1
    %3820 = vsyncpa [#allocation8], 1
    %3821 = vsyncpa [#allocation6], 1

</llo_original>
